<compile_context>
chip_gen: v6e
topology: v6e:2x2x1
jax: 0.10.0
libtpu: 0.0.40
codegen_flags: <defaults>
</compile_context>

<pallas_src>
import math
import functools

import jax
import jax.numpy as jnp
from jax import lax
from jax.experimental import pallas as pl
from jax.experimental.pallas import tpu as pltpu


def _layer_norm(x, gamma, beta, eps=1e-5):
    mu = jnp.mean(x, axis=-1, keepdims=True)
    var = jnp.mean((x - mu) ** 2, axis=-1, keepdims=True)
    return (x - mu) * lax.rsqrt(var + eps) * gamma + beta


def _gelu_exact(x):
    # F.gelu default (exact, erf-based) to match the PyTorch reference.
    return 0.5 * x * (1.0 + lax.erf(x * (1.0 / math.sqrt(2.0))))


def encoder_layer_kernel(
    x_ref,                       # (1, S, D)   f32
    wqkv_ref,                    # (D, 3D)     bf16   [Wq.T | Wk.T | Wv.T]
    wo3_ref, bo_ref,             # (H, dk, D)  bf16, (1, D) f32
    w1_ref, b1_ref,              # (D, F) bf16, (1, F) f32
    w2_ref, b2_ref,              # (F, D) bf16, (1, D) f32
    g1_ref, be1_ref,             # (1, D), (1, D) f32
    g2_ref, be2_ref,             # (1, D), (1, D) f32
    out_ref,                     # (1, S, D)
    attn_ref,                    # (1, H, S, S)
    *, n_heads,
):
    x = x_ref[0].astype(jnp.float32)                            # (S, D)
    S, D = x.shape
    dk = D // n_heads
    scale = 1.0 / math.sqrt(dk)

    # ---- fused QKV projection: one bf16 MXU matmul, f32 accumulation ----
    qkv = jnp.dot(x.astype(jnp.bfloat16), wqkv_ref[...],
                  preferred_element_type=jnp.float32)           # (S, 3D) f32

    # Scale Q before QK^T (S*dk multiplies instead of S*S).
    q2 = (qkv[:, 0:D] * scale).astype(jnp.bfloat16)             # (S, D)
    k2 = qkv[:, D:2 * D].astype(jnp.bfloat16)                   # (S, D)
    v2 = qkv[:, 2 * D:3 * D].astype(jnp.bfloat16)               # (S, D)

    # Split heads onto a leading (major) axis once.  With dk a multiple of 128 these are
    # clean lane-tile slices and the stack is just tile placement along a major axis.
    def split_heads(t):                                         # (S, D) -> (H, S, dk)
        return jnp.stack([t[:, h * dk:(h + 1) * dk] for h in range(n_heads)], axis=0)

    q3 = split_heads(q2)
    k3 = split_heads(k2)
    v3 = split_heads(v2)

    # ---- batched-head attention (MXU), softmax stats in f32 ----
    scores = jnp.einsum("hqd,hkd->hqk", q3, k3,
                        preferred_element_type=jnp.float32)     # (H, S, S)
    m = jnp.max(scores, axis=-1, keepdims=True)
    e = jnp.exp(scores - m)
    denom = jnp.sum(e, axis=-1, keepdims=True)
    probs = e * pl.reciprocal(denom, approx=True)               # (H, S, S) f32

    # Single lane-dense bulk store of all attention weights.
    attn_ref[0] = probs.astype(attn_ref.dtype)

    ctx = jnp.einsum("hqk,hkd->hqd", probs.astype(jnp.bfloat16), v3,
                     preferred_element_type=jnp.float32)        # (H, S, dk)

    # Head merge fused with the output projection: sum_h ctx_h @ Wo.T[h].
    proj = jnp.einsum("hqd,hdn->hqn", ctx.astype(jnp.bfloat16), wo3_ref[...],
                      preferred_element_type=jnp.float32)       # (H, S, D)
    attn_out = jnp.sum(proj, axis=0) + bo_ref[...]              # (S, D)

    # ---- residual + LayerNorm 1 (f32) ----
    x1 = _layer_norm(x + attn_out, g1_ref[...], be1_ref[...])

    # ---- feed forward (bf16 MXU inputs, f32 elementwise) ----
    h1 = jnp.dot(x1.astype(jnp.bfloat16), w1_ref[...],
                 preferred_element_type=jnp.float32) + b1_ref[...]
    h1 = _gelu_exact(h1)
    ff = jnp.dot(h1.astype(jnp.bfloat16), w2_ref[...],
                 preferred_element_type=jnp.float32) + b2_ref[...]

    # ---- residual + LayerNorm 2 ----
    x2 = _layer_norm(x1 + ff, g2_ref[...], be2_ref[...])
    out_ref[0] = x2.astype(out_ref.dtype)


def transformer_encoder_layer(x, params, n_heads, *, single_buffer_weights=True):
    """x: (B, S, D) float32.  Returns (out (B,S,D), attn_weights (B,H,S,S))."""
    B, S, D = x.shape
    d_ff = params["w1"].shape[0]
    dk = D // n_heads
    bf16 = jnp.bfloat16

    # PyTorch Linear computes y = x @ W.T + b; pre-transpose host-side so the kernel does
    # plain x @ W.  Fuse Q/K/V; reshape Wo.T per head; cast weight matrices to bf16.
    wqkv = jnp.concatenate(
        [params["wq"].T, params["wk"].T, params["wv"].T], axis=1).astype(bf16)   # (D, 3D)
    wo3 = params["wo"].T.reshape(n_heads, dk, D).astype(bf16)                    # (H, dk, D)
    w1T = params["w1"].T.astype(bf16)                                            # (D, F)
    w2T = params["w2"].T.astype(bf16)                                            # (F, D)
    bo = params["bo"].reshape(1, D).astype(jnp.float32)
    b1 = params["b1"].reshape(1, d_ff).astype(jnp.float32)
    b2 = params["b2"].reshape(1, D).astype(jnp.float32)
    g1 = params["g1"].reshape(1, D).astype(jnp.float32)
    be1 = params["be1"].reshape(1, D).astype(jnp.float32)
    g2 = params["g2"].reshape(1, D).astype(jnp.float32)
    be2 = params["be2"].reshape(1, D).astype(jnp.float32)

    def const_spec(arr):
        # Grid-invariant operand (weights / biases): same block for every grid step, so
        # double-buffering it is pure VMEM waste -> single-buffer when supported.
        zeros = (0,) * arr.ndim
        index_map = lambda b: zeros
        if single_buffer_weights:
            return pl.BlockSpec(arr.shape, index_map, pipeline_mode=pl.Buffered(1))
        return pl.BlockSpec(arr.shape, index_map)

    kernel = functools.partial(encoder_layer_kernel, n_heads=n_heads)

    out_shapes = (
        jax.ShapeDtypeStruct((B, S, D), x.dtype),
        jax.ShapeDtypeStruct((B, n_heads, S, S), jnp.float32),
    )

    weights = (wqkv, wo3, bo, w1T, b1, w2T, b2, g1, be1, g2, be2)

    return pl.pallas_call(
        kernel,
        out_shape=out_shapes,
        grid_spec=pltpu.PrefetchScalarGridSpec(
            num_scalar_prefetch=0,
            grid=(B,),
            in_specs=[pl.BlockSpec((1, S, D), lambda b: (b, 0, 0))]
                     + [const_spec(w) for w in weights],
            out_specs=[
                pl.BlockSpec((1, S, D), lambda b: (b, 0, 0)),
                pl.BlockSpec((1, n_heads, S, S), lambda b: (b, 0, 0, 0)),
            ],
        ),
        compiler_params=pltpu.CompilerParams(
            dimension_semantics=("parallel",),
            vmem_limit_bytes=64 * 1024 * 1024,
        ),
    )(x, *weights)


def init_params(key, d_model, d_ff):
    ks = jax.random.split(key, 8)
    s = 0.02
    return {
        "wq": s * jax.random.normal(ks[0], (d_model, d_model), jnp.float32),
        "wk": s * jax.random.normal(ks[1], (d_model, d_model), jnp.float32),
        "wv": s * jax.random.normal(ks[2], (d_model, d_model), jnp.float32),
        "wo": s * jax.random.normal(ks[3], (d_model, d_model), jnp.float32),
        "bo": jnp.zeros((d_model,), jnp.float32),
        "w1": s * jax.random.normal(ks[4], (d_ff, d_model), jnp.float32),
        "b1": jnp.zeros((d_ff,), jnp.float32),
        "w2": s * jax.random.normal(ks[5], (d_model, d_ff), jnp.float32),
        "b2": jnp.zeros((d_model,), jnp.float32),
        "g1": jnp.ones((d_model,), jnp.float32),
        "be1": jnp.zeros((d_model,), jnp.float32),
        "g2": jnp.ones((d_model,), jnp.float32),
        "be2": jnp.zeros((d_model,), jnp.float32),
    }


if __name__ == "__main__":
    B, S, D, H, F = 2, 8, 32, 4, 64

    key = jax.random.PRNGKey(0)
    k_x, k_p = jax.random.split(key)
    x = jax.random.normal(k_x, (B, S, D), jnp.float32)
    params = init_params(k_p, D, F)

    try:
        out, attn_w = transformer_encoder_layer(x, params, n_heads=H,
                                                single_buffer_weights=True)
        jax.block_until_ready((out, attn_w))
    except Exception:
        # Fallback for JAX builds where pl.Buffered(1) pipeline_mode is not supported.
        out, attn_w = transformer_encoder_layer(x, params, n_heads=H,
                                                single_buffer_weights=False)
        jax.block_until_ready((out, attn_w))

    assert out.shape == (B, S, D)
    assert attn_w.shape == (B, H, S, S)
    print("KERNEL_OK")
</pallas_src>

<mosaic_0001>
module attributes {stable_mosaic.version = 11 : i64} {
  func.func @encoder_layer_kernel(%arg0: i32, %arg1: memref<1x8x32xf32, #tpu.memory_space<vmem>>, %arg2: memref<32x96xbf16, #tpu.memory_space<vmem>>, %arg3: memref<4x8x32xbf16, #tpu.memory_space<vmem>>, %arg4: memref<1x32xf32, #tpu.memory_space<vmem>>, %arg5: memref<32x64xbf16, #tpu.memory_space<vmem>>, %arg6: memref<1x64xf32, #tpu.memory_space<vmem>>, %arg7: memref<64x32xbf16, #tpu.memory_space<vmem>>, %arg8: memref<1x32xf32, #tpu.memory_space<vmem>>, %arg9: memref<1x32xf32, #tpu.memory_space<vmem>>, %arg10: memref<1x32xf32, #tpu.memory_space<vmem>>, %arg11: memref<1x32xf32, #tpu.memory_space<vmem>>, %arg12: memref<1x32xf32, #tpu.memory_space<vmem>>, %arg13: memref<1x8x32xf32, #tpu.memory_space<vmem>>, %arg14: memref<1x4x8x8xf32, #tpu.memory_space<vmem>>) attributes {dimension_semantics = [#tpu.dimension_semantics<parallel>], iteration_bounds = array<i64: 2>, scalar_prefetch = 0 : i64, scratch_operands = 0 : i64, tpu.core_type = #tpu.core_type<tc>, window_params = [{transform_indices = @transform_0, window_bounds = array<i64: 1, 8, 32>}, {pipeline_mode = #tpu.pipeline_mode<synchronous>, transform_indices = @transform_1, window_bounds = array<i64: 32, 96>}, {pipeline_mode = #tpu.pipeline_mode<synchronous>, transform_indices = @transform_2, window_bounds = array<i64: 4, 8, 32>}, {pipeline_mode = #tpu.pipeline_mode<synchronous>, transform_indices = @transform_3, window_bounds = array<i64: 1, 32>}, {pipeline_mode = #tpu.pipeline_mode<synchronous>, transform_indices = @transform_4, window_bounds = array<i64: 32, 64>}, {pipeline_mode = #tpu.pipeline_mode<synchronous>, transform_indices = @transform_5, window_bounds = array<i64: 1, 64>}, {pipeline_mode = #tpu.pipeline_mode<synchronous>, transform_indices = @transform_6, window_bounds = array<i64: 64, 32>}, {pipeline_mode = #tpu.pipeline_mode<synchronous>, transform_indices = @transform_7, window_bounds = array<i64: 1, 32>}, {pipeline_mode = #tpu.pipeline_mode<synchronous>, transform_indices = @transform_8, window_bounds = array<i64: 1, 32>}, {pipeline_mode = #tpu.pipeline_mode<synchronous>, transform_indices = @transform_9, window_bounds = array<i64: 1, 32>}, {pipeline_mode = #tpu.pipeline_mode<synchronous>, transform_indices = @transform_10, window_bounds = array<i64: 1, 32>}, {pipeline_mode = #tpu.pipeline_mode<synchronous>, transform_indices = @transform_11, window_bounds = array<i64: 1, 32>}, {transform_indices = @transform_12, window_bounds = array<i64: 1, 8, 32>}, {transform_indices = @transform_13, window_bounds = array<i64: 1, 4, 8, 8>}]} {
    %c0 = arith.constant 0 : index
    %c0_0 = arith.constant 0 : index
    %c0_1 = arith.constant 0 : index
    %0 = vector.load %arg1[%c0, %c0_0, %c0_1] : memref<1x8x32xf32, #tpu.memory_space<vmem>>, vector<1x8x32xf32>
    %1 = vector.shape_cast %0 : vector<1x8x32xf32> to vector<8x32xf32>
    %2 = arith.truncf %1 : vector<8x32xf32> to vector<8x32xbf16>
    %c0_2 = arith.constant 0 : index
    %c0_3 = arith.constant 0 : index
    %3 = vector.load %arg2[%c0_2, %c0_3] : memref<32x96xbf16, #tpu.memory_space<vmem>>, vector<32x96xbf16>
    %cst = arith.constant dense<0.000000e+00> : vector<8x96xf32>
    %4 = tpu.matmul %2, %3, %cst {dimension_numbers = #tpu.dot_dimension_numbers<[1], [0], [0], [1], [0, 0, 1, 1], [], []>} : vector<8x32xbf16>, vector<32x96xbf16>, vector<8x96xf32> -> vector<8x96xf32>
    %5 = vector.extract_strided_slice %4 {offsets = [0, 0], sizes = [8, 32], strides = [1, 1]} : vector<8x96xf32> to vector<8x32xf32>
    %cst_4 = arith.constant 0.353553385 : f32
    %6 = vector.broadcast %cst_4 : f32 to vector<8x32xf32>
    %7 = arith.mulf %5, %6 : vector<8x32xf32>
    %8 = arith.truncf %7 : vector<8x32xf32> to vector<8x32xbf16>
    %9 = vector.extract_strided_slice %4 {offsets = [0, 32], sizes = [8, 32], strides = [1, 1]} : vector<8x96xf32> to vector<8x32xf32>
    %10 = arith.truncf %9 : vector<8x32xf32> to vector<8x32xbf16>
    %11 = vector.extract_strided_slice %4 {offsets = [0, 64], sizes = [8, 32], strides = [1, 1]} : vector<8x96xf32> to vector<8x32xf32>
    %12 = arith.truncf %11 : vector<8x32xf32> to vector<8x32xbf16>
    %13 = vector.extract_strided_slice %8 {offsets = [0, 0], sizes = [8, 8], strides = [1, 1]} : vector<8x32xbf16> to vector<8x8xbf16>
    %14 = vector.extract_strided_slice %8 {offsets = [0, 8], sizes = [8, 8], strides = [1, 1]} : vector<8x32xbf16> to vector<8x8xbf16>
    %15 = vector.extract_strided_slice %8 {offsets = [0, 16], sizes = [8, 8], strides = [1, 1]} : vector<8x32xbf16> to vector<8x8xbf16>
    %16 = vector.extract_strided_slice %8 {offsets = [0, 24], sizes = [8, 8], strides = [1, 1]} : vector<8x32xbf16> to vector<8x8xbf16>
    %17 = vector.shape_cast %13 : vector<8x8xbf16> to vector<1x8x8xbf16>
    %18 = vector.shape_cast %14 : vector<8x8xbf16> to vector<1x8x8xbf16>
    %19 = vector.shape_cast %15 : vector<8x8xbf16> to vector<1x8x8xbf16>
    %20 = vector.shape_cast %16 : vector<8x8xbf16> to vector<1x8x8xbf16>
    %21 = tpu.concatenate %17, %18, %19, %20 in 0 : vector<1x8x8xbf16>, vector<1x8x8xbf16>, vector<1x8x8xbf16>, vector<1x8x8xbf16> -> vector<4x8x8xbf16>
    %22 = vector.extract_strided_slice %10 {offsets = [0, 0], sizes = [8, 8], strides = [1, 1]} : vector<8x32xbf16> to vector<8x8xbf16>
    %23 = vector.extract_strided_slice %10 {offsets = [0, 8], sizes = [8, 8], strides = [1, 1]} : vector<8x32xbf16> to vector<8x8xbf16>
    %24 = vector.extract_strided_slice %10 {offsets = [0, 16], sizes = [8, 8], strides = [1, 1]} : vector<8x32xbf16> to vector<8x8xbf16>
    %25 = vector.extract_strided_slice %10 {offsets = [0, 24], sizes = [8, 8], strides = [1, 1]} : vector<8x32xbf16> to vector<8x8xbf16>
    %26 = vector.shape_cast %22 : vector<8x8xbf16> to vector<1x8x8xbf16>
    %27 = vector.shape_cast %23 : vector<8x8xbf16> to vector<1x8x8xbf16>
    %28 = vector.shape_cast %24 : vector<8x8xbf16> to vector<1x8x8xbf16>
    %29 = vector.shape_cast %25 : vector<8x8xbf16> to vector<1x8x8xbf16>
    %30 = tpu.concatenate %26, %27, %28, %29 in 0 : vector<1x8x8xbf16>, vector<1x8x8xbf16>, vector<1x8x8xbf16>, vector<1x8x8xbf16> -> vector<4x8x8xbf16>
    %31 = vector.extract_strided_slice %12 {offsets = [0, 0], sizes = [8, 8], strides = [1, 1]} : vector<8x32xbf16> to vector<8x8xbf16>
    %32 = vector.extract_strided_slice %12 {offsets = [0, 8], sizes = [8, 8], strides = [1, 1]} : vector<8x32xbf16> to vector<8x8xbf16>
    %33 = vector.extract_strided_slice %12 {offsets = [0, 16], sizes = [8, 8], strides = [1, 1]} : vector<8x32xbf16> to vector<8x8xbf16>
    %34 = vector.extract_strided_slice %12 {offsets = [0, 24], sizes = [8, 8], strides = [1, 1]} : vector<8x32xbf16> to vector<8x8xbf16>
    %35 = vector.shape_cast %31 : vector<8x8xbf16> to vector<1x8x8xbf16>
    %36 = vector.shape_cast %32 : vector<8x8xbf16> to vector<1x8x8xbf16>
    %37 = vector.shape_cast %33 : vector<8x8xbf16> to vector<1x8x8xbf16>
    %38 = vector.shape_cast %34 : vector<8x8xbf16> to vector<1x8x8xbf16>
    %39 = tpu.concatenate %35, %36, %37, %38 in 0 : vector<1x8x8xbf16>, vector<1x8x8xbf16>, vector<1x8x8xbf16>, vector<1x8x8xbf16> -> vector<4x8x8xbf16>
    "tpu.trace_start"() <{level = 10 : i32, message = "hqd,hkd->hqk"}> : () -> ()
    %cst_5 = arith.constant dense<0.000000e+00> : vector<4x8x8xf32>
    %40 = tpu.matmul %21, %30, %cst_5 {dimension_numbers = #tpu.dot_dimension_numbers<[2], [2], [1], [1], [0, 0, 0, 1, 1, 1], [0], [0]>} : vector<4x8x8xbf16>, vector<4x8x8xbf16>, vector<4x8x8xf32> -> vector<4x8x8xf32>
    "tpu.trace_stop"() : () -> ()
    %cst_6 = arith.constant dense<0xFF800000> : vector<4x8xf32>
    %41 = vector.multi_reduction <maximumf>, %40, %cst_6 [2] : vector<4x8x8xf32> to vector<4x8xf32>
    %42 = vector.shape_cast %41 : vector<4x8xf32> to vector<4x8x1xf32>
    %43 = vector.broadcast %42 : vector<4x8x1xf32> to vector<4x8x8xf32>
    %44 = arith.subf %40, %43 : vector<4x8x8xf32>
    %45 = math.exp %44 : vector<4x8x8xf32>
    %cst_7 = arith.constant dense<0.000000e+00> : vector<4x8xf32>
    %46 = vector.multi_reduction <add>, %45, %cst_7 [2] : vector<4x8x8xf32> to vector<4x8xf32>
    %47 = vector.shape_cast %46 : vector<4x8xf32> to vector<4x8x1xf32>
    %48 = tpu.reciprocal %47 {approx = true} : vector<4x8x1xf32> -> vector<4x8x1xf32>
    %49 = vector.broadcast %48 : vector<4x8x1xf32> to vector<4x8x8xf32>
    %50 = arith.mulf %45, %49 : vector<4x8x8xf32>
    %c0_8 = arith.constant 0 : index
    %c0_9 = arith.constant 0 : index
    %c0_10 = arith.constant 0 : index
    %c0_11 = arith.constant 0 : index
    %51 = vector.load %arg14[%c0_8, %c0_9, %c0_10, %c0_11] : memref<1x4x8x8xf32, #tpu.memory_space<vmem>>, vector<1x4x8x8xf32>
    %52 = vector.shape_cast %51 : vector<1x4x8x8xf32> to vector<4x8x8xf32>
    %53 = vector.shape_cast %50 : vector<4x8x8xf32> to vector<1x4x8x8xf32>
    tpu.vector_store %arg14[%c0_8, %c0_9, %c0_10, %c0_11], %53 {strides = array<i32>} : memref<1x4x8x8xf32, #tpu.memory_space<vmem>>, vector<1x4x8x8xf32>,
    %54 = arith.truncf %50 : vector<4x8x8xf32> to vector<4x8x8xbf16>
    "tpu.trace_start"() <{level = 10 : i32, message = "hqk,hkd->hqd"}> : () -> ()
    %cst_12 = arith.constant dense<0.000000e+00> : vector<4x8x8xf32>
    %55 = tpu.matmul %54, %39, %cst_12 {dimension_numbers = #tpu.dot_dimension_numbers<[2], [1], [1], [2], [0, 0, 0, 1, 1, 2], [0], [0]>} : vector<4x8x8xbf16>, vector<4x8x8xbf16>, vector<4x8x8xf32> -> vector<4x8x8xf32>
    "tpu.trace_stop"() : () -> ()
    %56 = arith.truncf %55 : vector<4x8x8xf32> to vector<4x8x8xbf16>
    %c0_13 = arith.constant 0 : index
    %c0_14 = arith.constant 0 : index
    %c0_15 = arith.constant 0 : index
    %57 = vector.load %arg3[%c0_13, %c0_14, %c0_15] : memref<4x8x32xbf16, #tpu.memory_space<vmem>>, vector<4x8x32xbf16>
    "tpu.trace_start"() <{level = 10 : i32, message = "hqd,hdn->hqn"}> : () -> ()
    %cst_16 = arith.constant dense<0.000000e+00> : vector<4x8x32xf32>
    %58 = tpu.matmul %56, %57, %cst_16 {dimension_numbers = #tpu.dot_dimension_numbers<[2], [1], [1], [2], [0, 0, 0, 1, 1, 2], [0], [0]>} : vector<4x8x8xbf16>, vector<4x8x32xbf16>, vector<4x8x32xf32> -> vector<4x8x32xf32>
    "tpu.trace_stop"() : () -> ()
    %cst_17 = arith.constant dense<0.000000e+00> : vector<8x32xf32>
    %59 = vector.multi_reduction <add>, %58, %cst_17 [0] : vector<4x8x32xf32> to vector<8x32xf32>
    %c0_18 = arith.constant 0 : index
    %c0_19 = arith.constant 0 : index
    %60 = vector.load %arg4[%c0_18, %c0_19] : memref<1x32xf32, #tpu.memory_space<vmem>>, vector<1x32xf32>
    %61 = vector.broadcast %60 : vector<1x32xf32> to vector<8x32xf32>
    %62 = arith.addf %59, %61 : vector<8x32xf32>
    %63 = arith.addf %1, %62 : vector<8x32xf32>
    %c0_20 = arith.constant 0 : index
    %c0_21 = arith.constant 0 : index
    %64 = vector.load %arg9[%c0_20, %c0_21] : memref<1x32xf32, #tpu.memory_space<vmem>>, vector<1x32xf32>
    %c0_22 = arith.constant 0 : index
    %c0_23 = arith.constant 0 : index
    %65 = vector.load %arg10[%c0_22, %c0_23] : memref<1x32xf32, #tpu.memory_space<vmem>>, vector<1x32xf32>
    %cst_24 = arith.constant dense<0.000000e+00> : vector<8xf32>
    %66 = vector.multi_reduction <add>, %63, %cst_24 [1] : vector<8x32xf32> to vector<8xf32>
    %67 = vector.shape_cast %66 : vector<8xf32> to vector<8x1xf32>
    %cst_25 = arith.constant 3.200000e+01 : f32
    %68 = vector.broadcast %cst_25 : f32 to vector<8x1xf32>
    %69 = arith.divf %67, %68 : vector<8x1xf32>
    %70 = vector.broadcast %69 : vector<8x1xf32> to vector<8x32xf32>
    %71 = arith.subf %63, %70 : vector<8x32xf32>
    %72 = arith.mulf %71, %71 : vector<8x32xf32>
    %cst_26 = arith.constant dense<0.000000e+00> : vector<8xf32>
    %73 = vector.multi_reduction <add>, %72, %cst_26 [1] : vector<8x32xf32> to vector<8xf32>
    %74 = vector.shape_cast %73 : vector<8xf32> to vector<8x1xf32>
    %cst_27 = arith.constant 3.200000e+01 : f32
    %75 = vector.broadcast %cst_27 : f32 to vector<8x1xf32>
    %76 = arith.divf %74, %75 : vector<8x1xf32>
    %77 = vector.broadcast %69 : vector<8x1xf32> to vector<8x32xf32>
    %78 = arith.subf %63, %77 : vector<8x32xf32>
    %cst_28 = arith.constant 9.99999974E-6 : f32
    %79 = vector.broadcast %cst_28 : f32 to vector<8x1xf32>
    %80 = arith.addf %76, %79 : vector<8x1xf32>
    %81 = math.rsqrt %80 : vector<8x1xf32>
    %82 = vector.broadcast %81 : vector<8x1xf32> to vector<8x32xf32>
    %83 = arith.mulf %78, %82 : vector<8x32xf32>
    %84 = vector.broadcast %64 : vector<1x32xf32> to vector<8x32xf32>
    %85 = arith.mulf %83, %84 : vector<8x32xf32>
    %86 = vector.broadcast %65 : vector<1x32xf32> to vector<8x32xf32>
    %87 = arith.addf %85, %86 : vector<8x32xf32>
    %88 = arith.truncf %87 : vector<8x32xf32> to vector<8x32xbf16>
    %c0_29 = arith.constant 0 : index
    %c0_30 = arith.constant 0 : index
    %89 = vector.load %arg5[%c0_29, %c0_30] : memref<32x64xbf16, #tpu.memory_space<vmem>>, vector<32x64xbf16>
    %cst_31 = arith.constant dense<0.000000e+00> : vector<8x64xf32>
    %90 = tpu.matmul %88, %89, %cst_31 {dimension_numbers = #tpu.dot_dimension_numbers<[1], [0], [0], [1], [0, 0, 1, 1], [], []>} : vector<8x32xbf16>, vector<32x64xbf16>, vector<8x64xf32> -> vector<8x64xf32>
    %c0_32 = arith.constant 0 : index
    %c0_33 = arith.constant 0 : index
    %91 = vector.load %arg6[%c0_32, %c0_33] : memref<1x64xf32, #tpu.memory_space<vmem>>, vector<1x64xf32>
    %92 = vector.broadcast %91 : vector<1x64xf32> to vector<8x64xf32>
    %93 = arith.addf %90, %92 : vector<8x64xf32>
    %cst_34 = arith.constant 5.000000e-01 : f32
    %94 = vector.broadcast %cst_34 : f32 to vector<8x64xf32>
    %95 = arith.mulf %94, %93 : vector<8x64xf32>
    %cst_35 = arith.constant 0.707106769 : f32
    %96 = vector.broadcast %cst_35 : f32 to vector<8x64xf32>
    %97 = arith.mulf %93, %96 : vector<8x64xf32>
    %98 = math.erf %97 : vector<8x64xf32>
    %cst_36 = arith.constant 1.000000e+00 : f32
    %99 = vector.broadcast %cst_36 : f32 to vector<8x64xf32>
    %100 = arith.addf %99, %98 : vector<8x64xf32>
    %101 = arith.mulf %95, %100 : vector<8x64xf32>
    %102 = arith.truncf %101 : vector<8x64xf32> to vector<8x64xbf16>
    %c0_37 = arith.constant 0 : index
    %c0_38 = arith.constant 0 : index
    %103 = vector.load %arg7[%c0_37, %c0_38] : memref<64x32xbf16, #tpu.memory_space<vmem>>, vector<64x32xbf16>
    %cst_39 = arith.constant dense<0.000000e+00> : vector<8x32xf32>
    %104 = tpu.matmul %102, %103, %cst_39 {dimension_numbers = #tpu.dot_dimension_numbers<[1], [0], [0], [1], [0, 0, 1, 1], [], []>} : vector<8x64xbf16>, vector<64x32xbf16>, vector<8x32xf32> -> vector<8x32xf32>
    %c0_40 = arith.constant 0 : index
    %c0_41 = arith.constant 0 : index
    %105 = vector.load %arg8[%c0_40, %c0_41] : memref<1x32xf32, #tpu.memory_space<vmem>>, vector<1x32xf32>
    %106 = vector.broadcast %105 : vector<1x32xf32> to vector<8x32xf32>
    %107 = arith.addf %104, %106 : vector<8x32xf32>
    %108 = arith.addf %87, %107 : vector<8x32xf32>
    %c0_42 = arith.constant 0 : index
    %c0_43 = arith.constant 0 : index
    %109 = vector.load %arg11[%c0_42, %c0_43] : memref<1x32xf32, #tpu.memory_space<vmem>>, vector<1x32xf32>
    %c0_44 = arith.constant 0 : index
    %c0_45 = arith.constant 0 : index
    %110 = vector.load %arg12[%c0_44, %c0_45] : memref<1x32xf32, #tpu.memory_space<vmem>>, vector<1x32xf32>
    %cst_46 = arith.constant dense<0.000000e+00> : vector<8xf32>
    %111 = vector.multi_reduction <add>, %108, %cst_46 [1] : vector<8x32xf32> to vector<8xf32>
    %112 = vector.shape_cast %111 : vector<8xf32> to vector<8x1xf32>
    %cst_47 = arith.constant 3.200000e+01 : f32
    %113 = vector.broadcast %cst_47 : f32 to vector<8x1xf32>
    %114 = arith.divf %112, %113 : vector<8x1xf32>
    %115 = vector.broadcast %114 : vector<8x1xf32> to vector<8x32xf32>
    %116 = arith.subf %108, %115 : vector<8x32xf32>
    %117 = arith.mulf %116, %116 : vector<8x32xf32>
    %cst_48 = arith.constant dense<0.000000e+00> : vector<8xf32>
    %118 = vector.multi_reduction <add>, %117, %cst_48 [1] : vector<8x32xf32> to vector<8xf32>
    %119 = vector.shape_cast %118 : vector<8xf32> to vector<8x1xf32>
    %cst_49 = arith.constant 3.200000e+01 : f32
    %120 = vector.broadcast %cst_49 : f32 to vector<8x1xf32>
    %121 = arith.divf %119, %120 : vector<8x1xf32>
    %122 = vector.broadcast %114 : vector<8x1xf32> to vector<8x32xf32>
    %123 = arith.subf %108, %122 : vector<8x32xf32>
    %cst_50 = arith.constant 9.99999974E-6 : f32
    %124 = vector.broadcast %cst_50 : f32 to vector<8x1xf32>
    %125 = arith.addf %121, %124 : vector<8x1xf32>
    %126 = math.rsqrt %125 : vector<8x1xf32>
    %127 = vector.broadcast %126 : vector<8x1xf32> to vector<8x32xf32>
    %128 = arith.mulf %123, %127 : vector<8x32xf32>
    %129 = vector.broadcast %109 : vector<1x32xf32> to vector<8x32xf32>
    %130 = arith.mulf %128, %129 : vector<8x32xf32>
    %131 = vector.broadcast %110 : vector<1x32xf32> to vector<8x32xf32>
    %132 = arith.addf %130, %131 : vector<8x32xf32>
    %c0_51 = arith.constant 0 : index
    %c0_52 = arith.constant 0 : index
    %c0_53 = arith.constant 0 : index
    %133 = vector.load %arg13[%c0_51, %c0_52, %c0_53] : memref<1x8x32xf32, #tpu.memory_space<vmem>>, vector<1x8x32xf32>
    %134 = vector.shape_cast %133 : vector<1x8x32xf32> to vector<8x32xf32>
    %135 = vector.shape_cast %132 : vector<8x32xf32> to vector<1x8x32xf32>
    tpu.vector_store %arg13[%c0_51, %c0_52, %c0_53], %135 {strides = array<i32>} : memref<1x8x32xf32, #tpu.memory_space<vmem>>, vector<1x8x32xf32>,
    return
  }
  func.func @transform_0(%arg0: i32) -> (i32, i32, i32) {
    %c0_i32 = arith.constant 0 : i32
    %c0_i32_0 = arith.constant 0 : i32
    %c0_i32_1 = arith.constant 0 : i32
    return %arg0, %c0_i32, %c0_i32_0 : i32, i32, i32
  }
  func.func @transform_1(%arg0: i32) -> (i32, i32) {
    %c0_i32 = arith.constant 0 : i32
    %c0_i32_0 = arith.constant 0 : i32
    %c0_i32_1 = arith.constant 0 : i32
    return %c0_i32, %c0_i32_0 : i32, i32
  }
  func.func @transform_2(%arg0: i32) -> (i32, i32, i32) {
    %c0_i32 = arith.constant 0 : i32
    %c0_i32_0 = arith.constant 0 : i32
    %c0_i32_1 = arith.constant 0 : i32
    %c0_i32_2 = arith.constant 0 : i32
    return %c0_i32, %c0_i32_0, %c0_i32_1 : i32, i32, i32
  }
  func.func @transform_3(%arg0: i32) -> (i32, i32) {
    %c0_i32 = arith.constant 0 : i32
    %c0_i32_0 = arith.constant 0 : i32
    %c0_i32_1 = arith.constant 0 : i32
    return %c0_i32, %c0_i32_0 : i32, i32
  }
  func.func @transform_4(%arg0: i32) -> (i32, i32) {
    %c0_i32 = arith.constant 0 : i32
    %c0_i32_0 = arith.constant 0 : i32
    %c0_i32_1 = arith.constant 0 : i32
    return %c0_i32, %c0_i32_0 : i32, i32
  }
  func.func @transform_5(%arg0: i32) -> (i32, i32) {
    %c0_i32 = arith.constant 0 : i32
    %c0_i32_0 = arith.constant 0 : i32
    %c0_i32_1 = arith.constant 0 : i32
    return %c0_i32, %c0_i32_0 : i32, i32
  }
  func.func @transform_6(%arg0: i32) -> (i32, i32) {
    %c0_i32 = arith.constant 0 : i32
    %c0_i32_0 = arith.constant 0 : i32
    %c0_i32_1 = arith.constant 0 : i32
    return %c0_i32, %c0_i32_0 : i32, i32
  }
  func.func @transform_7(%arg0: i32) -> (i32, i32) {
    %c0_i32 = arith.constant 0 : i32
    %c0_i32_0 = arith.constant 0 : i32
    %c0_i32_1 = arith.constant 0 : i32
    return %c0_i32, %c0_i32_0 : i32, i32
  }
  func.func @transform_8(%arg0: i32) -> (i32, i32) {
    %c0_i32 = arith.constant 0 : i32
    %c0_i32_0 = arith.constant 0 : i32
    %c0_i32_1 = arith.constant 0 : i32
    return %c0_i32, %c0_i32_0 : i32, i32
  }
  func.func @transform_9(%arg0: i32) -> (i32, i32) {
    %c0_i32 = arith.constant 0 : i32
    %c0_i32_0 = arith.constant 0 : i32
    %c0_i32_1 = arith.constant 0 : i32
    return %c0_i32, %c0_i32_0 : i32, i32
  }
  func.func @transform_10(%arg0: i32) -> (i32, i32) {
    %c0_i32 = arith.constant 0 : i32
    %c0_i32_0 = arith.constant 0 : i32
    %c0_i32_1 = arith.constant 0 : i32
    return %c0_i32, %c0_i32_0 : i32, i32
  }
  func.func @transform_11(%arg0: i32) -> (i32, i32) {
    %c0_i32 = arith.constant 0 : i32
    %c0_i32_0 = arith.constant 0 : i32
    %c0_i32_1 = arith.constant 0 : i32
    return %c0_i32, %c0_i32_0 : i32, i32
  }
  func.func @transform_12(%arg0: i32) -> (i32, i32, i32) {
    %c0_i32 = arith.constant 0 : i32
    %c0_i32_0 = arith.constant 0 : i32
    %c0_i32_1 = arith.constant 0 : i32
    return %arg0, %c0_i32, %c0_i32_0 : i32, i32, i32
  }
  func.func @transform_13(%arg0: i32) -> (i32, i32, i32, i32) {
    %c0_i32 = arith.constant 0 : i32
    %c0_i32_0 = arith.constant 0 : i32
    %c0_i32_1 = arith.constant 0 : i32
    %c0_i32_2 = arith.constant 0 : i32
    return %arg0, %c0_i32, %c0_i32_0, %c0_i32_1 : i32, i32, i32, i32
  }
}

module attributes {stable_mosaic.version = 11 : i64} {
  func.func @encoder_layer_kernel(%arg0: i32, %arg1: memref<1x8x32xf32, #tpu.memory_space<vmem>>, %arg2: memref<32x96xbf16, #tpu.memory_space<vmem>>, %arg3: memref<4x8x32xbf16, #tpu.memory_space<vmem>>, %arg4: memref<1x32xf32, #tpu.memory_space<vmem>>, %arg5: memref<32x64xbf16, #tpu.memory_space<vmem>>, %arg6: memref<1x64xf32, #tpu.memory_space<vmem>>, %arg7: memref<64x32xbf16, #tpu.memory_space<vmem>>, %arg8: memref<1x32xf32, #tpu.memory_space<vmem>>, %arg9: memref<1x32xf32, #tpu.memory_space<vmem>>, %arg10: memref<1x32xf32, #tpu.memory_space<vmem>>, %arg11: memref<1x32xf32, #tpu.memory_space<vmem>>, %arg12: memref<1x32xf32, #tpu.memory_space<vmem>>, %arg13: memref<1x8x32xf32, #tpu.memory_space<vmem>>, %arg14: memref<1x4x8x8xf32, #tpu.memory_space<vmem>>) attributes {dimension_semantics = [#tpu.dimension_semantics<parallel>], iteration_bounds = array<i64: 2>, scalar_prefetch = 0 : i64, scratch_operands = 0 : i64, tpu.core_type = #tpu.core_type<tc>, window_params = [{transform_indices = @transform_0, window_bounds = array<i64: 1, 8, 32>}, {pipeline_mode = #tpu.pipeline_mode<synchronous>, transform_indices = @transform_1, window_bounds = array<i64: 32, 96>}, {pipeline_mode = #tpu.pipeline_mode<synchronous>, transform_indices = @transform_2, window_bounds = array<i64: 4, 8, 32>}, {pipeline_mode = #tpu.pipeline_mode<synchronous>, transform_indices = @transform_3, window_bounds = array<i64: 1, 32>}, {pipeline_mode = #tpu.pipeline_mode<synchronous>, transform_indices = @transform_4, window_bounds = array<i64: 32, 64>}, {pipeline_mode = #tpu.pipeline_mode<synchronous>, transform_indices = @transform_5, window_bounds = array<i64: 1, 64>}, {pipeline_mode = #tpu.pipeline_mode<synchronous>, transform_indices = @transform_6, window_bounds = array<i64: 64, 32>}, {pipeline_mode = #tpu.pipeline_mode<synchronous>, transform_indices = @transform_7, window_bounds = array<i64: 1, 32>}, {pipeline_mode = #tpu.pipeline_mode<synchronous>, transform_indices = @transform_8, window_bounds = array<i64: 1, 32>}, {pipeline_mode = #tpu.pipeline_mode<synchronous>, transform_indices = @transform_9, window_bounds = array<i64: 1, 32>}, {pipeline_mode = #tpu.pipeline_mode<synchronous>, transform_indices = @transform_10, window_bounds = array<i64: 1, 32>}, {pipeline_mode = #tpu.pipeline_mode<synchronous>, transform_indices = @transform_11, window_bounds = array<i64: 1, 32>}, {transform_indices = @transform_12, window_bounds = array<i64: 1, 8, 32>}, {transform_indices = @transform_13, window_bounds = array<i64: 1, 4, 8, 8>}]} {
    %c0 = arith.constant 0 : index
    %c0_0 = arith.constant 0 : index
    %c0_1 = arith.constant 0 : index
    %0 = vector.load %arg1[%c0, %c0_0, %c0_1] : memref<1x8x32xf32, #tpu.memory_space<vmem>>, vector<1x8x32xf32>
    %1 = vector.shape_cast %0 : vector<1x8x32xf32> to vector<8x32xf32>
    %2 = arith.truncf %1 : vector<8x32xf32> to vector<8x32xbf16>
    %c0_2 = arith.constant 0 : index
    %c0_3 = arith.constant 0 : index
    %3 = vector.load %arg2[%c0_2, %c0_3] : memref<32x96xbf16, #tpu.memory_space<vmem>>, vector<32x96xbf16>
    %cst = arith.constant dense<0.000000e+00> : vector<8x96xf32>
    %4 = tpu.matmul %2, %3, %cst {dimension_numbers = #tpu.dot_dimension_numbers<[1], [0], [0], [1], [0, 0, 1, 1], [], []>} : vector<8x32xbf16>, vector<32x96xbf16>, vector<8x96xf32> -> vector<8x96xf32>
    %5 = vector.extract_strided_slice %4 {offsets = [0, 0], sizes = [8, 32], strides = [1, 1]} : vector<8x96xf32> to vector<8x32xf32>
    %cst_4 = arith.constant 0.353553385 : f32
    %6 = vector.broadcast %cst_4 : f32 to vector<8x32xf32>
    %7 = arith.mulf %5, %6 : vector<8x32xf32>
    %8 = arith.truncf %7 : vector<8x32xf32> to vector<8x32xbf16>
    %9 = vector.extract_strided_slice %4 {offsets = [0, 32], sizes = [8, 32], strides = [1, 1]} : vector<8x96xf32> to vector<8x32xf32>
    %10 = arith.truncf %9 : vector<8x32xf32> to vector<8x32xbf16>
    %11 = vector.extract_strided_slice %4 {offsets = [0, 64], sizes = [8, 32], strides = [1, 1]} : vector<8x96xf32> to vector<8x32xf32>
    %12 = arith.truncf %11 : vector<8x32xf32> to vector<8x32xbf16>
    %13 = vector.extract_strided_slice %8 {offsets = [0, 0], sizes = [8, 8], strides = [1, 1]} : vector<8x32xbf16> to vector<8x8xbf16>
    %14 = vector.extract_strided_slice %8 {offsets = [0, 8], sizes = [8, 8], strides = [1, 1]} : vector<8x32xbf16> to vector<8x8xbf16>
    %15 = vector.extract_strided_slice %8 {offsets = [0, 16], sizes = [8, 8], strides = [1, 1]} : vector<8x32xbf16> to vector<8x8xbf16>
    %16 = vector.extract_strided_slice %8 {offsets = [0, 24], sizes = [8, 8], strides = [1, 1]} : vector<8x32xbf16> to vector<8x8xbf16>
    %17 = vector.shape_cast %13 : vector<8x8xbf16> to vector<1x8x8xbf16>
    %18 = vector.shape_cast %14 : vector<8x8xbf16> to vector<1x8x8xbf16>
    %19 = vector.shape_cast %15 : vector<8x8xbf16> to vector<1x8x8xbf16>
    %20 = vector.shape_cast %16 : vector<8x8xbf16> to vector<1x8x8xbf16>
    %21 = tpu.concatenate %17, %18, %19, %20 in 0 : vector<1x8x8xbf16>, vector<1x8x8xbf16>, vector<1x8x8xbf16>, vector<1x8x8xbf16> -> vector<4x8x8xbf16>
    %22 = vector.extract_strided_slice %10 {offsets = [0, 0], sizes = [8, 8], strides = [1, 1]} : vector<8x32xbf16> to vector<8x8xbf16>
    %23 = vector.extract_strided_slice %10 {offsets = [0, 8], sizes = [8, 8], strides = [1, 1]} : vector<8x32xbf16> to vector<8x8xbf16>
    %24 = vector.extract_strided_slice %10 {offsets = [0, 16], sizes = [8, 8], strides = [1, 1]} : vector<8x32xbf16> to vector<8x8xbf16>
    %25 = vector.extract_strided_slice %10 {offsets = [0, 24], sizes = [8, 8], strides = [1, 1]} : vector<8x32xbf16> to vector<8x8xbf16>
    %26 = vector.shape_cast %22 : vector<8x8xbf16> to vector<1x8x8xbf16>
    %27 = vector.shape_cast %23 : vector<8x8xbf16> to vector<1x8x8xbf16>
    %28 = vector.shape_cast %24 : vector<8x8xbf16> to vector<1x8x8xbf16>
    %29 = vector.shape_cast %25 : vector<8x8xbf16> to vector<1x8x8xbf16>
    %30 = tpu.concatenate %26, %27, %28, %29 in 0 : vector<1x8x8xbf16>, vector<1x8x8xbf16>, vector<1x8x8xbf16>, vector<1x8x8xbf16> -> vector<4x8x8xbf16>
    %31 = vector.extract_strided_slice %12 {offsets = [0, 0], sizes = [8, 8], strides = [1, 1]} : vector<8x32xbf16> to vector<8x8xbf16>
    %32 = vector.extract_strided_slice %12 {offsets = [0, 8], sizes = [8, 8], strides = [1, 1]} : vector<8x32xbf16> to vector<8x8xbf16>
    %33 = vector.extract_strided_slice %12 {offsets = [0, 16], sizes = [8, 8], strides = [1, 1]} : vector<8x32xbf16> to vector<8x8xbf16>
    %34 = vector.extract_strided_slice %12 {offsets = [0, 24], sizes = [8, 8], strides = [1, 1]} : vector<8x32xbf16> to vector<8x8xbf16>
    %35 = vector.shape_cast %31 : vector<8x8xbf16> to vector<1x8x8xbf16>
    %36 = vector.shape_cast %32 : vector<8x8xbf16> to vector<1x8x8xbf16>
    %37 = vector.shape_cast %33 : vector<8x8xbf16> to vector<1x8x8xbf16>
    %38 = vector.shape_cast %34 : vector<8x8xbf16> to vector<1x8x8xbf16>
    %39 = tpu.concatenate %35, %36, %37, %38 in 0 : vector<1x8x8xbf16>, vector<1x8x8xbf16>, vector<1x8x8xbf16>, vector<1x8x8xbf16> -> vector<4x8x8xbf16>
    "tpu.trace_start"() <{level = 10 : i32, message = "hqd,hkd->hqk"}> : () -> ()
    %cst_5 = arith.constant dense<0.000000e+00> : vector<4x8x8xf32>
    %40 = tpu.matmul %21, %30, %cst_5 {dimension_numbers = #tpu.dot_dimension_numbers<[2], [2], [1], [1], [0, 0, 0, 1, 1, 1], [0], [0]>} : vector<4x8x8xbf16>, vector<4x8x8xbf16>, vector<4x8x8xf32> -> vector<4x8x8xf32>
    "tpu.trace_stop"() : () -> ()
    %cst_6 = arith.constant dense<0xFF800000> : vector<4x8xf32>
    %41 = vector.multi_reduction <maximumf>, %40, %cst_6 [2] : vector<4x8x8xf32> to vector<4x8xf32>
    %42 = vector.shape_cast %41 : vector<4x8xf32> to vector<4x8x1xf32>
    %43 = vector.broadcast %42 : vector<4x8x1xf32> to vector<4x8x8xf32>
    %44 = arith.subf %40, %43 : vector<4x8x8xf32>
    %45 = math.exp %44 : vector<4x8x8xf32>
    %cst_7 = arith.constant dense<0.000000e+00> : vector<4x8xf32>
    %46 = vector.multi_reduction <add>, %45, %cst_7 [2] : vector<4x8x8xf32> to vector<4x8xf32>
    %47 = vector.shape_cast %46 : vector<4x8xf32> to vector<4x8x1xf32>
    %48 = tpu.reciprocal %47 {approx = true} : vector<4x8x1xf32> -> vector<4x8x1xf32>
    %49 = vector.broadcast %48 : vector<4x8x1xf32> to vector<4x8x8xf32>
    %50 = arith.mulf %45, %49 : vector<4x8x8xf32>
    %c0_8 = arith.constant 0 : index
    %c0_9 = arith.constant 0 : index
    %c0_10 = arith.constant 0 : index
    %c0_11 = arith.constant 0 : index
    %51 = vector.load %arg14[%c0_8, %c0_9, %c0_10, %c0_11] : memref<1x4x8x8xf32, #tpu.memory_space<vmem>>, vector<1x4x8x8xf32>
    %52 = vector.shape_cast %51 : vector<1x4x8x8xf32> to vector<4x8x8xf32>
    %53 = vector.shape_cast %50 : vector<4x8x8xf32> to vector<1x4x8x8xf32>
    tpu.vector_store %arg14[%c0_8, %c0_9, %c0_10, %c0_11], %53 {strides = array<i32>} : memref<1x4x8x8xf32, #tpu.memory_space<vmem>>, vector<1x4x8x8xf32>,
    %54 = arith.truncf %50 : vector<4x8x8xf32> to vector<4x8x8xbf16>
    "tpu.trace_start"() <{level = 10 : i32, message = "hqk,hkd->hqd"}> : () -> ()
    %cst_12 = arith.constant dense<0.000000e+00> : vector<4x8x8xf32>
    %55 = tpu.matmul %54, %39, %cst_12 {dimension_numbers = #tpu.dot_dimension_numbers<[2], [1], [1], [2], [0, 0, 0, 1, 1, 2], [0], [0]>} : vector<4x8x8xbf16>, vector<4x8x8xbf16>, vector<4x8x8xf32> -> vector<4x8x8xf32>
    "tpu.trace_stop"() : () -> ()
    %56 = arith.truncf %55 : vector<4x8x8xf32> to vector<4x8x8xbf16>
    %c0_13 = arith.constant 0 : index
    %c0_14 = arith.constant 0 : index
    %c0_15 = arith.constant 0 : index
    %57 = vector.load %arg3[%c0_13, %c0_14, %c0_15] : memref<4x8x32xbf16, #tpu.memory_space<vmem>>, vector<4x8x32xbf16>
    "tpu.trace_start"() <{level = 10 : i32, message = "hqd,hdn->hqn"}> : () -> ()
    %cst_16 = arith.constant dense<0.000000e+00> : vector<4x8x32xf32>
    %58 = tpu.matmul %56, %57, %cst_16 {dimension_numbers = #tpu.dot_dimension_numbers<[2], [1], [1], [2], [0, 0, 0, 1, 1, 2], [0], [0]>} : vector<4x8x8xbf16>, vector<4x8x32xbf16>, vector<4x8x32xf32> -> vector<4x8x32xf32>
    "tpu.trace_stop"() : () -> ()
    %cst_17 = arith.constant dense<0.000000e+00> : vector<8x32xf32>
    %59 = vector.multi_reduction <add>, %58, %cst_17 [0] : vector<4x8x32xf32> to vector<8x32xf32>
    %c0_18 = arith.constant 0 : index
    %c0_19 = arith.constant 0 : index
    %60 = vector.load %arg4[%c0_18, %c0_19] : memref<1x32xf32, #tpu.memory_space<vmem>>, vector<1x32xf32>
    %61 = vector.broadcast %60 : vector<1x32xf32> to vector<8x32xf32>
    %62 = arith.addf %59, %61 : vector<8x32xf32>
    %63 = arith.addf %1, %62 : vector<8x32xf32>
    %c0_20 = arith.constant 0 : index
    %c0_21 = arith.constant 0 : index
    %64 = vector.load %arg9[%c0_20, %c0_21] : memref<1x32xf32, #tpu.memory_space<vmem>>, vector<1x32xf32>
    %c0_22 = arith.constant 0 : index
    %c0_23 = arith.constant 0 : index
    %65 = vector.load %arg10[%c0_22, %c0_23] : memref<1x32xf32, #tpu.memory_space<vmem>>, vector<1x32xf32>
    %cst_24 = arith.constant dense<0.000000e+00> : vector<8xf32>
    %66 = vector.multi_reduction <add>, %63, %cst_24 [1] : vector<8x32xf32> to vector<8xf32>
    %67 = vector.shape_cast %66 : vector<8xf32> to vector<8x1xf32>
    %cst_25 = arith.constant 3.200000e+01 : f32
    %68 = vector.broadcast %cst_25 : f32 to vector<8x1xf32>
    %69 = arith.divf %67, %68 : vector<8x1xf32>
    %70 = vector.broadcast %69 : vector<8x1xf32> to vector<8x32xf32>
    %71 = arith.subf %63, %70 : vector<8x32xf32>
    %72 = arith.mulf %71, %71 : vector<8x32xf32>
    %cst_26 = arith.constant dense<0.000000e+00> : vector<8xf32>
    %73 = vector.multi_reduction <add>, %72, %cst_26 [1] : vector<8x32xf32> to vector<8xf32>
    %74 = vector.shape_cast %73 : vector<8xf32> to vector<8x1xf32>
    %cst_27 = arith.constant 3.200000e+01 : f32
    %75 = vector.broadcast %cst_27 : f32 to vector<8x1xf32>
    %76 = arith.divf %74, %75 : vector<8x1xf32>
    %77 = vector.broadcast %69 : vector<8x1xf32> to vector<8x32xf32>
    %78 = arith.subf %63, %77 : vector<8x32xf32>
    %cst_28 = arith.constant 9.99999974E-6 : f32
    %79 = vector.broadcast %cst_28 : f32 to vector<8x1xf32>
    %80 = arith.addf %76, %79 : vector<8x1xf32>
    %81 = math.rsqrt %80 : vector<8x1xf32>
    %82 = vector.broadcast %81 : vector<8x1xf32> to vector<8x32xf32>
    %83 = arith.mulf %78, %82 : vector<8x32xf32>
    %84 = vector.broadcast %64 : vector<1x32xf32> to vector<8x32xf32>
    %85 = arith.mulf %83, %84 : vector<8x32xf32>
    %86 = vector.broadcast %65 : vector<1x32xf32> to vector<8x32xf32>
    %87 = arith.addf %85, %86 : vector<8x32xf32>
    %88 = arith.truncf %87 : vector<8x32xf32> to vector<8x32xbf16>
    %c0_29 = arith.constant 0 : index
    %c0_30 = arith.constant 0 : index
    %89 = vector.load %arg5[%c0_29, %c0_30] : memref<32x64xbf16, #tpu.memory_space<vmem>>, vector<32x64xbf16>
    %cst_31 = arith.constant dense<0.000000e+00> : vector<8x64xf32>
    %90 = tpu.matmul %88, %89, %cst_31 {dimension_numbers = #tpu.dot_dimension_numbers<[1], [0], [0], [1], [0, 0, 1, 1], [], []>} : vector<8x32xbf16>, vector<32x64xbf16>, vector<8x64xf32> -> vector<8x64xf32>
    %c0_32 = arith.constant 0 : index
    %c0_33 = arith.constant 0 : index
    %91 = vector.load %arg6[%c0_32, %c0_33] : memref<1x64xf32, #tpu.memory_space<vmem>>, vector<1x64xf32>
    %92 = vector.broadcast %91 : vector<1x64xf32> to vector<8x64xf32>
    %93 = arith.addf %90, %92 : vector<8x64xf32>
    %cst_34 = arith.constant 5.000000e-01 : f32
    %94 = vector.broadcast %cst_34 : f32 to vector<8x64xf32>
    %95 = arith.mulf %94, %93 : vector<8x64xf32>
    %cst_35 = arith.constant 0.707106769 : f32
    %96 = vector.broadcast %cst_35 : f32 to vector<8x64xf32>
    %97 = arith.mulf %93, %96 : vector<8x64xf32>
    %98 = math.erf %97 : vector<8x64xf32>
    %cst_36 = arith.constant 1.000000e+00 : f32
    %99 = vector.broadcast %cst_36 : f32 to vector<8x64xf32>
    %100 = arith.addf %99, %98 : vector<8x64xf32>
    %101 = arith.mulf %95, %100 : vector<8x64xf32>
    %102 = arith.truncf %101 : vector<8x64xf32> to vector<8x64xbf16>
    %c0_37 = arith.constant 0 : index
    %c0_38 = arith.constant 0 : index
    %103 = vector.load %arg7[%c0_37, %c0_38] : memref<64x32xbf16, #tpu.memory_space<vmem>>, vector<64x32xbf16>
    %cst_39 = arith.constant dense<0.000000e+00> : vector<8x32xf32>
    %104 = tpu.matmul %102, %103, %cst_39 {dimension_numbers = #tpu.dot_dimension_numbers<[1], [0], [0], [1], [0, 0, 1, 1], [], []>} : vector<8x64xbf16>, vector<64x32xbf16>, vector<8x32xf32> -> vector<8x32xf32>
    %c0_40 = arith.constant 0 : index
    %c0_41 = arith.constant 0 : index
    %105 = vector.load %arg8[%c0_40, %c0_41] : memref<1x32xf32, #tpu.memory_space<vmem>>, vector<1x32xf32>
    %106 = vector.broadcast %105 : vector<1x32xf32> to vector<8x32xf32>
    %107 = arith.addf %104, %106 : vector<8x32xf32>
    %108 = arith.addf %87, %107 : vector<8x32xf32>
    %c0_42 = arith.constant 0 : index
    %c0_43 = arith.constant 0 : index
    %109 = vector.load %arg11[%c0_42, %c0_43] : memref<1x32xf32, #tpu.memory_space<vmem>>, vector<1x32xf32>
    %c0_44 = arith.constant 0 : index
    %c0_45 = arith.constant 0 : index
    %110 = vector.load %arg12[%c0_44, %c0_45] : memref<1x32xf32, #tpu.memory_space<vmem>>, vector<1x32xf32>
    %cst_46 = arith.constant dense<0.000000e+00> : vector<8xf32>
    %111 = vector.multi_reduction <add>, %108, %cst_46 [1] : vector<8x32xf32> to vector<8xf32>
    %112 = vector.shape_cast %111 : vector<8xf32> to vector<8x1xf32>
    %cst_47 = arith.constant 3.200000e+01 : f32
    %113 = vector.broadcast %cst_47 : f32 to vector<8x1xf32>
    %114 = arith.divf %112, %113 : vector<8x1xf32>
    %115 = vector.broadcast %114 : vector<8x1xf32> to vector<8x32xf32>
    %116 = arith.subf %108, %115 : vector<8x32xf32>
    %117 = arith.mulf %116, %116 : vector<8x32xf32>
    %cst_48 = arith.constant dense<0.000000e+00> : vector<8xf32>
    %118 = vector.multi_reduction <add>, %117, %cst_48 [1] : vector<8x32xf32> to vector<8xf32>
    %119 = vector.shape_cast %118 : vector<8xf32> to vector<8x1xf32>
    %cst_49 = arith.constant 3.200000e+01 : f32
    %120 = vector.broadcast %cst_49 : f32 to vector<8x1xf32>
    %121 = arith.divf %119, %120 : vector<8x1xf32>
    %122 = vector.broadcast %114 : vector<8x1xf32> to vector<8x32xf32>
    %123 = arith.subf %108, %122 : vector<8x32xf32>
    %cst_50 = arith.constant 9.99999974E-6 : f32
    %124 = vector.broadcast %cst_50 : f32 to vector<8x1xf32>
    %125 = arith.addf %121, %124 : vector<8x1xf32>
    %126 = math.rsqrt %125 : vector<8x1xf32>
    %127 = vector.broadcast %126 : vector<8x1xf32> to vector<8x32xf32>
    %128 = arith.mulf %123, %127 : vector<8x32xf32>
    %129 = vector.broadcast %109 : vector<1x32xf32> to vector<8x32xf32>
    %130 = arith.mulf %128, %129 : vector<8x32xf32>
    %131 = vector.broadcast %110 : vector<1x32xf32> to vector<8x32xf32>
    %132 = arith.addf %130, %131 : vector<8x32xf32>
    %c0_51 = arith.constant 0 : index
    %c0_52 = arith.constant 0 : index
    %c0_53 = arith.constant 0 : index
    %133 = vector.load %arg13[%c0_51, %c0_52, %c0_53] : memref<1x8x32xf32, #tpu.memory_space<vmem>>, vector<1x8x32xf32>
    %134 = vector.shape_cast %133 : vector<1x8x32xf32> to vector<8x32xf32>
    %135 = vector.shape_cast %132 : vector<8x32xf32> to vector<1x8x32xf32>
    tpu.vector_store %arg13[%c0_51, %c0_52, %c0_53], %135 {strides = array<i32>} : memref<1x8x32xf32, #tpu.memory_space<vmem>>, vector<1x8x32xf32>,
    return
  }
  func.func @transform_0(%arg0: i32) -> (i32, i32, i32) {
    %c0_i32 = arith.constant 0 : i32
    %c0_i32_0 = arith.constant 0 : i32
    %c0_i32_1 = arith.constant 0 : i32
    return %arg0, %c0_i32, %c0_i32_0 : i32, i32, i32
  }
  func.func @transform_1(%arg0: i32) -> (i32, i32) {
    %c0_i32 = arith.constant 0 : i32
    %c0_i32_0 = arith.constant 0 : i32
    %c0_i32_1 = arith.constant 0 : i32
    return %c0_i32, %c0_i32_0 : i32, i32
  }
  func.func @transform_2(%arg0: i32) -> (i32, i32, i32) {
    %c0_i32 = arith.constant 0 : i32
    %c0_i32_0 = arith.constant 0 : i32
    %c0_i32_1 = arith.constant 0 : i32
    %c0_i32_2 = arith.constant 0 : i32
    return %c0_i32, %c0_i32_0, %c0_i32_1 : i32, i32, i32
  }
  func.func @transform_3(%arg0: i32) -> (i32, i32) {
    %c0_i32 = arith.constant 0 : i32
    %c0_i32_0 = arith.constant 0 : i32
    %c0_i32_1 = arith.constant 0 : i32
    return %c0_i32, %c0_i32_0 : i32, i32
  }
  func.func @transform_4(%arg0: i32) -> (i32, i32) {
    %c0_i32 = arith.constant 0 : i32
    %c0_i32_0 = arith.constant 0 : i32
    %c0_i32_1 = arith.constant 0 : i32
    return %c0_i32, %c0_i32_0 : i32, i32
  }
  func.func @transform_5(%arg0: i32) -> (i32, i32) {
    %c0_i32 = arith.constant 0 : i32
    %c0_i32_0 = arith.constant 0 : i32
    %c0_i32_1 = arith.constant 0 : i32
    return %c0_i32, %c0_i32_0 : i32, i32
  }
  func.func @transform_6(%arg0: i32) -> (i32, i32) {
    %c0_i32 = arith.constant 0 : i32
    %c0_i32_0 = arith.constant 0 : i32
    %c0_i32_1 = arith.constant 0 : i32
    return %c0_i32, %c0_i32_0 : i32, i32
  }
  func.func @transform_7(%arg0: i32) -> (i32, i32) {
    %c0_i32 = arith.constant 0 : i32
    %c0_i32_0 = arith.constant 0 : i32
    %c0_i32_1 = arith.constant 0 : i32
    return %c0_i32, %c0_i32_0 : i32, i32
  }
  func.func @transform_8(%arg0: i32) -> (i32, i32) {
    %c0_i32 = arith.constant 0 : i32
    %c0_i32_0 = arith.constant 0 : i32
    %c0_i32_1 = arith.constant 0 : i32
    return %c0_i32, %c0_i32_0 : i32, i32
  }
  func.func @transform_9(%arg0: i32) -> (i32, i32) {
    %c0_i32 = arith.constant 0 : i32
    %c0_i32_0 = arith.constant 0 : i32
    %c0_i32_1 = arith.constant 0 : i32
    return %c0_i32, %c0_i32_0 : i32, i32
  }
  func.func @transform_10(%arg0: i32) -> (i32, i32) {
    %c0_i32 = arith.constant 0 : i32
    %c0_i32_0 = arith.constant 0 : i32
    %c0_i32_1 = arith.constant 0 : i32
    return %c0_i32, %c0_i32_0 : i32, i32
  }
  func.func @transform_11(%arg0: i32) -> (i32, i32) {
    %c0_i32 = arith.constant 0 : i32
    %c0_i32_0 = arith.constant 0 : i32
    %c0_i32_1 = arith.constant 0 : i32
    return %c0_i32, %c0_i32_0 : i32, i32
  }
  func.func @transform_12(%arg0: i32) -> (i32, i32, i32) {
    %c0_i32 = arith.constant 0 : i32
    %c0_i32_0 = arith.constant 0 : i32
    %c0_i32_1 = arith.constant 0 : i32
    return %arg0, %c0_i32, %c0_i32_0 : i32, i32, i32
  }
  func.func @transform_13(%arg0: i32) -> (i32, i32, i32, i32) {
    %c0_i32 = arith.constant 0 : i32
    %c0_i32_0 = arith.constant 0 : i32
    %c0_i32_1 = arith.constant 0 : i32
    %c0_i32_2 = arith.constant 0 : i32
    return %arg0, %c0_i32, %c0_i32_0, %c0_i32_1 : i32, i32, i32, i32
  }
}

</mosaic_0001>

<llo_original>
// kernel: tpu_custom_call.1
$region0: #{tpu_custom_call.1}
  #allocation0 [shape = 'u32[]', space=smem, size = 0x4, offset = 0x4, fixed_abs, tag = 'smem constant byte address 0x4 - core index']
  #allocation1 [shape = 'u32[144,128]{1,0:T(1,128)}', space=vmem, size = 0x12000, scoped, tag = 'internal scratch']
  %s0 = inlined_call_operand.vmem [shape: f32[2,8,32], index: 0, kind: input, shape index: {}]
  %s1 = inlined_call_operand.vmem [shape: bf16[32,96], index: 1, kind: input, shape index: {}]
  %s2 = inlined_call_operand.vmem [shape: bf16[4,8,32], index: 2, kind: input, shape index: {}]
  %s3 = inlined_call_operand.vmem [shape: f32[1,32], index: 3, kind: input, shape index: {}]
  %s4 = inlined_call_operand.hbm [shape: bf16[32,64], index: 4, kind: input, shape index: {}]
  %s5 = inlined_call_operand.vmem [shape: f32[1,64], index: 5, kind: input, shape index: {}]
  %s6 = inlined_call_operand.vmem [shape: bf16[64,32], index: 6, kind: input, shape index: {}]
  %s7 = inlined_call_operand.vmem [shape: f32[1,32], index: 7, kind: input, shape index: {}]
  %s8 = inlined_call_operand.vmem [shape: f32[1,32], index: 8, kind: input, shape index: {}]
  %s9 = inlined_call_operand.vmem [shape: f32[1,32], index: 9, kind: input, shape index: {}]
  %s10 = inlined_call_operand.vmem [shape: f32[1,32], index: 10, kind: input, shape index: {}]
  %s11 = inlined_call_operand.vmem [shape: f32[1,32], index: 11, kind: input, shape index: {}]
  %s12 = inlined_call_operand.hbm [shape: f32[2,8,32], index: 12, kind: output, shape index: {0}]
  %s13 = inlined_call_operand.hbm [shape: f32[2,4,8,8], index: 13, kind: output, shape index: {1}]
  %14 = xla_tuple %s12, %s13
  %s15 = sld [smem:[#allocation0]]
  $region93: #{tpu_custom_call.1} parent=0
    _
  %s17 = ssub.s32 1, %s15
  %s18 = scalar_select 0, %s17, %s15
  $region1: #{tpu_custom_call.1} parent=0
    #allocation2 [shape = 'u8[8192]{0}', space=vmem, size = 0x2000, scoped, tag = 'input window, operand 4, single buffered']
    #allocation3 [shape = 's32[2]{0}', space=sflag, size = 0x8, scoped, tag = 'scoped memory for tpu_custom_call.1']
    #allocation4 [shape = 's32[2]{0}', space=sflag, size = 0x8, scoped, tag = 'scoped memory for tpu_custom_call.1']
    #allocation5 [shape = 'u8[8192]{0}', space=vmem, size = 0x2000, scoped, tag = 'output window, operand 0']
    #allocation6 [shape = 'u8[32768]{0}', space=vmem, size = 0x8000, scoped, tag = 'output window, operand 1']
    #allocation7 [shape = 's32[2]{0}', space=sflag, size = 0x8, scoped, tag = 'scoped memory for tpu_custom_call.1']
    %19 = vsyncpa [#allocation3], 0
    %20 = vsyncpa [#allocation4], 0
    %s21 = scalar_lea.sflag [#allocation4], 1
    %22 = vsyncpa %s21, 0
    %23 = vsyncpa [#allocation7], 0
    %s24 = scalar_lea.sflag [#allocation7], 1
    %25 = vsyncpa %s24, 0
    loop: start=0, step=1, limit=4
    $region2: #{tpu_custom_call.1} parent=1 // loop_pre_header
      _
    $region3: #{tpu_custom_call.1} parent=1 // loop_header
      %s27 = sphi 0, %s31
      %p28 = scmp.ge.s32.totalorder %s27, 4
      %s37 = sphi 0, %s39
      %s40 = sphi 0, %s37
      %s41 = sphi 0, %s40
      %s57 = sphi 0, %s41
      %s61 = sphi 0, %s61
      %s63 = sphi 0, %s61
      %s64 = sphi 0, %s63
      %s78 = sphi 0, %s64
      %s82 = sphi 0, %s82
      %s84 = sphi 0, %s82
      %s85 = sphi 0, %s84
      %s99 = sphi 0, %s85
      %s103 = sphi 0, %s103
      %s105 = sphi 0, %s103
      %s106 = sphi 0, %s105
      %s120 = sphi 0, %s106
      %s124 = sphi 0, %s124
      %s126 = sphi 0, %s124
      %s127 = sphi 0, %s126
      %s141 = sphi 0, %s127
      %s145 = sphi 0, %s145
      %s147 = sphi 0, %s145
      %s148 = sphi 0, %s147
      %s162 = sphi 0, %s148
      %s166 = sphi 0, %s166
      %s168 = sphi 0, %s166
      %s169 = sphi 0, %s168
      %s183 = sphi 0, %s169
      %s187 = sphi 0, %s187
      %s189 = sphi 0, %s187
      %s190 = sphi 0, %s189
      %s204 = sphi 0, %s190
      %s208 = sphi 0, %s208
      %s210 = sphi 0, %s208
      %s211 = sphi 0, %s210
      %s225 = sphi 0, %s211
      %s229 = sphi 0, %s229
      %s231 = sphi 0, %s229
      %s232 = sphi 0, %s231
      %s246 = sphi 0, %s232
      %s250 = sphi 0, %s250
      %s252 = sphi 0, %s250
      %s253 = sphi 0, %s252
      %s267 = sphi 0, %s253
      %s271 = sphi 0, %s271
      %s273 = sphi 0, %s271
      %s274 = sphi 0, %s273
      %s288 = sphi 0, %s274
      %s294 = sphi 0, %s296
      %s297 = sphi 0, %s294
      %s298 = sphi 0, %s297
      %s314 = sphi 0, %s298
      %s320 = sphi 0, %s322
      %s323 = sphi 0, %s320
      %s324 = sphi 0, %s323
      %s340 = sphi 0, %s324
    $region4: #{tpu_custom_call.1} parent=1 // loop_header_branch
      %30 = sbr.rel (%p28) target = $region8
    $region5: #{tpu_custom_call.1} parent=1 // loop_body
      %s32 = ssub.s32 %s27, 1
      %s33 = ssub.s32 %s27, 2
      %s34 = sadd.s32 %s27, 1
      %s35 = ssub.s32 %s27, %s34
      %p36 = scmp.eq.s32.totalorder %s35, 0
      %s38 = sadd.s32 %s37, 1
      %s39 = scalar_select %p36, %s37, %s38
      %p42 = pneg %p36
      %p43 = scmp.eq.s32.totalorder %s27, 1
      %p44 = por %p42, %p43
      %p45 = scmp.ne.s32.totalorder %s37, %s40
      %p46 = scmp.eq.s32.totalorder %s27, 0
      %p47 = por %p45, %p46
      %p48 = scmp.ne.s32.totalorder %s37, %s40
      %p49 = scmp.eq.s32.totalorder %s32, 1
      %p50 = por %p48, %p49
      %p51 = scmp.ne.s32.totalorder %s40, %s41
      %p52 = scmp.eq.s32.totalorder %s32, 0
      %p53 = por %p51, %p52
      %p54 = scmp.ne.s32.totalorder %s40, %s41
      %p55 = scmp.eq.s32.totalorder %s33, 1
      %p56 = por %p54, %p55
      %p58 = scmp.ne.s32.totalorder %s41, %s57
      %p59 = scmp.eq.s32.totalorder %s33, 0
      %p60 = por %p58, %p59
      %s62 = sadd.s32 %s61, 1
      %p65 = scmp.eq.s32.totalorder %s27, 1
      %p66 = scmp.ne.s32.totalorder %s61, %s63
      %p67 = scmp.eq.s32.totalorder %s27, 0
      %p68 = por %p66, %p67
      %p69 = scmp.ne.s32.totalorder %s61, %s63
      %p70 = scmp.eq.s32.totalorder %s32, 1
      %p71 = por %p69, %p70
      %p72 = scmp.ne.s32.totalorder %s63, %s64
      %p73 = scmp.eq.s32.totalorder %s32, 0
      %p74 = por %p72, %p73
      %p75 = scmp.ne.s32.totalorder %s63, %s64
      %p76 = scmp.eq.s32.totalorder %s33, 1
      %p77 = por %p75, %p76
      %p79 = scmp.ne.s32.totalorder %s64, %s78
      %p80 = scmp.eq.s32.totalorder %s33, 0
      %p81 = por %p79, %p80
      %s83 = sadd.s32 %s82, 1
      %p86 = scmp.eq.s32.totalorder %s27, 1
      %p87 = scmp.ne.s32.totalorder %s82, %s84
      %p88 = scmp.eq.s32.totalorder %s27, 0
      %p89 = por %p87, %p88
      %p90 = scmp.ne.s32.totalorder %s82, %s84
      %p91 = scmp.eq.s32.totalorder %s32, 1
      %p92 = por %p90, %p91
      %p93 = scmp.ne.s32.totalorder %s84, %s85
      %p94 = scmp.eq.s32.totalorder %s32, 0
      %p95 = por %p93, %p94
      %p96 = scmp.ne.s32.totalorder %s84, %s85
      %p97 = scmp.eq.s32.totalorder %s33, 1
      %p98 = por %p96, %p97
      %p100 = scmp.ne.s32.totalorder %s85, %s99
      %p101 = scmp.eq.s32.totalorder %s33, 0
      %p102 = por %p100, %p101
      %s104 = sadd.s32 %s103, 1
      %p107 = scmp.eq.s32.totalorder %s27, 1
      %p108 = scmp.ne.s32.totalorder %s103, %s105
      %p109 = scmp.eq.s32.totalorder %s27, 0
      %p110 = por %p108, %p109
      %p111 = scmp.ne.s32.totalorder %s103, %s105
      %p112 = scmp.eq.s32.totalorder %s32, 1
      %p113 = por %p111, %p112
      %p114 = scmp.ne.s32.totalorder %s105, %s106
      %p115 = scmp.eq.s32.totalorder %s32, 0
      %p116 = por %p114, %p115
      %p117 = scmp.ne.s32.totalorder %s105, %s106
      %p118 = scmp.eq.s32.totalorder %s33, 1
      %p119 = por %p117, %p118
      %p121 = scmp.ne.s32.totalorder %s106, %s120
      %p122 = scmp.eq.s32.totalorder %s33, 0
      %p123 = por %p121, %p122
      %s125 = sadd.s32 %s124, 1
      %p128 = scmp.eq.s32.totalorder %s27, 1
      %p129 = scmp.ne.s32.totalorder %s124, %s126
      %p130 = scmp.eq.s32.totalorder %s27, 0
      %p131 = por %p129, %p130
      %p132 = scmp.ne.s32.totalorder %s124, %s126
      %p133 = scmp.eq.s32.totalorder %s32, 1
      %p134 = por %p132, %p133
      %p135 = scmp.ne.s32.totalorder %s126, %s127
      %p136 = scmp.eq.s32.totalorder %s32, 0
      %p137 = por %p135, %p136
      %p138 = scmp.ne.s32.totalorder %s126, %s127
      %p139 = scmp.eq.s32.totalorder %s33, 1
      %p140 = por %p138, %p139
      %p142 = scmp.ne.s32.totalorder %s127, %s141
      %p143 = scmp.eq.s32.totalorder %s33, 0
      %p144 = por %p142, %p143
      %s146 = sadd.s32 %s145, 1
      %p149 = scmp.eq.s32.totalorder %s27, 1
      %p150 = scmp.ne.s32.totalorder %s145, %s147
      %p151 = scmp.eq.s32.totalorder %s27, 0
      %p152 = por %p150, %p151
      %p153 = scmp.ne.s32.totalorder %s145, %s147
      %p154 = scmp.eq.s32.totalorder %s32, 1
      %p155 = por %p153, %p154
      %p156 = scmp.ne.s32.totalorder %s147, %s148
      %p157 = scmp.eq.s32.totalorder %s32, 0
      %p158 = por %p156, %p157
      %p159 = scmp.ne.s32.totalorder %s147, %s148
      %p160 = scmp.eq.s32.totalorder %s33, 1
      %p161 = por %p159, %p160
      %p163 = scmp.ne.s32.totalorder %s148, %s162
      %p164 = scmp.eq.s32.totalorder %s33, 0
      %p165 = por %p163, %p164
      %s167 = sadd.s32 %s166, 1
      %p170 = scmp.eq.s32.totalorder %s27, 1
      %p171 = scmp.ne.s32.totalorder %s166, %s168
      %p172 = scmp.eq.s32.totalorder %s27, 0
      %p173 = por %p171, %p172
      %p174 = scmp.ne.s32.totalorder %s166, %s168
      %p175 = scmp.eq.s32.totalorder %s32, 1
      %p176 = por %p174, %p175
      %p177 = scmp.ne.s32.totalorder %s168, %s169
      %p178 = scmp.eq.s32.totalorder %s32, 0
      %p179 = por %p177, %p178
      %p180 = scmp.ne.s32.totalorder %s168, %s169
      %p181 = scmp.eq.s32.totalorder %s33, 1
      %p182 = por %p180, %p181
      %p184 = scmp.ne.s32.totalorder %s169, %s183
      %p185 = scmp.eq.s32.totalorder %s33, 0
      %p186 = por %p184, %p185
      %s188 = sadd.s32 %s187, 1
      %p191 = scmp.eq.s32.totalorder %s27, 1
      %p192 = scmp.ne.s32.totalorder %s187, %s189
      %p193 = scmp.eq.s32.totalorder %s27, 0
      %p194 = por %p192, %p193
      %p195 = scmp.ne.s32.totalorder %s187, %s189
      %p196 = scmp.eq.s32.totalorder %s32, 1
      %p197 = por %p195, %p196
      %p198 = scmp.ne.s32.totalorder %s189, %s190
      %p199 = scmp.eq.s32.totalorder %s32, 0
      %p200 = por %p198, %p199
      %p201 = scmp.ne.s32.totalorder %s189, %s190
      %p202 = scmp.eq.s32.totalorder %s33, 1
      %p203 = por %p201, %p202
      %p205 = scmp.ne.s32.totalorder %s190, %s204
      %p206 = scmp.eq.s32.totalorder %s33, 0
      %p207 = por %p205, %p206
      %s209 = sadd.s32 %s208, 1
      %p212 = scmp.eq.s32.totalorder %s27, 1
      %p213 = scmp.ne.s32.totalorder %s208, %s210
      %p214 = scmp.eq.s32.totalorder %s27, 0
      %p215 = por %p213, %p214
      %p216 = scmp.ne.s32.totalorder %s208, %s210
      %p217 = scmp.eq.s32.totalorder %s32, 1
      %p218 = por %p216, %p217
      %p219 = scmp.ne.s32.totalorder %s210, %s211
      %p220 = scmp.eq.s32.totalorder %s32, 0
      %p221 = por %p219, %p220
      %p222 = scmp.ne.s32.totalorder %s210, %s211
      %p223 = scmp.eq.s32.totalorder %s33, 1
      %p224 = por %p222, %p223
      %p226 = scmp.ne.s32.totalorder %s211, %s225
      %p227 = scmp.eq.s32.totalorder %s33, 0
      %p228 = por %p226, %p227
      %s230 = sadd.s32 %s229, 1
      %p233 = scmp.eq.s32.totalorder %s27, 1
      %p234 = scmp.ne.s32.totalorder %s229, %s231
      %p235 = scmp.eq.s32.totalorder %s27, 0
      %p236 = por %p234, %p235
      %p237 = scmp.ne.s32.totalorder %s229, %s231
      %p238 = scmp.eq.s32.totalorder %s32, 1
      %p239 = por %p237, %p238
      %p240 = scmp.ne.s32.totalorder %s231, %s232
      %p241 = scmp.eq.s32.totalorder %s32, 0
      %p242 = por %p240, %p241
      %p243 = scmp.ne.s32.totalorder %s231, %s232
      %p244 = scmp.eq.s32.totalorder %s33, 1
      %p245 = por %p243, %p244
      %p247 = scmp.ne.s32.totalorder %s232, %s246
      %p248 = scmp.eq.s32.totalorder %s33, 0
      %p249 = por %p247, %p248
      %s251 = sadd.s32 %s250, 1
      %p254 = scmp.eq.s32.totalorder %s27, 1
      %p255 = scmp.ne.s32.totalorder %s250, %s252
      %p256 = scmp.eq.s32.totalorder %s27, 0
      %p257 = por %p255, %p256
      %p258 = scmp.ne.s32.totalorder %s250, %s252
      %p259 = scmp.eq.s32.totalorder %s32, 1
      %p260 = por %p258, %p259
      %p261 = scmp.ne.s32.totalorder %s252, %s253
      %p262 = scmp.eq.s32.totalorder %s32, 0
      %p263 = por %p261, %p262
      %p264 = scmp.ne.s32.totalorder %s252, %s253
      %p265 = scmp.eq.s32.totalorder %s33, 1
      %p266 = por %p264, %p265
      %p268 = scmp.ne.s32.totalorder %s253, %s267
      %p269 = scmp.eq.s32.totalorder %s33, 0
      %p270 = por %p268, %p269
      %s272 = sadd.s32 %s271, 1
      %p275 = scmp.eq.s32.totalorder %s27, 1
      %p276 = scmp.ne.s32.totalorder %s271, %s273
      %p277 = scmp.eq.s32.totalorder %s27, 0
      %p278 = por %p276, %p277
      %p279 = scmp.ne.s32.totalorder %s271, %s273
      %p280 = scmp.eq.s32.totalorder %s32, 1
      %p281 = por %p279, %p280
      %p282 = scmp.ne.s32.totalorder %s273, %s274
      %p283 = scmp.eq.s32.totalorder %s32, 0
      %p284 = por %p282, %p283
      %p285 = scmp.ne.s32.totalorder %s273, %s274
      %p286 = scmp.eq.s32.totalorder %s33, 1
      %p287 = por %p285, %p286
      %p289 = scmp.ne.s32.totalorder %s274, %s288
      %p290 = scmp.eq.s32.totalorder %s33, 0
      %p291 = por %p289, %p290
      %s292 = ssub.s32 %s27, %s34
      %p293 = scmp.eq.s32.totalorder %s292, 0
      %s295 = sadd.s32 %s294, 1
      %s296 = scalar_select %p293, %s294, %s295
      %p299 = pneg %p293
      %p300 = scmp.eq.s32.totalorder %s27, 1
      %p301 = por %p299, %p300
      %p302 = scmp.ne.s32.totalorder %s294, %s297
      %p303 = scmp.eq.s32.totalorder %s27, 0
      %p304 = por %p302, %p303
      %p305 = scmp.ne.s32.totalorder %s294, %s297
      %p306 = scmp.eq.s32.totalorder %s32, 1
      %p307 = por %p305, %p306
      %p308 = scmp.ne.s32.totalorder %s297, %s298
      %p309 = scmp.eq.s32.totalorder %s32, 0
      %p310 = por %p308, %p309
      %p311 = scmp.ne.s32.totalorder %s297, %s298
      %p312 = scmp.eq.s32.totalorder %s33, 1
      %p313 = por %p311, %p312
      %p315 = scmp.ne.s32.totalorder %s298, %s314
      %p316 = scmp.eq.s32.totalorder %s33, 0
      %p317 = por %p315, %p316
      %s318 = ssub.s32 %s27, %s34
      %p319 = scmp.eq.s32.totalorder %s318, 0
      %s321 = sadd.s32 %s320, 1
      %s322 = scalar_select %p319, %s320, %s321
      %p325 = pneg %p319
      %p326 = scmp.eq.s32.totalorder %s27, 1
      %p327 = por %p325, %p326
      %p328 = scmp.ne.s32.totalorder %s320, %s323
      %p329 = scmp.eq.s32.totalorder %s27, 0
      %p330 = por %p328, %p329
      %p331 = scmp.ne.s32.totalorder %s320, %s323
      %p332 = scmp.eq.s32.totalorder %s32, 1
      %p333 = por %p331, %p332
      %p334 = scmp.ne.s32.totalorder %s323, %s324
      %p335 = scmp.eq.s32.totalorder %s32, 0
      %p336 = por %p334, %p335
      %p337 = scmp.ne.s32.totalorder %s323, %s324
      %p338 = scmp.eq.s32.totalorder %s33, 1
      %p339 = por %p337, %p338
      %p341 = scmp.ne.s32.totalorder %s324, %s340
      %p342 = scmp.eq.s32.totalorder %s33, 0
      %p343 = por %p341, %p342
      %p344 = scmp.le.s32.totalorder 1, %s27
      %p345 = scmp.lt.s32.totalorder %s27, 3
      %p346 = pnand %p344, %p345
      %p347 = pneg %p346
      // Predicated region
      $region9: #{tpu_custom_call.1} parent=5 // pred_check
        _
      $region10: #{tpu_custom_call.1} parent=5 // pred_check_branch
        %349 = sbr.rel (%p346) target = $region12
      $region11: #{tpu_custom_call.1} parent=5 // pred_region
        %s350 = ssub.s32 %s27, 1
        // Predicated region
        $region13: #{tpu_custom_call.1} parent=11 // pred_check
          %p351 = pneg %p74
        $region14: #{tpu_custom_call.1} parent=11 // pred_check_branch
          %353 = sbr.rel (%p351) target = $region16
        $region15: #{tpu_custom_call.1} parent=11 // pred_region
          _
        $region16: #{tpu_custom_call.1} parent=11 // pred_fallthru
          _
        // Predicated region
        $region17: #{tpu_custom_call.1} parent=11 // pred_check
          %p354 = pneg %p95
        $region18: #{tpu_custom_call.1} parent=11 // pred_check_branch
          %356 = sbr.rel (%p354) target = $region20
        $region19: #{tpu_custom_call.1} parent=11 // pred_region
          _
        $region20: #{tpu_custom_call.1} parent=11 // pred_fallthru
          _
        // Predicated region
        $region21: #{tpu_custom_call.1} parent=11 // pred_check
          %p357 = pneg %p116
        $region22: #{tpu_custom_call.1} parent=11 // pred_check_branch
          %359 = sbr.rel (%p357) target = $region24
        $region23: #{tpu_custom_call.1} parent=11 // pred_region
          _
        $region24: #{tpu_custom_call.1} parent=11 // pred_fallthru
          _
        // Predicated region
        $region25: #{tpu_custom_call.1} parent=11 // pred_check
          %p360 = pneg %p137
        $region26: #{tpu_custom_call.1} parent=11 // pred_check_branch
          %362 = sbr.rel (%p360) target = $region28
        $region27: #{tpu_custom_call.1} parent=11 // pred_region
          %s364 = ssub.s32 256, 256
          %365 = vsyncadd [#allocation3], %s364
          %s366 = sshll.u32 [#allocation2], 4
          %s367 = int_to_ptr.vmem [resolvable:$true] %s366
          %372 = dma.hbm_to_vmem [thread:$0]  %s4, 256, %s367, [#allocation3], 64, 64, 4
        $region28: #{tpu_custom_call.1} parent=11 // pred_fallthru
          _
        // Predicated region
        $region29: #{tpu_custom_call.1} parent=11 // pred_check
          %p373 = pneg %p158
        $region30: #{tpu_custom_call.1} parent=11 // pred_check_branch
          %375 = sbr.rel (%p373) target = $region32
        $region31: #{tpu_custom_call.1} parent=11 // pred_region
          _
        $region32: #{tpu_custom_call.1} parent=11 // pred_fallthru
          _
        // Predicated region
        $region33: #{tpu_custom_call.1} parent=11 // pred_check
          %p376 = pneg %p179
        $region34: #{tpu_custom_call.1} parent=11 // pred_check_branch
          %378 = sbr.rel (%p376) target = $region36
        $region35: #{tpu_custom_call.1} parent=11 // pred_region
          _
        $region36: #{tpu_custom_call.1} parent=11 // pred_fallthru
          _
        // Predicated region
        $region37: #{tpu_custom_call.1} parent=11 // pred_check
          %p379 = pneg %p200
        $region38: #{tpu_custom_call.1} parent=11 // pred_check_branch
          %381 = sbr.rel (%p379) target = $region40
        $region39: #{tpu_custom_call.1} parent=11 // pred_region
          _
        $region40: #{tpu_custom_call.1} parent=11 // pred_fallthru
          _
        // Predicated region
        $region41: #{tpu_custom_call.1} parent=11 // pred_check
          %p382 = pneg %p221
        $region42: #{tpu_custom_call.1} parent=11 // pred_check_branch
          %384 = sbr.rel (%p382) target = $region44
        $region43: #{tpu_custom_call.1} parent=11 // pred_region
          _
        $region44: #{tpu_custom_call.1} parent=11 // pred_fallthru
          _
        // Predicated region
        $region45: #{tpu_custom_call.1} parent=11 // pred_check
          %p385 = pneg %p242
        $region46: #{tpu_custom_call.1} parent=11 // pred_check_branch
          %387 = sbr.rel (%p385) target = $region48
        $region47: #{tpu_custom_call.1} parent=11 // pred_region
          _
        $region48: #{tpu_custom_call.1} parent=11 // pred_fallthru
          _
        // Predicated region
        $region49: #{tpu_custom_call.1} parent=11 // pred_check
          %p388 = pneg %p263
        $region50: #{tpu_custom_call.1} parent=11 // pred_check_branch
          %390 = sbr.rel (%p388) target = $region52
        $region51: #{tpu_custom_call.1} parent=11 // pred_region
          _
        $region52: #{tpu_custom_call.1} parent=11 // pred_fallthru
          _
        // Predicated region
        $region53: #{tpu_custom_call.1} parent=11 // pred_check
          %p391 = pneg %p284
        $region54: #{tpu_custom_call.1} parent=11 // pred_check_branch
          %393 = sbr.rel (%p391) target = $region56
        $region55: #{tpu_custom_call.1} parent=11 // pred_region
          _
        $region56: #{tpu_custom_call.1} parent=11 // pred_fallthru
          _
      $region12: #{tpu_custom_call.1} parent=5 // pred_fallthru
        _
      %p394 = scmp.lt.s32.totalorder %s27, 2
      // Predicated region
      $region57: #{tpu_custom_call.1} parent=5 // pred_check
        %p395 = pneg %p394
      $region58: #{tpu_custom_call.1} parent=5 // pred_check_branch
        %397 = sbr.rel (%p395) target = $region60
      $region59: #{tpu_custom_call.1} parent=5 // pred_region
        // Predicated region
        $region61: #{tpu_custom_call.1} parent=59 // pred_check
          %p398 = pneg %p47
        $region62: #{tpu_custom_call.1} parent=59 // pred_check_branch
          %400 = sbr.rel (%p398) target = $region64
        $region63: #{tpu_custom_call.1} parent=59 // pred_region
          %p401 = scmp.lt.s32.totalorder %s27, 1
          %s402 = scalar_select %p401, %s27, 1
          %s403 = smul.addr %s402, 8
          %s404 = scalar_lea.vmem %s0, %s403
        $region64: #{tpu_custom_call.1} parent=59 // pred_fallthru
          _
      $region60: #{tpu_custom_call.1} parent=5 // pred_fallthru
        _
      %p405 = scmp.le.s32.totalorder 1, %s27
      %p406 = scmp.lt.s32.totalorder %s27, 3
      %p407 = pnand %p405, %p406
      %p408 = pneg %p407
      // Predicated region
      $region65: #{tpu_custom_call.1} parent=5 // pred_check
        _
      $region66: #{tpu_custom_call.1} parent=5 // pred_check_branch
        %410 = sbr.rel (%p407) target = $region68
      $region67: #{tpu_custom_call.1} parent=5 // pred_region
        %s411 = ssub.s32 %s27, 1
        // Predicated region
        $region69: #{tpu_custom_call.1} parent=67 // pred_check
          %p412 = pneg %p137
        $region70: #{tpu_custom_call.1} parent=67 // pred_check_branch
          %414 = sbr.rel (%p412) target = $region72
        $region71: #{tpu_custom_call.1} parent=67 // pred_region
          %415 = dma.done [#allocation3], 256
        $region72: #{tpu_custom_call.1} parent=67 // pred_fallthru
          _
        %p416 = scmp.lt.s32.totalorder %s32, 1
        %s417 = scalar_select %p416, %s32, 1
        %s418 = smul.addr %s417, 8
        %s419 = scalar_lea.vmem %s0, %s418
        %p420 = pneg %p53
        %p421 = pneg %p50
        %p422 = pneg %p74
        %p423 = pneg %p71
        %p424 = pneg %p95
        %p425 = pneg %p92
        %p426 = pneg %p116
        %p427 = pneg %p113
        %p428 = pneg %p137
        %p429 = pneg %p134
        %p430 = pneg %p158
        %p431 = pneg %p155
        %p432 = pneg %p179
        %p433 = pneg %p176
        %p434 = pneg %p200
        %p435 = pneg %p197
        %p436 = pneg %p221
        %p437 = pneg %p218
        %p438 = pneg %p242
        %p439 = pneg %p239
        %p440 = pneg %p263
        %p441 = pneg %p260
        %p442 = pneg %p284
        %p443 = pneg %p281
        %p444 = pneg %p310
        %p445 = pneg %p307
        %s446 = sand.u32 %s297, 1
        %s447 = scalar_lea.sflag [#allocation4], %s446
        %s448 = sand.u32 %s297, 1
        %s449 = smul.addr %s448, 8
        %s450 = scalar_lea.vmem [#allocation5], %s449
        %p451 = pneg %p336
        %p452 = pneg %p333
        %s453 = sand.u32 %s323, 1
        %s454 = scalar_lea.sflag [#allocation7], %s453
        %s455 = sand.u32 %s323, 1
        %s456 = smul.addr %s455, 32
        %s457 = scalar_lea.vmem [#allocation6], %s456
        %p458 = scmp.lt.s32.totalorder %s32, 1
        %s459 = scalar_select %p458, %s32, 1
        %s460 = smul.addr %s459, 8
        %s461 = scalar_lea.vmem %s0, %s460
        %v463 = vld [vmem:[%s461] sm:$0xff]
        %v464 = vpack.c.bf16 %v463, %v463
        %v465 = vld [vmem:[%s1] sm:$0xf]
        %v466 = vld [vmem:[%s1 + $0x4] sm:$0xf]
        %v467 = vld [vmem:[%s1 + $0x8] sm:$0xf]
        %v468 = vld [vmem:[%s1 + $0xc] sm:$0xf]
        %v473 = vunpack.c.l.b16 %v465
        %v474 = vunpack.c.l.b16 %v466
        %v475 = vunpack.c.l.b16 %v467
        %v476 = vunpack.c.l.b16 %v468
        %v477 = vpack.c.b16 %v474, %v473
        %v478 = vpack.c.b16 %v476, %v475
        %vm481 = vcmask 261120
        %v483 = vsel %vm481, %v464, 0
        %485 = vmatprep.subr.bf16.mxu0 0
        %486 = vmatpush1.bf16.msra.mxu0 0
        %487 = vmatprep.subr.bf16.mxu0 0
        %488 = vmatpush1.bf16.msra.mxu0 0
        %489 = vmatprep.subr.bf16.mxu0 0
        %490 = vmatpush1.bf16.msra.mxu0 0
        %491 = vmatprep.subr.bf16.mxu0 0
        %492 = vmatpush1.bf16.msra.mxu0 0
        %493 = vmatprep.subr.bf16.mxu0 0
        %494 = vmatpush1.bf16.msra.mxu0 0
        %495 = vmatprep.subr.bf16.mxu0 0
        %496 = vmatpush1.bf16.msra.mxu0 0
        %497 = vmatprep.subr.bf16.mxu0 0
        %498 = vmatpush1.bf16.msra.mxu0 %v478
        %499 = vmatprep.subr.bf16.mxu0 0
        %500 = vmatpush1.bf16.msra.mxu0 %v477
        %501 = vmatprep.subr.bf16.mxu0 0
        %502 = vmatpush2.bf16.msra.mxu0 0
        %503 = vmatprep.subr.bf16.mxu0 0
        %504 = vmatpush2.bf16.msra.mxu0 0
        %505 = vmatprep.subr.bf16.mxu0 0
        %506 = vmatpush2.bf16.msra.mxu0 0
        %507 = vmatprep.subr.bf16.mxu0 0
        %508 = vmatpush2.bf16.msra.mxu0 0
        %509 = vmatprep.subr.bf16.mxu0 0
        %510 = vmatpush2.bf16.msra.mxu0 0
        %511 = vmatprep.subr.bf16.mxu0 0
        %512 = vmatpush2.bf16.msra.mxu0 0
        %513 = vmatprep.subr.bf16.mxu0 0
        %514 = vmatpush2.bf16.msra.mxu0 0
        %515 = vmatprep.subr.bf16.mxu0 0
        %516 = vmatpush2.bf16.msra.mxu0 0
        %517 = vmatprep.mubr.bf16.mxu0 0
        %518 = vmatmul.mubr.bf16.gmra.mxu0 %v483
        %v519 = vpop.f32.mrf.mxu0
        %v520 = vadd.f32 0.0, %v519
        %v521 = vpop.f32.mrf.mxu0
        %v522 = vpop.f32.mrf.mxu0
        %v523 = vpop.f32.mrf.mxu0
        %524 = vdwg.mxu0
        %v525 = vmul.f32 %v520, 0.35355338
        %v526 = vpack.c.bf16 %v525, %v525
        %v527 = vpack.c.bf16 %v520, %v520
        %529 = vrot.lane.b32.xlu0 %v526, 120
        %v530 = vpop.permute.xlu0 %529
        %531 = vrot.lane.b32.xlu0 %v526, 112
        %v532 = vpop.permute.xlu0 %531
        %533 = vrot.lane.b32.xlu0 %v526, 104
        %v534 = vpop.permute.xlu0 %533
        %536 = vrot.lane.b32.xlu0 %v527, 120
        %v537 = vpop.permute.xlu0 %536
        %538 = vrot.lane.b32.xlu0 %v527, 112
        %v539 = vpop.permute.xlu0 %538
        %540 = vrot.lane.b32.xlu0 %v527, 104
        %v541 = vpop.permute.xlu0 %540
        %542 = vrot.lane.b32.xlu0 %v527, 96
        %v543 = vpop.permute.xlu0 %542
        %vm544 = vcmask 64512
        %v546 = vsel %vm544, %v526, 0
        %v549 = vsel %vm544, %v543, 0
        %551 = vmatprep.subr.bf16.mxu0 0
        %552 = vmatpush1.bf16.xpose.msra.mxu0 0
        %553 = vmatprep.subr.bf16.mxu0 0
        %554 = vmatpush1.bf16.xpose.msra.mxu0 0
        %555 = vmatprep.subr.bf16.mxu0 0
        %556 = vmatpush1.bf16.xpose.msra.mxu0 0
        %557 = vmatprep.subr.bf16.mxu0 0
        %558 = vmatpush1.bf16.xpose.msra.mxu0 0
        %559 = vmatprep.subr.bf16.mxu0 0
        %560 = vmatpush1.bf16.xpose.msra.mxu0 0
        %561 = vmatprep.subr.bf16.mxu0 0
        %562 = vmatpush1.bf16.xpose.msra.mxu0 0
        %563 = vmatprep.subr.bf16.mxu0 0
        %564 = vmatpush1.bf16.xpose.msra.mxu0 0
        %565 = vmatprep.subr.bf16.mxu0 0
        %566 = vmatpush1.bf16.xpose.msra.mxu0 %v549
        %567 = vmatprep.subr.bf16.mxu0 0
        %568 = vmatpush2.bf16.xpose.msra.mxu0 0
        %569 = vmatprep.subr.bf16.mxu0 0
        %570 = vmatpush2.bf16.xpose.msra.mxu0 0
        %571 = vmatprep.subr.bf16.mxu0 0
        %572 = vmatpush2.bf16.xpose.msra.mxu0 0
        %573 = vmatprep.subr.bf16.mxu0 0
        %574 = vmatpush2.bf16.xpose.msra.mxu0 0
        %575 = vmatprep.subr.bf16.mxu0 0
        %576 = vmatpush2.bf16.xpose.msra.mxu0 0
        %577 = vmatprep.subr.bf16.mxu0 0
        %578 = vmatpush2.bf16.xpose.msra.mxu0 0
        %579 = vmatprep.subr.bf16.mxu0 0
        %580 = vmatpush2.bf16.xpose.msra.mxu0 0
        %581 = vmatprep.subr.bf16.mxu0 0
        %582 = vmatpush2.bf16.xpose.msra.mxu0 0
        %583 = vmatprep.mubr.bf16.mxu0 0
        %584 = vmatmul.mubr.bf16.gmra.mxu0 %v546
        %v585 = vpop.f32.mrf.mxu0
        %v586 = vadd.f32 0.0, %v585
        %v587 = vpop.f32.mrf.mxu0
        %v588 = vpop.f32.mrf.mxu0
        %v589 = vpop.f32.mrf.mxu0
        %590 = vdwg.mxu0
        %591 = vrot.lane.b32.xlu0 %v537, 96
        %v592 = vpop.permute.xlu0 %591
        %v594 = vsel %vm544, %v530, 0
        %v597 = vsel %vm544, %v592, 0
        %599 = vmatprep.subr.bf16.mxu0 0
        %600 = vmatpush1.bf16.xpose.msra.mxu0 0
        %601 = vmatprep.subr.bf16.mxu0 0
        %602 = vmatpush1.bf16.xpose.msra.mxu0 0
        %603 = vmatprep.subr.bf16.mxu0 0
        %604 = vmatpush1.bf16.xpose.msra.mxu0 0
        %605 = vmatprep.subr.bf16.mxu0 0
        %606 = vmatpush1.bf16.xpose.msra.mxu0 0
        %607 = vmatprep.subr.bf16.mxu0 0
        %608 = vmatpush1.bf16.xpose.msra.mxu0 0
        %609 = vmatprep.subr.bf16.mxu0 0
        %610 = vmatpush1.bf16.xpose.msra.mxu0 0
        %611 = vmatprep.subr.bf16.mxu0 0
        %612 = vmatpush1.bf16.xpose.msra.mxu0 0
        %613 = vmatprep.subr.bf16.mxu0 0
        %614 = vmatpush1.bf16.xpose.msra.mxu0 %v597
        %615 = vmatprep.subr.bf16.mxu0 0
        %616 = vmatpush2.bf16.xpose.msra.mxu0 0
        %617 = vmatprep.subr.bf16.mxu0 0
        %618 = vmatpush2.bf16.xpose.msra.mxu0 0
        %619 = vmatprep.subr.bf16.mxu0 0
        %620 = vmatpush2.bf16.xpose.msra.mxu0 0
        %621 = vmatprep.subr.bf16.mxu0 0
        %622 = vmatpush2.bf16.xpose.msra.mxu0 0
        %623 = vmatprep.subr.bf16.mxu0 0
        %624 = vmatpush2.bf16.xpose.msra.mxu0 0
        %625 = vmatprep.subr.bf16.mxu0 0
        %626 = vmatpush2.bf16.xpose.msra.mxu0 0
        %627 = vmatprep.subr.bf16.mxu0 0
        %628 = vmatpush2.bf16.xpose.msra.mxu0 0
        %629 = vmatprep.subr.bf16.mxu0 0
        %630 = vmatpush2.bf16.xpose.msra.mxu0 0
        %631 = vmatprep.mubr.bf16.mxu0 0
        %632 = vmatmul.mubr.bf16.gmra.mxu0 %v594
        %v633 = vpop.f32.mrf.mxu0
        %v634 = vadd.f32 0.0, %v633
        %v635 = vpop.f32.mrf.mxu0
        %v636 = vpop.f32.mrf.mxu0
        %v637 = vpop.f32.mrf.mxu0
        %638 = vdwg.mxu0
        %639 = vrot.lane.b32.xlu0 %v539, 96
        %v640 = vpop.permute.xlu0 %639
        %v642 = vsel %vm544, %v532, 0
        %v645 = vsel %vm544, %v640, 0
        %647 = vmatprep.subr.bf16.mxu0 0
        %648 = vmatpush1.bf16.xpose.msra.mxu0 0
        %649 = vmatprep.subr.bf16.mxu0 0
        %650 = vmatpush1.bf16.xpose.msra.mxu0 0
        %651 = vmatprep.subr.bf16.mxu0 0
        %652 = vmatpush1.bf16.xpose.msra.mxu0 0
        %653 = vmatprep.subr.bf16.mxu0 0
        %654 = vmatpush1.bf16.xpose.msra.mxu0 0
        %655 = vmatprep.subr.bf16.mxu0 0
        %656 = vmatpush1.bf16.xpose.msra.mxu0 0
        %657 = vmatprep.subr.bf16.mxu0 0
        %658 = vmatpush1.bf16.xpose.msra.mxu0 0
        %659 = vmatprep.subr.bf16.mxu0 0
        %660 = vmatpush1.bf16.xpose.msra.mxu0 0
        %661 = vmatprep.subr.bf16.mxu0 0
        %662 = vmatpush1.bf16.xpose.msra.mxu0 %v645
        %663 = vmatprep.subr.bf16.mxu0 0
        %664 = vmatpush2.bf16.xpose.msra.mxu0 0
        %665 = vmatprep.subr.bf16.mxu0 0
        %666 = vmatpush2.bf16.xpose.msra.mxu0 0
        %667 = vmatprep.subr.bf16.mxu0 0
        %668 = vmatpush2.bf16.xpose.msra.mxu0 0
        %669 = vmatprep.subr.bf16.mxu0 0
        %670 = vmatpush2.bf16.xpose.msra.mxu0 0
        %671 = vmatprep.subr.bf16.mxu0 0
        %672 = vmatpush2.bf16.xpose.msra.mxu0 0
        %673 = vmatprep.subr.bf16.mxu0 0
        %674 = vmatpush2.bf16.xpose.msra.mxu0 0
        %675 = vmatprep.subr.bf16.mxu0 0
        %676 = vmatpush2.bf16.xpose.msra.mxu0 0
        %677 = vmatprep.subr.bf16.mxu0 0
        %678 = vmatpush2.bf16.xpose.msra.mxu0 0
        %679 = vmatprep.mubr.bf16.mxu0 0
        %680 = vmatmul.mubr.bf16.gmra.mxu0 %v642
        %v681 = vpop.f32.mrf.mxu0
        %v682 = vadd.f32 0.0, %v681
        %v683 = vpop.f32.mrf.mxu0
        %v684 = vpop.f32.mrf.mxu0
        %v685 = vpop.f32.mrf.mxu0
        %686 = vdwg.mxu0
        %687 = vrot.lane.b32.xlu0 %v541, 96
        %v688 = vpop.permute.xlu0 %687
        %v690 = vsel %vm544, %v534, 0
        %v693 = vsel %vm544, %v688, 0
        %695 = vmatprep.subr.bf16.mxu0 0
        %696 = vmatpush1.bf16.xpose.msra.mxu0 0
        %697 = vmatprep.subr.bf16.mxu0 0
        %698 = vmatpush1.bf16.xpose.msra.mxu0 0
        %699 = vmatprep.subr.bf16.mxu0 0
        %700 = vmatpush1.bf16.xpose.msra.mxu0 0
        %701 = vmatprep.subr.bf16.mxu0 0
        %702 = vmatpush1.bf16.xpose.msra.mxu0 0
        %703 = vmatprep.subr.bf16.mxu0 0
        %704 = vmatpush1.bf16.xpose.msra.mxu0 0
        %705 = vmatprep.subr.bf16.mxu0 0
        %706 = vmatpush1.bf16.xpose.msra.mxu0 0
        %707 = vmatprep.subr.bf16.mxu0 0
        %708 = vmatpush1.bf16.xpose.msra.mxu0 0
        %709 = vmatprep.subr.bf16.mxu0 0
        %710 = vmatpush1.bf16.xpose.msra.mxu0 %v693
        %711 = vmatprep.subr.bf16.mxu0 0
        %712 = vmatpush2.bf16.xpose.msra.mxu0 0
        %713 = vmatprep.subr.bf16.mxu0 0
        %714 = vmatpush2.bf16.xpose.msra.mxu0 0
        %715 = vmatprep.subr.bf16.mxu0 0
        %716 = vmatpush2.bf16.xpose.msra.mxu0 0
        %717 = vmatprep.subr.bf16.mxu0 0
        %718 = vmatpush2.bf16.xpose.msra.mxu0 0
        %719 = vmatprep.subr.bf16.mxu0 0
        %720 = vmatpush2.bf16.xpose.msra.mxu0 0
        %721 = vmatprep.subr.bf16.mxu0 0
        %722 = vmatpush2.bf16.xpose.msra.mxu0 0
        %723 = vmatprep.subr.bf16.mxu0 0
        %724 = vmatpush2.bf16.xpose.msra.mxu0 0
        %725 = vmatprep.subr.bf16.mxu0 0
        %726 = vmatpush2.bf16.xpose.msra.mxu0 0
        %727 = vmatprep.mubr.bf16.mxu0 0
        %728 = vmatmul.mubr.bf16.gmra.mxu0 %v690
        %v729 = vpop.f32.mrf.mxu0
        %v730 = vadd.f32 0.0, %v729
        %v731 = vpop.f32.mrf.mxu0
        %v732 = vpop.f32.mrf.mxu0
        %v733 = vpop.f32.mrf.mxu0
        %734 = vdwg.mxu0
        %v735 = vsel %vm544, %v586, -inf
        %736 = vmax.xlane.f32.xlu0 %v735
        %v737 = vpop.xlane.xlu0 %736
        %v738 = vsel %vm544, %v634, -inf
        %739 = vmax.xlane.f32.xlu0 %v738
        %v740 = vpop.xlane.xlu0 %739
        %v741 = vsel %vm544, %v682, -inf
        %742 = vmax.xlane.f32.xlu0 %v741
        %v743 = vpop.xlane.xlu0 %742
        %v744 = vsel %vm544, %v730, -inf
        %745 = vmax.xlane.f32.xlu0 %v744
        %v746 = vpop.xlane.xlu0 %745
        %v747 = vsub.f32 %v586, %v737
        %v748 = vsub.f32 %v634, %v740
        %v749 = vsub.f32 %v682, %v743
        %v750 = vsub.f32 %v730, %v746
        %v751 = vmul.f32 %v747, 1.442695
        %v752 = vpow.pop %v751
        %v753 = vmul.f32 %v748, 1.442695
        %v754 = vpow.pop %v753
        %v755 = vmul.f32 %v749, 1.442695
        %v756 = vpow.pop %v755
        %v757 = vmul.f32 %v750, 1.442695
        %v758 = vpow.pop %v757
        %v759 = vsel %vm544, %v752, 0.0
        %760 = vadd.xlane.f32.xlu0 %v759
        %v761 = vpop.xlane.xlu0 %760
        %v762 = vsel %vm544, %v754, 0.0
        %763 = vadd.xlane.f32.xlu0 %v762
        %v764 = vpop.xlane.xlu0 %763
        %v765 = vsel %vm544, %v756, 0.0
        %766 = vadd.xlane.f32.xlu0 %v765
        %v767 = vpop.xlane.xlu0 %766
        %v768 = vsel %vm544, %v758, 0.0
        %769 = vadd.xlane.f32.xlu0 %v768
        %v770 = vpop.xlane.xlu0 %769
        %v771 = vrcp.pop %v761
        %v772 = vrcp.pop %v764
        %v773 = vrcp.pop %v767
        %v774 = vrcp.pop %v770
        %v775 = vmul.f32 %v752, %v771
        %v776 = vmul.f32 %v754, %v772
        %v777 = vmul.f32 %v756, %v773
        %v778 = vmul.f32 %v758, %v774
        %779 = vst.msk [vmem:[%s457] sm:$0xff] %vm544, %v775
        %780 = vst.msk [vmem:[%s457 + $0x8] sm:$0xff] %vm544, %v776
        %781 = vst.msk [vmem:[%s457 + $0x10] sm:$0xff] %vm544, %v777
        %782 = vst.msk [vmem:[%s457 + $0x18] sm:$0xff] %vm544, %v778
        %v783 = vpack.c.bf16 %v775, %v775
        %v784 = vpack.c.bf16 %v776, %v776
        %v785 = vpack.c.bf16 %v777, %v777
        %v786 = vpack.c.bf16 %v778, %v778
        %787 = vrot.lane.b32.xlu0 %v527, 64
        %v788 = vpop.permute.xlu0 %787
        %v790 = vsel %vm544, %v783, 0
        %vm792 = vcmask 1043456
        %v794 = vsel %vm792, %v788, 0
        %796 = vmatprep.subr.bf16.mxu0 0
        %797 = vmatpush1.bf16.msra.mxu0 0
        %798 = vmatprep.subr.bf16.mxu0 0
        %799 = vmatpush1.bf16.msra.mxu0 0
        %800 = vmatprep.subr.bf16.mxu0 0
        %801 = vmatpush1.bf16.msra.mxu0 0
        %802 = vmatprep.subr.bf16.mxu0 0
        %803 = vmatpush1.bf16.msra.mxu0 0
        %804 = vmatprep.subr.bf16.mxu0 0
        %805 = vmatpush1.bf16.msra.mxu0 0
        %806 = vmatprep.subr.bf16.mxu0 0
        %807 = vmatpush1.bf16.msra.mxu0 0
        %808 = vmatprep.subr.bf16.mxu0 0
        %809 = vmatpush1.bf16.msra.mxu0 0
        %810 = vmatprep.subr.bf16.mxu0 0
        %811 = vmatpush1.bf16.msra.mxu0 %v794
        %812 = vmatprep.subr.bf16.mxu0 0
        %813 = vmatpush2.bf16.msra.mxu0 0
        %814 = vmatprep.subr.bf16.mxu0 0
        %815 = vmatpush2.bf16.msra.mxu0 0
        %816 = vmatprep.subr.bf16.mxu0 0
        %817 = vmatpush2.bf16.msra.mxu0 0
        %818 = vmatprep.subr.bf16.mxu0 0
        %819 = vmatpush2.bf16.msra.mxu0 0
        %820 = vmatprep.subr.bf16.mxu0 0
        %821 = vmatpush2.bf16.msra.mxu0 0
        %822 = vmatprep.subr.bf16.mxu0 0
        %823 = vmatpush2.bf16.msra.mxu0 0
        %824 = vmatprep.subr.bf16.mxu0 0
        %825 = vmatpush2.bf16.msra.mxu0 0
        %826 = vmatprep.subr.bf16.mxu0 0
        %827 = vmatpush2.bf16.msra.mxu0 0
        %828 = vmatprep.mubr.bf16.mxu0 0
        %829 = vmatmul.mubr.bf16.gmra.mxu0 %v790
        %v830 = vpop.f32.mrf.mxu0
        %v831 = vadd.f32 0.0, %v830
        %v832 = vpop.f32.mrf.mxu0
        %v833 = vpop.f32.mrf.mxu0
        %v834 = vpop.f32.mrf.mxu0
        %835 = vdwg.mxu0
        %836 = vrot.lane.b32.xlu0 %v537, 64
        %v837 = vpop.permute.xlu0 %836
        %v839 = vsel %vm544, %v784, 0
        %v842 = vsel %vm792, %v837, 0
        %844 = vmatprep.subr.bf16.mxu0 0
        %845 = vmatpush1.bf16.msra.mxu0 0
        %846 = vmatprep.subr.bf16.mxu0 0
        %847 = vmatpush1.bf16.msra.mxu0 0
        %848 = vmatprep.subr.bf16.mxu0 0
        %849 = vmatpush1.bf16.msra.mxu0 0
        %850 = vmatprep.subr.bf16.mxu0 0
        %851 = vmatpush1.bf16.msra.mxu0 0
        %852 = vmatprep.subr.bf16.mxu0 0
        %853 = vmatpush1.bf16.msra.mxu0 0
        %854 = vmatprep.subr.bf16.mxu0 0
        %855 = vmatpush1.bf16.msra.mxu0 0
        %856 = vmatprep.subr.bf16.mxu0 0
        %857 = vmatpush1.bf16.msra.mxu0 0
        %858 = vmatprep.subr.bf16.mxu0 0
        %859 = vmatpush1.bf16.msra.mxu0 %v842
        %860 = vmatprep.subr.bf16.mxu0 0
        %861 = vmatpush2.bf16.msra.mxu0 0
        %862 = vmatprep.subr.bf16.mxu0 0
        %863 = vmatpush2.bf16.msra.mxu0 0
        %864 = vmatprep.subr.bf16.mxu0 0
        %865 = vmatpush2.bf16.msra.mxu0 0
        %866 = vmatprep.subr.bf16.mxu0 0
        %867 = vmatpush2.bf16.msra.mxu0 0
        %868 = vmatprep.subr.bf16.mxu0 0
        %869 = vmatpush2.bf16.msra.mxu0 0
        %870 = vmatprep.subr.bf16.mxu0 0
        %871 = vmatpush2.bf16.msra.mxu0 0
        %872 = vmatprep.subr.bf16.mxu0 0
        %873 = vmatpush2.bf16.msra.mxu0 0
        %874 = vmatprep.subr.bf16.mxu0 0
        %875 = vmatpush2.bf16.msra.mxu0 0
        %876 = vmatprep.mubr.bf16.mxu0 0
        %877 = vmatmul.mubr.bf16.gmra.mxu0 %v839
        %v878 = vpop.f32.mrf.mxu0
        %v879 = vadd.f32 0.0, %v878
        %v880 = vpop.f32.mrf.mxu0
        %v881 = vpop.f32.mrf.mxu0
        %v882 = vpop.f32.mrf.mxu0
        %883 = vdwg.mxu0
        %884 = vrot.lane.b32.xlu0 %v539, 64
        %v885 = vpop.permute.xlu0 %884
        %v887 = vsel %vm544, %v785, 0
        %v890 = vsel %vm792, %v885, 0
        %892 = vmatprep.subr.bf16.mxu0 0
        %893 = vmatpush1.bf16.msra.mxu0 0
        %894 = vmatprep.subr.bf16.mxu0 0
        %895 = vmatpush1.bf16.msra.mxu0 0
        %896 = vmatprep.subr.bf16.mxu0 0
        %897 = vmatpush1.bf16.msra.mxu0 0
        %898 = vmatprep.subr.bf16.mxu0 0
        %899 = vmatpush1.bf16.msra.mxu0 0
        %900 = vmatprep.subr.bf16.mxu0 0
        %901 = vmatpush1.bf16.msra.mxu0 0
        %902 = vmatprep.subr.bf16.mxu0 0
        %903 = vmatpush1.bf16.msra.mxu0 0
        %904 = vmatprep.subr.bf16.mxu0 0
        %905 = vmatpush1.bf16.msra.mxu0 0
        %906 = vmatprep.subr.bf16.mxu0 0
        %907 = vmatpush1.bf16.msra.mxu0 %v890
        %908 = vmatprep.subr.bf16.mxu0 0
        %909 = vmatpush2.bf16.msra.mxu0 0
        %910 = vmatprep.subr.bf16.mxu0 0
        %911 = vmatpush2.bf16.msra.mxu0 0
        %912 = vmatprep.subr.bf16.mxu0 0
        %913 = vmatpush2.bf16.msra.mxu0 0
        %914 = vmatprep.subr.bf16.mxu0 0
        %915 = vmatpush2.bf16.msra.mxu0 0
        %916 = vmatprep.subr.bf16.mxu0 0
        %917 = vmatpush2.bf16.msra.mxu0 0
        %918 = vmatprep.subr.bf16.mxu0 0
        %919 = vmatpush2.bf16.msra.mxu0 0
        %920 = vmatprep.subr.bf16.mxu0 0
        %921 = vmatpush2.bf16.msra.mxu0 0
        %922 = vmatprep.subr.bf16.mxu0 0
        %923 = vmatpush2.bf16.msra.mxu0 0
        %924 = vmatprep.mubr.bf16.mxu0 0
        %925 = vmatmul.mubr.bf16.gmra.mxu0 %v887
        %v926 = vpop.f32.mrf.mxu0
        %v927 = vadd.f32 0.0, %v926
        %v928 = vpop.f32.mrf.mxu0
        %v929 = vpop.f32.mrf.mxu0
        %v930 = vpop.f32.mrf.mxu0
        %931 = vdwg.mxu0
        %932 = vrot.lane.b32.xlu0 %v541, 64
        %v933 = vpop.permute.xlu0 %932
        %v935 = vsel %vm544, %v786, 0
        %v938 = vsel %vm792, %v933, 0
        %940 = vmatprep.subr.bf16.mxu0 0
        %941 = vmatpush1.bf16.msra.mxu0 0
        %942 = vmatprep.subr.bf16.mxu0 0
        %943 = vmatpush1.bf16.msra.mxu0 0
        %944 = vmatprep.subr.bf16.mxu0 0
        %945 = vmatpush1.bf16.msra.mxu0 0
        %946 = vmatprep.subr.bf16.mxu0 0
        %947 = vmatpush1.bf16.msra.mxu0 0
        %948 = vmatprep.subr.bf16.mxu0 0
        %949 = vmatpush1.bf16.msra.mxu0 0
        %950 = vmatprep.subr.bf16.mxu0 0
        %951 = vmatpush1.bf16.msra.mxu0 0
        %952 = vmatprep.subr.bf16.mxu0 0
        %953 = vmatpush1.bf16.msra.mxu0 0
        %954 = vmatprep.subr.bf16.mxu0 0
        %955 = vmatpush1.bf16.msra.mxu0 %v938
        %956 = vmatprep.subr.bf16.mxu0 0
        %957 = vmatpush2.bf16.msra.mxu0 0
        %958 = vmatprep.subr.bf16.mxu0 0
        %959 = vmatpush2.bf16.msra.mxu0 0
        %960 = vmatprep.subr.bf16.mxu0 0
        %961 = vmatpush2.bf16.msra.mxu0 0
        %962 = vmatprep.subr.bf16.mxu0 0
        %963 = vmatpush2.bf16.msra.mxu0 0
        %964 = vmatprep.subr.bf16.mxu0 0
        %965 = vmatpush2.bf16.msra.mxu0 0
        %966 = vmatprep.subr.bf16.mxu0 0
        %967 = vmatpush2.bf16.msra.mxu0 0
        %968 = vmatprep.subr.bf16.mxu0 0
        %969 = vmatpush2.bf16.msra.mxu0 0
        %970 = vmatprep.subr.bf16.mxu0 0
        %971 = vmatpush2.bf16.msra.mxu0 0
        %972 = vmatprep.mubr.bf16.mxu0 0
        %973 = vmatmul.mubr.bf16.gmra.mxu0 %v935
        %v974 = vpop.f32.mrf.mxu0
        %v975 = vadd.f32 0.0, %v974
        %v976 = vpop.f32.mrf.mxu0
        %v977 = vpop.f32.mrf.mxu0
        %v978 = vpop.f32.mrf.mxu0
        %979 = vdwg.mxu0
        %v980 = vpack.c.bf16 %v831, %v831
        %v981 = vpack.c.bf16 %v879, %v879
        %v982 = vpack.c.bf16 %v927, %v927
        %v983 = vpack.c.bf16 %v975, %v975
        %v984 = vld [vmem:[%s2] sm:$0xf]
        %v985 = vld [vmem:[%s2 + $0x4] sm:$0xf]
        %v986 = vld [vmem:[%s2 + $0x8] sm:$0xf]
        %v987 = vld [vmem:[%s2 + $0xc] sm:$0xf]
        %v989 = vsel %vm544, %v980, 0
        %v992 = vsel %vm792, %v984, 0
        %994 = vmatprep.subr.bf16.mxu0 0
        %995 = vmatpush1.bf16.msra.mxu0 0
        %996 = vmatprep.subr.bf16.mxu0 0
        %997 = vmatpush1.bf16.msra.mxu0 0
        %998 = vmatprep.subr.bf16.mxu0 0
        %999 = vmatpush1.bf16.msra.mxu0 0
        %1000 = vmatprep.subr.bf16.mxu0 0
        %1001 = vmatpush1.bf16.msra.mxu0 0
        %1002 = vmatprep.subr.bf16.mxu0 0
        %1003 = vmatpush1.bf16.msra.mxu0 0
        %1004 = vmatprep.subr.bf16.mxu0 0
        %1005 = vmatpush1.bf16.msra.mxu0 0
        %1006 = vmatprep.subr.bf16.mxu0 0
        %1007 = vmatpush1.bf16.msra.mxu0 0
        %1008 = vmatprep.subr.bf16.mxu0 0
        %1009 = vmatpush1.bf16.msra.mxu0 %v992
        %1010 = vmatprep.subr.bf16.mxu0 0
        %1011 = vmatpush2.bf16.msra.mxu0 0
        %1012 = vmatprep.subr.bf16.mxu0 0
        %1013 = vmatpush2.bf16.msra.mxu0 0
        %1014 = vmatprep.subr.bf16.mxu0 0
        %1015 = vmatpush2.bf16.msra.mxu0 0
        %1016 = vmatprep.subr.bf16.mxu0 0
        %1017 = vmatpush2.bf16.msra.mxu0 0
        %1018 = vmatprep.subr.bf16.mxu0 0
        %1019 = vmatpush2.bf16.msra.mxu0 0
        %1020 = vmatprep.subr.bf16.mxu0 0
        %1021 = vmatpush2.bf16.msra.mxu0 0
        %1022 = vmatprep.subr.bf16.mxu0 0
        %1023 = vmatpush2.bf16.msra.mxu0 0
        %1024 = vmatprep.subr.bf16.mxu0 0
        %1025 = vmatpush2.bf16.msra.mxu0 0
        %1026 = vmatprep.mubr.bf16.mxu0 0
        %1027 = vmatmul.mubr.bf16.gmra.mxu0 %v989
        %v1028 = vpop.f32.mrf.mxu0
        %v1029 = vadd.f32 0.0, %v1028
        %v1030 = vpop.f32.mrf.mxu0
        %v1031 = vpop.f32.mrf.mxu0
        %v1032 = vpop.f32.mrf.mxu0
        %1033 = vdwg.mxu0
        %v1035 = vsel %vm544, %v981, 0
        %v1038 = vsel %vm792, %v985, 0
        %1040 = vmatprep.subr.bf16.mxu0 0
        %1041 = vmatpush1.bf16.msra.mxu0 0
        %1042 = vmatprep.subr.bf16.mxu0 0
        %1043 = vmatpush1.bf16.msra.mxu0 0
        %1044 = vmatprep.subr.bf16.mxu0 0
        %1045 = vmatpush1.bf16.msra.mxu0 0
        %1046 = vmatprep.subr.bf16.mxu0 0
        %1047 = vmatpush1.bf16.msra.mxu0 0
        %1048 = vmatprep.subr.bf16.mxu0 0
        %1049 = vmatpush1.bf16.msra.mxu0 0
        %1050 = vmatprep.subr.bf16.mxu0 0
        %1051 = vmatpush1.bf16.msra.mxu0 0
        %1052 = vmatprep.subr.bf16.mxu0 0
        %1053 = vmatpush1.bf16.msra.mxu0 0
        %1054 = vmatprep.subr.bf16.mxu0 0
        %1055 = vmatpush1.bf16.msra.mxu0 %v1038
        %1056 = vmatprep.subr.bf16.mxu0 0
        %1057 = vmatpush2.bf16.msra.mxu0 0
        %1058 = vmatprep.subr.bf16.mxu0 0
        %1059 = vmatpush2.bf16.msra.mxu0 0
        %1060 = vmatprep.subr.bf16.mxu0 0
        %1061 = vmatpush2.bf16.msra.mxu0 0
        %1062 = vmatprep.subr.bf16.mxu0 0
        %1063 = vmatpush2.bf16.msra.mxu0 0
        %1064 = vmatprep.subr.bf16.mxu0 0
        %1065 = vmatpush2.bf16.msra.mxu0 0
        %1066 = vmatprep.subr.bf16.mxu0 0
        %1067 = vmatpush2.bf16.msra.mxu0 0
        %1068 = vmatprep.subr.bf16.mxu0 0
        %1069 = vmatpush2.bf16.msra.mxu0 0
        %1070 = vmatprep.subr.bf16.mxu0 0
        %1071 = vmatpush2.bf16.msra.mxu0 0
        %1072 = vmatprep.mubr.bf16.mxu0 0
        %1073 = vmatmul.mubr.bf16.gmra.mxu0 %v1035
        %v1074 = vpop.f32.mrf.mxu0
        %v1075 = vadd.f32 0.0, %v1074
        %v1076 = vpop.f32.mrf.mxu0
        %v1077 = vpop.f32.mrf.mxu0
        %v1078 = vpop.f32.mrf.mxu0
        %1079 = vdwg.mxu0
        %v1081 = vsel %vm544, %v982, 0
        %v1084 = vsel %vm792, %v986, 0
        %1086 = vmatprep.subr.bf16.mxu0 0
        %1087 = vmatpush1.bf16.msra.mxu0 0
        %1088 = vmatprep.subr.bf16.mxu0 0
        %1089 = vmatpush1.bf16.msra.mxu0 0
        %1090 = vmatprep.subr.bf16.mxu0 0
        %1091 = vmatpush1.bf16.msra.mxu0 0
        %1092 = vmatprep.subr.bf16.mxu0 0
        %1093 = vmatpush1.bf16.msra.mxu0 0
        %1094 = vmatprep.subr.bf16.mxu0 0
        %1095 = vmatpush1.bf16.msra.mxu0 0
        %1096 = vmatprep.subr.bf16.mxu0 0
        %1097 = vmatpush1.bf16.msra.mxu0 0
        %1098 = vmatprep.subr.bf16.mxu0 0
        %1099 = vmatpush1.bf16.msra.mxu0 0
        %1100 = vmatprep.subr.bf16.mxu0 0
        %1101 = vmatpush1.bf16.msra.mxu0 %v1084
        %1102 = vmatprep.subr.bf16.mxu0 0
        %1103 = vmatpush2.bf16.msra.mxu0 0
        %1104 = vmatprep.subr.bf16.mxu0 0
        %1105 = vmatpush2.bf16.msra.mxu0 0
        %1106 = vmatprep.subr.bf16.mxu0 0
        %1107 = vmatpush2.bf16.msra.mxu0 0
        %1108 = vmatprep.subr.bf16.mxu0 0
        %1109 = vmatpush2.bf16.msra.mxu0 0
        %1110 = vmatprep.subr.bf16.mxu0 0
        %1111 = vmatpush2.bf16.msra.mxu0 0
        %1112 = vmatprep.subr.bf16.mxu0 0
        %1113 = vmatpush2.bf16.msra.mxu0 0
        %1114 = vmatprep.subr.bf16.mxu0 0
        %1115 = vmatpush2.bf16.msra.mxu0 0
        %1116 = vmatprep.subr.bf16.mxu0 0
        %1117 = vmatpush2.bf16.msra.mxu0 0
        %1118 = vmatprep.mubr.bf16.mxu0 0
        %1119 = vmatmul.mubr.bf16.gmra.mxu0 %v1081
        %v1120 = vpop.f32.mrf.mxu0
        %v1121 = vadd.f32 0.0, %v1120
        %v1122 = vpop.f32.mrf.mxu0
        %v1123 = vpop.f32.mrf.mxu0
        %v1124 = vpop.f32.mrf.mxu0
        %1125 = vdwg.mxu0
        %v1127 = vsel %vm544, %v983, 0
        %v1130 = vsel %vm792, %v987, 0
        %1132 = vmatprep.subr.bf16.mxu0 0
        %1133 = vmatpush1.bf16.msra.mxu0 0
        %1134 = vmatprep.subr.bf16.mxu0 0
        %1135 = vmatpush1.bf16.msra.mxu0 0
        %1136 = vmatprep.subr.bf16.mxu0 0
        %1137 = vmatpush1.bf16.msra.mxu0 0
        %1138 = vmatprep.subr.bf16.mxu0 0
        %1139 = vmatpush1.bf16.msra.mxu0 0
        %1140 = vmatprep.subr.bf16.mxu0 0
        %1141 = vmatpush1.bf16.msra.mxu0 0
        %1142 = vmatprep.subr.bf16.mxu0 0
        %1143 = vmatpush1.bf16.msra.mxu0 0
        %1144 = vmatprep.subr.bf16.mxu0 0
        %1145 = vmatpush1.bf16.msra.mxu0 0
        %1146 = vmatprep.subr.bf16.mxu0 0
        %1147 = vmatpush1.bf16.msra.mxu0 %v1130
        %1148 = vmatprep.subr.bf16.mxu0 0
        %1149 = vmatpush2.bf16.msra.mxu0 0
        %1150 = vmatprep.subr.bf16.mxu0 0
        %1151 = vmatpush2.bf16.msra.mxu0 0
        %1152 = vmatprep.subr.bf16.mxu0 0
        %1153 = vmatpush2.bf16.msra.mxu0 0
        %1154 = vmatprep.subr.bf16.mxu0 0
        %1155 = vmatpush2.bf16.msra.mxu0 0
        %1156 = vmatprep.subr.bf16.mxu0 0
        %1157 = vmatpush2.bf16.msra.mxu0 0
        %1158 = vmatprep.subr.bf16.mxu0 0
        %1159 = vmatpush2.bf16.msra.mxu0 0
        %1160 = vmatprep.subr.bf16.mxu0 0
        %1161 = vmatpush2.bf16.msra.mxu0 0
        %1162 = vmatprep.subr.bf16.mxu0 0
        %1163 = vmatpush2.bf16.msra.mxu0 0
        %1164 = vmatprep.mubr.bf16.mxu0 0
        %1165 = vmatmul.mubr.bf16.gmra.mxu0 %v1127
        %v1166 = vpop.f32.mrf.mxu0
        %v1167 = vadd.f32 0.0, %v1166
        %v1168 = vpop.f32.mrf.mxu0
        %v1169 = vpop.f32.mrf.mxu0
        %v1170 = vpop.f32.mrf.mxu0
        %1171 = vdwg.mxu0
        %v1172 = vsel %vm481, %v1029, 0.0
        %v1173 = vsel %vm481, %v1075, 0.0
        %v1174 = vadd.f32 %v1172, %v1173
        %v1175 = vsel %vm481, %v1121, 0.0
        %v1176 = vadd.f32 %v1174, %v1175
        %v1177 = vsel %vm481, %v1167, 0.0
        %v1178 = vadd.f32 %v1176, %v1177
        %v1179 = vld [vmem:[%s3] sm:$0x1]
        %v1181 = vlaneseq
        %v1182 = vshrl.u32 %v1181, 7
        %v1183 = vsub.s32 0, %v1182
        %v1184 = vrot.slane %v1179, %v1183
        %v1186 = vadd.f32 %v1178, %v1184
        %v1187 = vadd.f32 %v463, %v1186
        %v1188 = vld [vmem:[%s8] sm:$0x1]
        %v1189 = vld [vmem:[%s9] sm:$0x1]
        %v1190 = vsel %vm481, %v1187, 0.0
        %1191 = vadd.xlane.f32.xlu0 %v1190
        %v1192 = vpop.xlane.xlu0 %1191
        %v1193 = vrcp.pop 32.0
        %v1194 = vmul.f32 %v1192, %v1193
        %v1195 = vsub.f32 %v1187, %v1194
        %v1196 = vmul.f32 %v1195, %v1195
        %v1197 = vsel %vm481, %v1196, 0.0
        %1198 = vadd.xlane.f32.xlu0 %v1197
        %v1199 = vpop.xlane.xlu0 %1198
        %v1200 = vmul.f32 %v1199, %v1193
        %v1201 = vadd.f32 %v1200, 1e-05
        %v1202 = vrsqrt.pop %v1201
        %v1203 = vmul.f32 %v1195, %v1202
        %v1205 = vlaneseq
        %v1206 = vshrl.u32 %v1205, 7
        %v1207 = vsub.s32 0, %v1206
        %v1208 = vrot.slane %v1188, %v1207
        %v1210 = vmul.f32 %v1203, %v1208
        %v1212 = vlaneseq
        %v1213 = vshrl.u32 %v1212, 7
        %v1214 = vsub.s32 0, %v1213
        %v1215 = vrot.slane %v1189, %v1214
        %v1217 = vadd.f32 %v1210, %v1215
        %v1218 = vpack.c.bf16 %v1217, %v1217
        %v1219 = vld [vmem:[#allocation2] sm:$0xf]
        %v1220 = vld [vmem:[#allocation2 + $0x4] sm:$0xf]
        %v1221 = vld [vmem:[#allocation2 + $0x8] sm:$0xf]
        %v1222 = vld [vmem:[#allocation2 + $0xc] sm:$0xf]
        %v1223 = vld [vmem:[%s5] sm:$0x1]
        %v1225 = vlaneseq
        %v1226 = vshrl.u32 %v1225, 7
        %v1227 = vsub.s32 0, %v1226
        %v1228 = vrot.slane %v1223, %v1227
        %v1234 = vunpack.c.l.b16 %v1219
        %v1235 = vunpack.c.l.b16 %v1220
        %v1236 = vunpack.c.l.b16 %v1221
        %v1237 = vunpack.c.l.b16 %v1222
        %v1238 = vpack.c.b16 %v1235, %v1234
        %v1239 = vpack.c.b16 %v1237, %v1236
        %v1243 = vsel %vm481, %v1218, 0
        %1245 = vmatprep.subr.bf16.mxu0 0
        %1246 = vmatpush1.bf16.msra.mxu0 0
        %1247 = vmatprep.subr.bf16.mxu0 0
        %1248 = vmatpush1.bf16.msra.mxu0 0
        %1249 = vmatprep.subr.bf16.mxu0 0
        %1250 = vmatpush1.bf16.msra.mxu0 0
        %1251 = vmatprep.subr.bf16.mxu0 0
        %1252 = vmatpush1.bf16.msra.mxu0 0
        %1253 = vmatprep.subr.bf16.mxu0 0
        %1254 = vmatpush1.bf16.msra.mxu0 0
        %1255 = vmatprep.subr.bf16.mxu0 0
        %1256 = vmatpush1.bf16.msra.mxu0 0
        %1257 = vmatprep.subr.bf16.mxu0 0
        %1258 = vmatpush1.bf16.msra.mxu0 %v1239
        %1259 = vmatprep.subr.bf16.mxu0 0
        %1260 = vmatpush1.bf16.msra.mxu0 %v1238
        %1261 = vmatprep.subr.bf16.mxu0 0
        %1262 = vmatpush2.bf16.msra.mxu0 0
        %1263 = vmatprep.subr.bf16.mxu0 0
        %1264 = vmatpush2.bf16.msra.mxu0 0
        %1265 = vmatprep.subr.bf16.mxu0 0
        %1266 = vmatpush2.bf16.msra.mxu0 0
        %1267 = vmatprep.subr.bf16.mxu0 0
        %1268 = vmatpush2.bf16.msra.mxu0 0
        %1269 = vmatprep.subr.bf16.mxu0 0
        %1270 = vmatpush2.bf16.msra.mxu0 0
        %1271 = vmatprep.subr.bf16.mxu0 0
        %1272 = vmatpush2.bf16.msra.mxu0 0
        %1273 = vmatprep.subr.bf16.mxu0 0
        %1274 = vmatpush2.bf16.msra.mxu0 0
        %1275 = vmatprep.subr.bf16.mxu0 0
        %1276 = vmatpush2.bf16.msra.mxu0 0
        %1277 = vmatprep.mubr.bf16.mxu0 0
        %1278 = vmatmul.mubr.bf16.gmra.mxu0 %v1243
        %v1279 = vpop.f32.mrf.mxu0
        %v1280 = vadd.f32 %v1228, %v1279
        %v1281 = vpop.f32.mrf.mxu0
        %v1282 = vpop.f32.mrf.mxu0
        %v1283 = vpop.f32.mrf.mxu0
        %1284 = vdwg.mxu0
        %v1285 = vmul.f32 %v1280, 0.5
        %v1286 = vmul.f32 %v1280, 0.70710677
        %v1287 = verf.f32.pop %v1286
        %v1288 = vadd.f32 %v1287, 1.0
        %v1289 = vmul.f32 %v1285, %v1288
        %v1290 = vpack.c.bf16 %v1289, %v1289
        %v1291 = vld [vmem:[%s6] sm:$0xf]
        %v1292 = vld [vmem:[%s6 + $0x4] sm:$0xf]
        %v1293 = vld [vmem:[%s6 + $0x8] sm:$0xf]
        %v1294 = vld [vmem:[%s6 + $0xc] sm:$0xf]
        %v1295 = vld [vmem:[%s6 + $0x10] sm:$0xf]
        %v1296 = vld [vmem:[%s6 + $0x14] sm:$0xf]
        %v1297 = vld [vmem:[%s6 + $0x18] sm:$0xf]
        %v1298 = vld [vmem:[%s6 + $0x1c] sm:$0xf]
        %v1299 = vld [vmem:[%s7] sm:$0x1]
        %v1301 = vlaneseq
        %v1302 = vshrl.u32 %v1301, 7
        %v1303 = vsub.s32 0, %v1302
        %v1304 = vrot.slane %v1299, %v1303
        %v1314 = vunpack.c.l.b16 %v1291
        %v1315 = vunpack.c.l.b16 %v1292
        %v1316 = vunpack.c.l.b16 %v1293
        %v1317 = vunpack.c.l.b16 %v1294
        %v1318 = vunpack.c.l.b16 %v1295
        %v1319 = vunpack.c.l.b16 %v1296
        %v1320 = vunpack.c.l.b16 %v1297
        %v1321 = vunpack.c.l.b16 %v1298
        %v1322 = vpack.c.b16 %v1315, %v1314
        %v1323 = vpack.c.b16 %v1317, %v1316
        %v1324 = vpack.c.b16 %v1319, %v1318
        %v1325 = vpack.c.b16 %v1321, %v1320
        %vm1330 = vcmask 523264
        %v1332 = vsel %vm1330, %v1290, 0
        %1334 = vmatprep.subr.bf16.mxu0 0
        %1335 = vmatpush1.bf16.msra.mxu0 0
        %1336 = vmatprep.subr.bf16.mxu0 0
        %1337 = vmatpush1.bf16.msra.mxu0 0
        %1338 = vmatprep.subr.bf16.mxu0 0
        %1339 = vmatpush1.bf16.msra.mxu0 0
        %1340 = vmatprep.subr.bf16.mxu0 0
        %1341 = vmatpush1.bf16.msra.mxu0 0
        %1342 = vmatprep.subr.bf16.mxu0 0
        %1343 = vmatpush1.bf16.msra.mxu0 %v1325
        %1344 = vmatprep.subr.bf16.mxu0 0
        %1345 = vmatpush1.bf16.msra.mxu0 %v1324
        %1346 = vmatprep.subr.bf16.mxu0 0
        %1347 = vmatpush1.bf16.msra.mxu0 %v1323
        %1348 = vmatprep.subr.bf16.mxu0 0
        %1349 = vmatpush1.bf16.msra.mxu0 %v1322
        %1350 = vmatprep.subr.bf16.mxu0 0
        %1351 = vmatpush2.bf16.msra.mxu0 0
        %1352 = vmatprep.subr.bf16.mxu0 0
        %1353 = vmatpush2.bf16.msra.mxu0 0
        %1354 = vmatprep.subr.bf16.mxu0 0
        %1355 = vmatpush2.bf16.msra.mxu0 0
        %1356 = vmatprep.subr.bf16.mxu0 0
        %1357 = vmatpush2.bf16.msra.mxu0 0
        %1358 = vmatprep.subr.bf16.mxu0 0
        %1359 = vmatpush2.bf16.msra.mxu0 0
        %1360 = vmatprep.subr.bf16.mxu0 0
        %1361 = vmatpush2.bf16.msra.mxu0 0
        %1362 = vmatprep.subr.bf16.mxu0 0
        %1363 = vmatpush2.bf16.msra.mxu0 0
        %1364 = vmatprep.subr.bf16.mxu0 0
        %1365 = vmatpush2.bf16.msra.mxu0 0
        %1366 = vmatprep.mubr.bf16.mxu0 0
        %1367 = vmatmul.mubr.bf16.gmra.mxu0 %v1332
        %v1368 = vpop.f32.mrf.mxu0
        %v1369 = vadd.f32 %v1304, %v1368
        %v1370 = vpop.f32.mrf.mxu0
        %v1371 = vpop.f32.mrf.mxu0
        %v1372 = vpop.f32.mrf.mxu0
        %1373 = vdwg.mxu0
        %v1374 = vadd.f32 %v1217, %v1369
        %v1375 = vld [vmem:[%s10] sm:$0x1]
        %v1376 = vld [vmem:[%s11] sm:$0x1]
        %v1377 = vsel %vm481, %v1374, 0.0
        %1378 = vadd.xlane.f32.xlu0 %v1377
        %v1379 = vpop.xlane.xlu0 %1378
        %v1380 = vmul.f32 %v1379, %v1193
        %v1381 = vsub.f32 %v1374, %v1380
        %v1382 = vmul.f32 %v1381, %v1381
        %v1383 = vsel %vm481, %v1382, 0.0
        %1384 = vadd.xlane.f32.xlu0 %v1383
        %v1385 = vpop.xlane.xlu0 %1384
        %v1386 = vmul.f32 %v1385, %v1193
        %v1387 = vadd.f32 %v1386, 1e-05
        %v1388 = vrsqrt.pop %v1387
        %v1389 = vmul.f32 %v1381, %v1388
        %v1391 = vlaneseq
        %v1392 = vshrl.u32 %v1391, 7
        %v1393 = vsub.s32 0, %v1392
        %v1394 = vrot.slane %v1375, %v1393
        %v1396 = vmul.f32 %v1389, %v1394
        %v1398 = vlaneseq
        %v1399 = vshrl.u32 %v1398, 7
        %v1400 = vsub.s32 0, %v1399
        %v1401 = vrot.slane %v1376, %v1400
        %v1403 = vadd.f32 %v1396, %v1401
        %1404 = vst.msk [vmem:[%s450] sm:$0xff] %vm481, %v1403
        %s1405 = sand.u32 %s297, 1
        %s1406 = scalar_lea.sflag [#allocation4], %s1405
        %s1407 = sand.u32 %s297, 1
        %s1408 = smul.addr %s1407, 8
        %s1409 = scalar_lea.vmem [#allocation5], %s1408
        %s1410 = sand.u32 %s323, 1
        %s1411 = scalar_lea.sflag [#allocation7], %s1410
        %s1412 = sand.u32 %s323, 1
        %s1413 = smul.addr %s1412, 32
        %s1414 = scalar_lea.vmem [#allocation6], %s1413
        // Predicated region
        $region73: #{tpu_custom_call.1} parent=67 // pred_check
          %p1415 = pneg %p307
        $region74: #{tpu_custom_call.1} parent=67 // pred_check_branch
          %1417 = sbr.rel (%p1415) target = $region76
        $region75: #{tpu_custom_call.1} parent=67 // pred_region
          %s1419 = ssub.s32 128, 128
          %1420 = vsyncadd %s1406, %s1419
          %s1421 = smul.addr %s32, 128
          %s1422 = scalar_lea.hbm %s12, %s1421
          %s1424 = sshll.u32 %s1409, 4
          %s1425 = int_to_ptr.vmem [resolvable:$true] %s1424
          %1427 = dma.vmem_to_hbm [thread:$0]  %s1425, 128, %s1422, %s1406
        $region76: #{tpu_custom_call.1} parent=67 // pred_fallthru
          _
        // Predicated region
        $region77: #{tpu_custom_call.1} parent=67 // pred_check
          %p1428 = pneg %p333
        $region78: #{tpu_custom_call.1} parent=67 // pred_check_branch
          %1430 = sbr.rel (%p1428) target = $region80
        $region79: #{tpu_custom_call.1} parent=67 // pred_region
          %s1432 = ssub.s32 512, 512
          %1433 = vsyncadd %s1411, %s1432
          %s1434 = smul.addr %s32, 4
          %s1435 = smul.addr %s1434, 128
          %s1436 = scalar_lea.hbm %s13, %s1435
          %s1437 = sshll.u32 %s1414, 4
          %s1438 = int_to_ptr.vmem [resolvable:$true] %s1437
          %1443 = dma.vmem_to_hbm [thread:$0]  %s1438, 512, %s1436, %s1411, 128, 128, 8
        $region80: #{tpu_custom_call.1} parent=67 // pred_fallthru
          _
      $region68: #{tpu_custom_call.1} parent=5 // pred_fallthru
        _
      %p1444 = scmp.le.s32.totalorder 2, %s27
      // Predicated region
      $region81: #{tpu_custom_call.1} parent=5 // pred_check
        %p1445 = pneg %p1444
      $region82: #{tpu_custom_call.1} parent=5 // pred_check_branch
        %1447 = sbr.rel (%p1445) target = $region84
      $region83: #{tpu_custom_call.1} parent=5 // pred_region
        %s1448 = ssub.s32 %s27, 2
        // Predicated region
        $region85: #{tpu_custom_call.1} parent=83 // pred_check
          %p1449 = pneg %p313
        $region86: #{tpu_custom_call.1} parent=83 // pred_check_branch
          %1451 = sbr.rel (%p1449) target = $region88
        $region87: #{tpu_custom_call.1} parent=83 // pred_region
          %s1452 = sand.u32 %s298, 1
          %s1453 = scalar_lea.sflag [#allocation4], %s1452
          %s1454 = sand.u32 %s298, 1
          %s1455 = smul.addr %s1454, 8
          %s1456 = scalar_lea.vmem [#allocation5], %s1455
          %1457 = dma.done %s1453, 128
        $region88: #{tpu_custom_call.1} parent=83 // pred_fallthru
          _
        // Predicated region
        $region89: #{tpu_custom_call.1} parent=83 // pred_check
          %p1458 = pneg %p339
        $region90: #{tpu_custom_call.1} parent=83 // pred_check_branch
          %1460 = sbr.rel (%p1458) target = $region92
        $region91: #{tpu_custom_call.1} parent=83 // pred_region
          %s1461 = sand.u32 %s324, 1
          %s1462 = scalar_lea.sflag [#allocation7], %s1461
          %s1463 = sand.u32 %s324, 1
          %s1464 = smul.addr %s1463, 32
          %s1465 = scalar_lea.vmem [#allocation6], %s1464
          %1466 = dma.done %s1462, 512
        $region92: #{tpu_custom_call.1} parent=83 // pred_fallthru
          _
      $region84: #{tpu_custom_call.1} parent=5 // pred_fallthru
        _
    $region6: #{tpu_custom_call.1} parent=1 // loop_footer
      %s31 = sadd.s32 1, %s27
    $region7: #{tpu_custom_call.1} parent=1 // loop_footer_branch
      %26 = sbr.rel target = $region3
    $region8: #{tpu_custom_call.1} parent=1 // loop_exit
      _
    %1467 = vsyncpa [#allocation3], 1
    %s1468 = scalar_lea.sflag [#allocation3], 1
    %1469 = vsyncpa %s1468, 1
    %1470 = vsyncpa [#allocation4], 1
    %s1471 = scalar_lea.sflag [#allocation4], 1
    %1472 = vsyncpa %s1471, 1
    %1473 = vsyncpa [#allocation7], 1
    %s1474 = scalar_lea.sflag [#allocation7], 1
    %1475 = vsyncpa %s1474, 1

// kernel: tpu_custom_call.1
$region0: #{tpu_custom_call.1}
  #allocation0 [shape = 'u32[]', space=smem, size = 0x4, offset = 0x4, fixed_abs, tag = 'smem constant byte address 0x4 - core index']
  #allocation1 [shape = 'u32[144,128]{1,0:T(1,128)}', space=vmem, size = 0x12000, scoped, tag = 'internal scratch']
  %s0 = inlined_call_operand.vmem [shape: f32[2,8,32], index: 0, kind: input, shape index: {}]
  %s1 = inlined_call_operand.vmem [shape: bf16[32,96], index: 1, kind: input, shape index: {}]
  %s2 = inlined_call_operand.vmem [shape: bf16[4,8,32], index: 2, kind: input, shape index: {}]
  %s3 = inlined_call_operand.vmem [shape: f32[1,32], index: 3, kind: input, shape index: {}]
  %s4 = inlined_call_operand.hbm [shape: bf16[32,64], index: 4, kind: input, shape index: {}]
  %s5 = inlined_call_operand.vmem [shape: f32[1,64], index: 5, kind: input, shape index: {}]
  %s6 = inlined_call_operand.vmem [shape: bf16[64,32], index: 6, kind: input, shape index: {}]
  %s7 = inlined_call_operand.vmem [shape: f32[1,32], index: 7, kind: input, shape index: {}]
  %s8 = inlined_call_operand.vmem [shape: f32[1,32], index: 8, kind: input, shape index: {}]
  %s9 = inlined_call_operand.vmem [shape: f32[1,32], index: 9, kind: input, shape index: {}]
  %s10 = inlined_call_operand.vmem [shape: f32[1,32], index: 10, kind: input, shape index: {}]
  %s11 = inlined_call_operand.vmem [shape: f32[1,32], index: 11, kind: input, shape index: {}]
  %s12 = inlined_call_operand.hbm [shape: f32[2,8,32], index: 12, kind: output, shape index: {0}]
  %s13 = inlined_call_operand.hbm [shape: f32[2,4,8,8], index: 13, kind: output, shape index: {1}]
  %14 = xla_tuple %s12, %s13
  %s15 = sld [smem:[#allocation0]]
  $region93: #{tpu_custom_call.1} parent=0
    _
  %s17 = ssub.s32 1, %s15
  %s18 = scalar_select 0, %s17, %s15
  $region1: #{tpu_custom_call.1} parent=0
    #allocation2 [shape = 'u8[8192]{0}', space=vmem, size = 0x2000, scoped, tag = 'input window, operand 4, single buffered']
    #allocation3 [shape = 's32[2]{0}', space=sflag, size = 0x8, scoped, tag = 'scoped memory for tpu_custom_call.1']
    #allocation4 [shape = 's32[2]{0}', space=sflag, size = 0x8, scoped, tag = 'scoped memory for tpu_custom_call.1']
    #allocation5 [shape = 'u8[8192]{0}', space=vmem, size = 0x2000, scoped, tag = 'output window, operand 0']
    #allocation6 [shape = 'u8[32768]{0}', space=vmem, size = 0x8000, scoped, tag = 'output window, operand 1']
    #allocation7 [shape = 's32[2]{0}', space=sflag, size = 0x8, scoped, tag = 'scoped memory for tpu_custom_call.1']
    %19 = vsyncpa [#allocation3], 0
    %20 = vsyncpa [#allocation4], 0
    %s21 = scalar_lea.sflag [#allocation4], 1
    %22 = vsyncpa %s21, 0
    %23 = vsyncpa [#allocation7], 0
    %s24 = scalar_lea.sflag [#allocation7], 1
    %25 = vsyncpa %s24, 0
    loop: start=0, step=1, limit=4
    $region2: #{tpu_custom_call.1} parent=1 // loop_pre_header
      _
    $region3: #{tpu_custom_call.1} parent=1 // loop_header
      %s27 = sphi 0, %s31
      %p28 = scmp.ge.s32.totalorder %s27, 4
      %s37 = sphi 0, %s39
      %s40 = sphi 0, %s37
      %s41 = sphi 0, %s40
      %s57 = sphi 0, %s41
      %s61 = sphi 0, %s61
      %s63 = sphi 0, %s61
      %s64 = sphi 0, %s63
      %s78 = sphi 0, %s64
      %s82 = sphi 0, %s82
      %s84 = sphi 0, %s82
      %s85 = sphi 0, %s84
      %s99 = sphi 0, %s85
      %s103 = sphi 0, %s103
      %s105 = sphi 0, %s103
      %s106 = sphi 0, %s105
      %s120 = sphi 0, %s106
      %s124 = sphi 0, %s124
      %s126 = sphi 0, %s124
      %s127 = sphi 0, %s126
      %s141 = sphi 0, %s127
      %s145 = sphi 0, %s145
      %s147 = sphi 0, %s145
      %s148 = sphi 0, %s147
      %s162 = sphi 0, %s148
      %s166 = sphi 0, %s166
      %s168 = sphi 0, %s166
      %s169 = sphi 0, %s168
      %s183 = sphi 0, %s169
      %s187 = sphi 0, %s187
      %s189 = sphi 0, %s187
      %s190 = sphi 0, %s189
      %s204 = sphi 0, %s190
      %s208 = sphi 0, %s208
      %s210 = sphi 0, %s208
      %s211 = sphi 0, %s210
      %s225 = sphi 0, %s211
      %s229 = sphi 0, %s229
      %s231 = sphi 0, %s229
      %s232 = sphi 0, %s231
      %s246 = sphi 0, %s232
      %s250 = sphi 0, %s250
      %s252 = sphi 0, %s250
      %s253 = sphi 0, %s252
      %s267 = sphi 0, %s253
      %s271 = sphi 0, %s271
      %s273 = sphi 0, %s271
      %s274 = sphi 0, %s273
      %s288 = sphi 0, %s274
      %s294 = sphi 0, %s296
      %s297 = sphi 0, %s294
      %s298 = sphi 0, %s297
      %s314 = sphi 0, %s298
      %s320 = sphi 0, %s322
      %s323 = sphi 0, %s320
      %s324 = sphi 0, %s323
      %s340 = sphi 0, %s324
    $region4: #{tpu_custom_call.1} parent=1 // loop_header_branch
      %30 = sbr.rel (%p28) target = $region8
    $region5: #{tpu_custom_call.1} parent=1 // loop_body
      %s32 = ssub.s32 %s27, 1
      %s33 = ssub.s32 %s27, 2
      %s34 = sadd.s32 %s27, 1
      %s35 = ssub.s32 %s27, %s34
      %p36 = scmp.eq.s32.totalorder %s35, 0
      %s38 = sadd.s32 %s37, 1
      %s39 = scalar_select %p36, %s37, %s38
      %p42 = pneg %p36
      %p43 = scmp.eq.s32.totalorder %s27, 1
      %p44 = por %p42, %p43
      %p45 = scmp.ne.s32.totalorder %s37, %s40
      %p46 = scmp.eq.s32.totalorder %s27, 0
      %p47 = por %p45, %p46
      %p48 = scmp.ne.s32.totalorder %s37, %s40
      %p49 = scmp.eq.s32.totalorder %s32, 1
      %p50 = por %p48, %p49
      %p51 = scmp.ne.s32.totalorder %s40, %s41
      %p52 = scmp.eq.s32.totalorder %s32, 0
      %p53 = por %p51, %p52
      %p54 = scmp.ne.s32.totalorder %s40, %s41
      %p55 = scmp.eq.s32.totalorder %s33, 1
      %p56 = por %p54, %p55
      %p58 = scmp.ne.s32.totalorder %s41, %s57
      %p59 = scmp.eq.s32.totalorder %s33, 0
      %p60 = por %p58, %p59
      %s62 = sadd.s32 %s61, 1
      %p65 = scmp.eq.s32.totalorder %s27, 1
      %p66 = scmp.ne.s32.totalorder %s61, %s63
      %p67 = scmp.eq.s32.totalorder %s27, 0
      %p68 = por %p66, %p67
      %p69 = scmp.ne.s32.totalorder %s61, %s63
      %p70 = scmp.eq.s32.totalorder %s32, 1
      %p71 = por %p69, %p70
      %p72 = scmp.ne.s32.totalorder %s63, %s64
      %p73 = scmp.eq.s32.totalorder %s32, 0
      %p74 = por %p72, %p73
      %p75 = scmp.ne.s32.totalorder %s63, %s64
      %p76 = scmp.eq.s32.totalorder %s33, 1
      %p77 = por %p75, %p76
      %p79 = scmp.ne.s32.totalorder %s64, %s78
      %p80 = scmp.eq.s32.totalorder %s33, 0
      %p81 = por %p79, %p80
      %s83 = sadd.s32 %s82, 1
      %p86 = scmp.eq.s32.totalorder %s27, 1
      %p87 = scmp.ne.s32.totalorder %s82, %s84
      %p88 = scmp.eq.s32.totalorder %s27, 0
      %p89 = por %p87, %p88
      %p90 = scmp.ne.s32.totalorder %s82, %s84
      %p91 = scmp.eq.s32.totalorder %s32, 1
      %p92 = por %p90, %p91
      %p93 = scmp.ne.s32.totalorder %s84, %s85
      %p94 = scmp.eq.s32.totalorder %s32, 0
      %p95 = por %p93, %p94
      %p96 = scmp.ne.s32.totalorder %s84, %s85
      %p97 = scmp.eq.s32.totalorder %s33, 1
      %p98 = por %p96, %p97
      %p100 = scmp.ne.s32.totalorder %s85, %s99
      %p101 = scmp.eq.s32.totalorder %s33, 0
      %p102 = por %p100, %p101
      %s104 = sadd.s32 %s103, 1
      %p107 = scmp.eq.s32.totalorder %s27, 1
      %p108 = scmp.ne.s32.totalorder %s103, %s105
      %p109 = scmp.eq.s32.totalorder %s27, 0
      %p110 = por %p108, %p109
      %p111 = scmp.ne.s32.totalorder %s103, %s105
      %p112 = scmp.eq.s32.totalorder %s32, 1
      %p113 = por %p111, %p112
      %p114 = scmp.ne.s32.totalorder %s105, %s106
      %p115 = scmp.eq.s32.totalorder %s32, 0
      %p116 = por %p114, %p115
      %p117 = scmp.ne.s32.totalorder %s105, %s106
      %p118 = scmp.eq.s32.totalorder %s33, 1
      %p119 = por %p117, %p118
      %p121 = scmp.ne.s32.totalorder %s106, %s120
      %p122 = scmp.eq.s32.totalorder %s33, 0
      %p123 = por %p121, %p122
      %s125 = sadd.s32 %s124, 1
      %p128 = scmp.eq.s32.totalorder %s27, 1
      %p129 = scmp.ne.s32.totalorder %s124, %s126
      %p130 = scmp.eq.s32.totalorder %s27, 0
      %p131 = por %p129, %p130
      %p132 = scmp.ne.s32.totalorder %s124, %s126
      %p133 = scmp.eq.s32.totalorder %s32, 1
      %p134 = por %p132, %p133
      %p135 = scmp.ne.s32.totalorder %s126, %s127
      %p136 = scmp.eq.s32.totalorder %s32, 0
      %p137 = por %p135, %p136
      %p138 = scmp.ne.s32.totalorder %s126, %s127
      %p139 = scmp.eq.s32.totalorder %s33, 1
      %p140 = por %p138, %p139
      %p142 = scmp.ne.s32.totalorder %s127, %s141
      %p143 = scmp.eq.s32.totalorder %s33, 0
      %p144 = por %p142, %p143
      %s146 = sadd.s32 %s145, 1
      %p149 = scmp.eq.s32.totalorder %s27, 1
      %p150 = scmp.ne.s32.totalorder %s145, %s147
      %p151 = scmp.eq.s32.totalorder %s27, 0
      %p152 = por %p150, %p151
      %p153 = scmp.ne.s32.totalorder %s145, %s147
      %p154 = scmp.eq.s32.totalorder %s32, 1
      %p155 = por %p153, %p154
      %p156 = scmp.ne.s32.totalorder %s147, %s148
      %p157 = scmp.eq.s32.totalorder %s32, 0
      %p158 = por %p156, %p157
      %p159 = scmp.ne.s32.totalorder %s147, %s148
      %p160 = scmp.eq.s32.totalorder %s33, 1
      %p161 = por %p159, %p160
      %p163 = scmp.ne.s32.totalorder %s148, %s162
      %p164 = scmp.eq.s32.totalorder %s33, 0
      %p165 = por %p163, %p164
      %s167 = sadd.s32 %s166, 1
      %p170 = scmp.eq.s32.totalorder %s27, 1
      %p171 = scmp.ne.s32.totalorder %s166, %s168
      %p172 = scmp.eq.s32.totalorder %s27, 0
      %p173 = por %p171, %p172
      %p174 = scmp.ne.s32.totalorder %s166, %s168
      %p175 = scmp.eq.s32.totalorder %s32, 1
      %p176 = por %p174, %p175
      %p177 = scmp.ne.s32.totalorder %s168, %s169
      %p178 = scmp.eq.s32.totalorder %s32, 0
      %p179 = por %p177, %p178
      %p180 = scmp.ne.s32.totalorder %s168, %s169
      %p181 = scmp.eq.s32.totalorder %s33, 1
      %p182 = por %p180, %p181
      %p184 = scmp.ne.s32.totalorder %s169, %s183
      %p185 = scmp.eq.s32.totalorder %s33, 0
      %p186 = por %p184, %p185
      %s188 = sadd.s32 %s187, 1
      %p191 = scmp.eq.s32.totalorder %s27, 1
      %p192 = scmp.ne.s32.totalorder %s187, %s189
      %p193 = scmp.eq.s32.totalorder %s27, 0
      %p194 = por %p192, %p193
      %p195 = scmp.ne.s32.totalorder %s187, %s189
      %p196 = scmp.eq.s32.totalorder %s32, 1
      %p197 = por %p195, %p196
      %p198 = scmp.ne.s32.totalorder %s189, %s190
      %p199 = scmp.eq.s32.totalorder %s32, 0
      %p200 = por %p198, %p199
      %p201 = scmp.ne.s32.totalorder %s189, %s190
      %p202 = scmp.eq.s32.totalorder %s33, 1
      %p203 = por %p201, %p202
      %p205 = scmp.ne.s32.totalorder %s190, %s204
      %p206 = scmp.eq.s32.totalorder %s33, 0
      %p207 = por %p205, %p206
      %s209 = sadd.s32 %s208, 1
      %p212 = scmp.eq.s32.totalorder %s27, 1
      %p213 = scmp.ne.s32.totalorder %s208, %s210
      %p214 = scmp.eq.s32.totalorder %s27, 0
      %p215 = por %p213, %p214
      %p216 = scmp.ne.s32.totalorder %s208, %s210
      %p217 = scmp.eq.s32.totalorder %s32, 1
      %p218 = por %p216, %p217
      %p219 = scmp.ne.s32.totalorder %s210, %s211
      %p220 = scmp.eq.s32.totalorder %s32, 0
      %p221 = por %p219, %p220
      %p222 = scmp.ne.s32.totalorder %s210, %s211
      %p223 = scmp.eq.s32.totalorder %s33, 1
      %p224 = por %p222, %p223
      %p226 = scmp.ne.s32.totalorder %s211, %s225
      %p227 = scmp.eq.s32.totalorder %s33, 0
      %p228 = por %p226, %p227
      %s230 = sadd.s32 %s229, 1
      %p233 = scmp.eq.s32.totalorder %s27, 1
      %p234 = scmp.ne.s32.totalorder %s229, %s231
      %p235 = scmp.eq.s32.totalorder %s27, 0
      %p236 = por %p234, %p235
      %p237 = scmp.ne.s32.totalorder %s229, %s231
      %p238 = scmp.eq.s32.totalorder %s32, 1
      %p239 = por %p237, %p238
      %p240 = scmp.ne.s32.totalorder %s231, %s232
      %p241 = scmp.eq.s32.totalorder %s32, 0
      %p242 = por %p240, %p241
      %p243 = scmp.ne.s32.totalorder %s231, %s232
      %p244 = scmp.eq.s32.totalorder %s33, 1
      %p245 = por %p243, %p244
      %p247 = scmp.ne.s32.totalorder %s232, %s246
      %p248 = scmp.eq.s32.totalorder %s33, 0
      %p249 = por %p247, %p248
      %s251 = sadd.s32 %s250, 1
      %p254 = scmp.eq.s32.totalorder %s27, 1
      %p255 = scmp.ne.s32.totalorder %s250, %s252
      %p256 = scmp.eq.s32.totalorder %s27, 0
      %p257 = por %p255, %p256
      %p258 = scmp.ne.s32.totalorder %s250, %s252
      %p259 = scmp.eq.s32.totalorder %s32, 1
      %p260 = por %p258, %p259
      %p261 = scmp.ne.s32.totalorder %s252, %s253
      %p262 = scmp.eq.s32.totalorder %s32, 0
      %p263 = por %p261, %p262
      %p264 = scmp.ne.s32.totalorder %s252, %s253
      %p265 = scmp.eq.s32.totalorder %s33, 1
      %p266 = por %p264, %p265
      %p268 = scmp.ne.s32.totalorder %s253, %s267
      %p269 = scmp.eq.s32.totalorder %s33, 0
      %p270 = por %p268, %p269
      %s272 = sadd.s32 %s271, 1
      %p275 = scmp.eq.s32.totalorder %s27, 1
      %p276 = scmp.ne.s32.totalorder %s271, %s273
      %p277 = scmp.eq.s32.totalorder %s27, 0
      %p278 = por %p276, %p277
      %p279 = scmp.ne.s32.totalorder %s271, %s273
      %p280 = scmp.eq.s32.totalorder %s32, 1
      %p281 = por %p279, %p280
      %p282 = scmp.ne.s32.totalorder %s273, %s274
      %p283 = scmp.eq.s32.totalorder %s32, 0
      %p284 = por %p282, %p283
      %p285 = scmp.ne.s32.totalorder %s273, %s274
      %p286 = scmp.eq.s32.totalorder %s33, 1
      %p287 = por %p285, %p286
      %p289 = scmp.ne.s32.totalorder %s274, %s288
      %p290 = scmp.eq.s32.totalorder %s33, 0
      %p291 = por %p289, %p290
      %s292 = ssub.s32 %s27, %s34
      %p293 = scmp.eq.s32.totalorder %s292, 0
      %s295 = sadd.s32 %s294, 1
      %s296 = scalar_select %p293, %s294, %s295
      %p299 = pneg %p293
      %p300 = scmp.eq.s32.totalorder %s27, 1
      %p301 = por %p299, %p300
      %p302 = scmp.ne.s32.totalorder %s294, %s297
      %p303 = scmp.eq.s32.totalorder %s27, 0
      %p304 = por %p302, %p303
      %p305 = scmp.ne.s32.totalorder %s294, %s297
      %p306 = scmp.eq.s32.totalorder %s32, 1
      %p307 = por %p305, %p306
      %p308 = scmp.ne.s32.totalorder %s297, %s298
      %p309 = scmp.eq.s32.totalorder %s32, 0
      %p310 = por %p308, %p309
      %p311 = scmp.ne.s32.totalorder %s297, %s298
      %p312 = scmp.eq.s32.totalorder %s33, 1
      %p313 = por %p311, %p312
      %p315 = scmp.ne.s32.totalorder %s298, %s314
      %p316 = scmp.eq.s32.totalorder %s33, 0
      %p317 = por %p315, %p316
      %s318 = ssub.s32 %s27, %s34
      %p319 = scmp.eq.s32.totalorder %s318, 0
      %s321 = sadd.s32 %s320, 1
      %s322 = scalar_select %p319, %s320, %s321
      %p325 = pneg %p319
      %p326 = scmp.eq.s32.totalorder %s27, 1
      %p327 = por %p325, %p326
      %p328 = scmp.ne.s32.totalorder %s320, %s323
      %p329 = scmp.eq.s32.totalorder %s27, 0
      %p330 = por %p328, %p329
      %p331 = scmp.ne.s32.totalorder %s320, %s323
      %p332 = scmp.eq.s32.totalorder %s32, 1
      %p333 = por %p331, %p332
      %p334 = scmp.ne.s32.totalorder %s323, %s324
      %p335 = scmp.eq.s32.totalorder %s32, 0
      %p336 = por %p334, %p335
      %p337 = scmp.ne.s32.totalorder %s323, %s324
      %p338 = scmp.eq.s32.totalorder %s33, 1
      %p339 = por %p337, %p338
      %p341 = scmp.ne.s32.totalorder %s324, %s340
      %p342 = scmp.eq.s32.totalorder %s33, 0
      %p343 = por %p341, %p342
      %p344 = scmp.le.s32.totalorder 1, %s27
      %p345 = scmp.lt.s32.totalorder %s27, 3
      %p346 = pnand %p344, %p345
      %p347 = pneg %p346
      // Predicated region
      $region9: #{tpu_custom_call.1} parent=5 // pred_check
        _
      $region10: #{tpu_custom_call.1} parent=5 // pred_check_branch
        %349 = sbr.rel (%p346) target = $region12
      $region11: #{tpu_custom_call.1} parent=5 // pred_region
        %s350 = ssub.s32 %s27, 1
        // Predicated region
        $region13: #{tpu_custom_call.1} parent=11 // pred_check
          %p351 = pneg %p74
        $region14: #{tpu_custom_call.1} parent=11 // pred_check_branch
          %353 = sbr.rel (%p351) target = $region16
        $region15: #{tpu_custom_call.1} parent=11 // pred_region
          _
        $region16: #{tpu_custom_call.1} parent=11 // pred_fallthru
          _
        // Predicated region
        $region17: #{tpu_custom_call.1} parent=11 // pred_check
          %p354 = pneg %p95
        $region18: #{tpu_custom_call.1} parent=11 // pred_check_branch
          %356 = sbr.rel (%p354) target = $region20
        $region19: #{tpu_custom_call.1} parent=11 // pred_region
          _
        $region20: #{tpu_custom_call.1} parent=11 // pred_fallthru
          _
        // Predicated region
        $region21: #{tpu_custom_call.1} parent=11 // pred_check
          %p357 = pneg %p116
        $region22: #{tpu_custom_call.1} parent=11 // pred_check_branch
          %359 = sbr.rel (%p357) target = $region24
        $region23: #{tpu_custom_call.1} parent=11 // pred_region
          _
        $region24: #{tpu_custom_call.1} parent=11 // pred_fallthru
          _
        // Predicated region
        $region25: #{tpu_custom_call.1} parent=11 // pred_check
          %p360 = pneg %p137
        $region26: #{tpu_custom_call.1} parent=11 // pred_check_branch
          %362 = sbr.rel (%p360) target = $region28
        $region27: #{tpu_custom_call.1} parent=11 // pred_region
          %s364 = ssub.s32 256, 256
          %365 = vsyncadd [#allocation3], %s364
          %s366 = sshll.u32 [#allocation2], 4
          %s367 = int_to_ptr.vmem [resolvable:$true] %s366
          %372 = dma.hbm_to_vmem [thread:$0]  %s4, 256, %s367, [#allocation3], 64, 64, 4
        $region28: #{tpu_custom_call.1} parent=11 // pred_fallthru
          _
        // Predicated region
        $region29: #{tpu_custom_call.1} parent=11 // pred_check
          %p373 = pneg %p158
        $region30: #{tpu_custom_call.1} parent=11 // pred_check_branch
          %375 = sbr.rel (%p373) target = $region32
        $region31: #{tpu_custom_call.1} parent=11 // pred_region
          _
        $region32: #{tpu_custom_call.1} parent=11 // pred_fallthru
          _
        // Predicated region
        $region33: #{tpu_custom_call.1} parent=11 // pred_check
          %p376 = pneg %p179
        $region34: #{tpu_custom_call.1} parent=11 // pred_check_branch
          %378 = sbr.rel (%p376) target = $region36
        $region35: #{tpu_custom_call.1} parent=11 // pred_region
          _
        $region36: #{tpu_custom_call.1} parent=11 // pred_fallthru
          _
        // Predicated region
        $region37: #{tpu_custom_call.1} parent=11 // pred_check
          %p379 = pneg %p200
        $region38: #{tpu_custom_call.1} parent=11 // pred_check_branch
          %381 = sbr.rel (%p379) target = $region40
        $region39: #{tpu_custom_call.1} parent=11 // pred_region
          _
        $region40: #{tpu_custom_call.1} parent=11 // pred_fallthru
          _
        // Predicated region
        $region41: #{tpu_custom_call.1} parent=11 // pred_check
          %p382 = pneg %p221
        $region42: #{tpu_custom_call.1} parent=11 // pred_check_branch
          %384 = sbr.rel (%p382) target = $region44
        $region43: #{tpu_custom_call.1} parent=11 // pred_region
          _
        $region44: #{tpu_custom_call.1} parent=11 // pred_fallthru
          _
        // Predicated region
        $region45: #{tpu_custom_call.1} parent=11 // pred_check
          %p385 = pneg %p242
        $region46: #{tpu_custom_call.1} parent=11 // pred_check_branch
          %387 = sbr.rel (%p385) target = $region48
        $region47: #{tpu_custom_call.1} parent=11 // pred_region
          _
        $region48: #{tpu_custom_call.1} parent=11 // pred_fallthru
          _
        // Predicated region
        $region49: #{tpu_custom_call.1} parent=11 // pred_check
          %p388 = pneg %p263
        $region50: #{tpu_custom_call.1} parent=11 // pred_check_branch
          %390 = sbr.rel (%p388) target = $region52
        $region51: #{tpu_custom_call.1} parent=11 // pred_region
          _
        $region52: #{tpu_custom_call.1} parent=11 // pred_fallthru
          _
        // Predicated region
        $region53: #{tpu_custom_call.1} parent=11 // pred_check
          %p391 = pneg %p284
        $region54: #{tpu_custom_call.1} parent=11 // pred_check_branch
          %393 = sbr.rel (%p391) target = $region56
        $region55: #{tpu_custom_call.1} parent=11 // pred_region
          _
        $region56: #{tpu_custom_call.1} parent=11 // pred_fallthru
          _
      $region12: #{tpu_custom_call.1} parent=5 // pred_fallthru
        _
      %p394 = scmp.lt.s32.totalorder %s27, 2
      // Predicated region
      $region57: #{tpu_custom_call.1} parent=5 // pred_check
        %p395 = pneg %p394
      $region58: #{tpu_custom_call.1} parent=5 // pred_check_branch
        %397 = sbr.rel (%p395) target = $region60
      $region59: #{tpu_custom_call.1} parent=5 // pred_region
        // Predicated region
        $region61: #{tpu_custom_call.1} parent=59 // pred_check
          %p398 = pneg %p47
        $region62: #{tpu_custom_call.1} parent=59 // pred_check_branch
          %400 = sbr.rel (%p398) target = $region64
        $region63: #{tpu_custom_call.1} parent=59 // pred_region
          %p401 = scmp.lt.s32.totalorder %s27, 1
          %s402 = scalar_select %p401, %s27, 1
          %s403 = smul.addr %s402, 8
          %s404 = scalar_lea.vmem %s0, %s403
        $region64: #{tpu_custom_call.1} parent=59 // pred_fallthru
          _
      $region60: #{tpu_custom_call.1} parent=5 // pred_fallthru
        _
      %p405 = scmp.le.s32.totalorder 1, %s27
      %p406 = scmp.lt.s32.totalorder %s27, 3
      %p407 = pnand %p405, %p406
      %p408 = pneg %p407
      // Predicated region
      $region65: #{tpu_custom_call.1} parent=5 // pred_check
        _
      $region66: #{tpu_custom_call.1} parent=5 // pred_check_branch
        %410 = sbr.rel (%p407) target = $region68
      $region67: #{tpu_custom_call.1} parent=5 // pred_region
        %s411 = ssub.s32 %s27, 1
        // Predicated region
        $region69: #{tpu_custom_call.1} parent=67 // pred_check
          %p412 = pneg %p137
        $region70: #{tpu_custom_call.1} parent=67 // pred_check_branch
          %414 = sbr.rel (%p412) target = $region72
        $region71: #{tpu_custom_call.1} parent=67 // pred_region
          %415 = dma.done [#allocation3], 256
        $region72: #{tpu_custom_call.1} parent=67 // pred_fallthru
          _
        %p416 = scmp.lt.s32.totalorder %s32, 1
        %s417 = scalar_select %p416, %s32, 1
        %s418 = smul.addr %s417, 8
        %s419 = scalar_lea.vmem %s0, %s418
        %p420 = pneg %p53
        %p421 = pneg %p50
        %p422 = pneg %p74
        %p423 = pneg %p71
        %p424 = pneg %p95
        %p425 = pneg %p92
        %p426 = pneg %p116
        %p427 = pneg %p113
        %p428 = pneg %p137
        %p429 = pneg %p134
        %p430 = pneg %p158
        %p431 = pneg %p155
        %p432 = pneg %p179
        %p433 = pneg %p176
        %p434 = pneg %p200
        %p435 = pneg %p197
        %p436 = pneg %p221
        %p437 = pneg %p218
        %p438 = pneg %p242
        %p439 = pneg %p239
        %p440 = pneg %p263
        %p441 = pneg %p260
        %p442 = pneg %p284
        %p443 = pneg %p281
        %p444 = pneg %p310
        %p445 = pneg %p307
        %s446 = sand.u32 %s297, 1
        %s447 = scalar_lea.sflag [#allocation4], %s446
        %s448 = sand.u32 %s297, 1
        %s449 = smul.addr %s448, 8
        %s450 = scalar_lea.vmem [#allocation5], %s449
        %p451 = pneg %p336
        %p452 = pneg %p333
        %s453 = sand.u32 %s323, 1
        %s454 = scalar_lea.sflag [#allocation7], %s453
        %s455 = sand.u32 %s323, 1
        %s456 = smul.addr %s455, 32
        %s457 = scalar_lea.vmem [#allocation6], %s456
        %p458 = scmp.lt.s32.totalorder %s32, 1
        %s459 = scalar_select %p458, %s32, 1
        %s460 = smul.addr %s459, 8
        %s461 = scalar_lea.vmem %s0, %s460
        %v463 = vld [vmem:[%s461] sm:$0xff]
        %v464 = vpack.c.bf16 %v463, %v463
        %v465 = vld [vmem:[%s1] sm:$0xf]
        %v466 = vld [vmem:[%s1 + $0x4] sm:$0xf]
        %v467 = vld [vmem:[%s1 + $0x8] sm:$0xf]
        %v468 = vld [vmem:[%s1 + $0xc] sm:$0xf]
        %v473 = vunpack.c.l.b16 %v465
        %v474 = vunpack.c.l.b16 %v466
        %v475 = vunpack.c.l.b16 %v467
        %v476 = vunpack.c.l.b16 %v468
        %v477 = vpack.c.b16 %v474, %v473
        %v478 = vpack.c.b16 %v476, %v475
        %vm481 = vcmask 261120
        %v483 = vsel %vm481, %v464, 0
        %485 = vmatprep.subr.bf16.mxu0 0
        %486 = vmatpush1.bf16.msra.mxu0 0
        %487 = vmatprep.subr.bf16.mxu0 0
        %488 = vmatpush1.bf16.msra.mxu0 0
        %489 = vmatprep.subr.bf16.mxu0 0
        %490 = vmatpush1.bf16.msra.mxu0 0
        %491 = vmatprep.subr.bf16.mxu0 0
        %492 = vmatpush1.bf16.msra.mxu0 0
        %493 = vmatprep.subr.bf16.mxu0 0
        %494 = vmatpush1.bf16.msra.mxu0 0
        %495 = vmatprep.subr.bf16.mxu0 0
        %496 = vmatpush1.bf16.msra.mxu0 0
        %497 = vmatprep.subr.bf16.mxu0 0
        %498 = vmatpush1.bf16.msra.mxu0 %v478
        %499 = vmatprep.subr.bf16.mxu0 0
        %500 = vmatpush1.bf16.msra.mxu0 %v477
        %501 = vmatprep.subr.bf16.mxu0 0
        %502 = vmatpush2.bf16.msra.mxu0 0
        %503 = vmatprep.subr.bf16.mxu0 0
        %504 = vmatpush2.bf16.msra.mxu0 0
        %505 = vmatprep.subr.bf16.mxu0 0
        %506 = vmatpush2.bf16.msra.mxu0 0
        %507 = vmatprep.subr.bf16.mxu0 0
        %508 = vmatpush2.bf16.msra.mxu0 0
        %509 = vmatprep.subr.bf16.mxu0 0
        %510 = vmatpush2.bf16.msra.mxu0 0
        %511 = vmatprep.subr.bf16.mxu0 0
        %512 = vmatpush2.bf16.msra.mxu0 0
        %513 = vmatprep.subr.bf16.mxu0 0
        %514 = vmatpush2.bf16.msra.mxu0 0
        %515 = vmatprep.subr.bf16.mxu0 0
        %516 = vmatpush2.bf16.msra.mxu0 0
        %517 = vmatprep.mubr.bf16.mxu0 0
        %518 = vmatmul.mubr.bf16.gmra.mxu0 %v483
        %v519 = vpop.f32.mrf.mxu0
        %v520 = vadd.f32 0.0, %v519
        %v521 = vpop.f32.mrf.mxu0
        %v522 = vpop.f32.mrf.mxu0
        %v523 = vpop.f32.mrf.mxu0
        %524 = vdwg.mxu0
        %v525 = vmul.f32 %v520, 0.35355338
        %v526 = vpack.c.bf16 %v525, %v525
        %v527 = vpack.c.bf16 %v520, %v520
        %529 = vrot.lane.b32.xlu0 %v526, 120
        %v530 = vpop.permute.xlu0 %529
        %531 = vrot.lane.b32.xlu0 %v526, 112
        %v532 = vpop.permute.xlu0 %531
        %533 = vrot.lane.b32.xlu0 %v526, 104
        %v534 = vpop.permute.xlu0 %533
        %536 = vrot.lane.b32.xlu0 %v527, 120
        %v537 = vpop.permute.xlu0 %536
        %538 = vrot.lane.b32.xlu0 %v527, 112
        %v539 = vpop.permute.xlu0 %538
        %540 = vrot.lane.b32.xlu0 %v527, 104
        %v541 = vpop.permute.xlu0 %540
        %542 = vrot.lane.b32.xlu0 %v527, 96
        %v543 = vpop.permute.xlu0 %542
        %vm544 = vcmask 64512
        %v546 = vsel %vm544, %v526, 0
        %v549 = vsel %vm544, %v543, 0
        %551 = vmatprep.subr.bf16.mxu0 0
        %552 = vmatpush1.bf16.xpose.msra.mxu0 0
        %553 = vmatprep.subr.bf16.mxu0 0
        %554 = vmatpush1.bf16.xpose.msra.mxu0 0
        %555 = vmatprep.subr.bf16.mxu0 0
        %556 = vmatpush1.bf16.xpose.msra.mxu0 0
        %557 = vmatprep.subr.bf16.mxu0 0
        %558 = vmatpush1.bf16.xpose.msra.mxu0 0
        %559 = vmatprep.subr.bf16.mxu0 0
        %560 = vmatpush1.bf16.xpose.msra.mxu0 0
        %561 = vmatprep.subr.bf16.mxu0 0
        %562 = vmatpush1.bf16.xpose.msra.mxu0 0
        %563 = vmatprep.subr.bf16.mxu0 0
        %564 = vmatpush1.bf16.xpose.msra.mxu0 0
        %565 = vmatprep.subr.bf16.mxu0 0
        %566 = vmatpush1.bf16.xpose.msra.mxu0 %v549
        %567 = vmatprep.subr.bf16.mxu0 0
        %568 = vmatpush2.bf16.xpose.msra.mxu0 0
        %569 = vmatprep.subr.bf16.mxu0 0
        %570 = vmatpush2.bf16.xpose.msra.mxu0 0
        %571 = vmatprep.subr.bf16.mxu0 0
        %572 = vmatpush2.bf16.xpose.msra.mxu0 0
        %573 = vmatprep.subr.bf16.mxu0 0
        %574 = vmatpush2.bf16.xpose.msra.mxu0 0
        %575 = vmatprep.subr.bf16.mxu0 0
        %576 = vmatpush2.bf16.xpose.msra.mxu0 0
        %577 = vmatprep.subr.bf16.mxu0 0
        %578 = vmatpush2.bf16.xpose.msra.mxu0 0
        %579 = vmatprep.subr.bf16.mxu0 0
        %580 = vmatpush2.bf16.xpose.msra.mxu0 0
        %581 = vmatprep.subr.bf16.mxu0 0
        %582 = vmatpush2.bf16.xpose.msra.mxu0 0
        %583 = vmatprep.mubr.bf16.mxu0 0
        %584 = vmatmul.mubr.bf16.gmra.mxu0 %v546
        %v585 = vpop.f32.mrf.mxu0
        %v586 = vadd.f32 0.0, %v585
        %v587 = vpop.f32.mrf.mxu0
        %v588 = vpop.f32.mrf.mxu0
        %v589 = vpop.f32.mrf.mxu0
        %590 = vdwg.mxu0
        %591 = vrot.lane.b32.xlu0 %v537, 96
        %v592 = vpop.permute.xlu0 %591
        %v594 = vsel %vm544, %v530, 0
        %v597 = vsel %vm544, %v592, 0
        %599 = vmatprep.subr.bf16.mxu0 0
        %600 = vmatpush1.bf16.xpose.msra.mxu0 0
        %601 = vmatprep.subr.bf16.mxu0 0
        %602 = vmatpush1.bf16.xpose.msra.mxu0 0
        %603 = vmatprep.subr.bf16.mxu0 0
        %604 = vmatpush1.bf16.xpose.msra.mxu0 0
        %605 = vmatprep.subr.bf16.mxu0 0
        %606 = vmatpush1.bf16.xpose.msra.mxu0 0
        %607 = vmatprep.subr.bf16.mxu0 0
        %608 = vmatpush1.bf16.xpose.msra.mxu0 0
        %609 = vmatprep.subr.bf16.mxu0 0
        %610 = vmatpush1.bf16.xpose.msra.mxu0 0
        %611 = vmatprep.subr.bf16.mxu0 0
        %612 = vmatpush1.bf16.xpose.msra.mxu0 0
        %613 = vmatprep.subr.bf16.mxu0 0
        %614 = vmatpush1.bf16.xpose.msra.mxu0 %v597
        %615 = vmatprep.subr.bf16.mxu0 0
        %616 = vmatpush2.bf16.xpose.msra.mxu0 0
        %617 = vmatprep.subr.bf16.mxu0 0
        %618 = vmatpush2.bf16.xpose.msra.mxu0 0
        %619 = vmatprep.subr.bf16.mxu0 0
        %620 = vmatpush2.bf16.xpose.msra.mxu0 0
        %621 = vmatprep.subr.bf16.mxu0 0
        %622 = vmatpush2.bf16.xpose.msra.mxu0 0
        %623 = vmatprep.subr.bf16.mxu0 0
        %624 = vmatpush2.bf16.xpose.msra.mxu0 0
        %625 = vmatprep.subr.bf16.mxu0 0
        %626 = vmatpush2.bf16.xpose.msra.mxu0 0
        %627 = vmatprep.subr.bf16.mxu0 0
        %628 = vmatpush2.bf16.xpose.msra.mxu0 0
        %629 = vmatprep.subr.bf16.mxu0 0
        %630 = vmatpush2.bf16.xpose.msra.mxu0 0
        %631 = vmatprep.mubr.bf16.mxu0 0
        %632 = vmatmul.mubr.bf16.gmra.mxu0 %v594
        %v633 = vpop.f32.mrf.mxu0
        %v634 = vadd.f32 0.0, %v633
        %v635 = vpop.f32.mrf.mxu0
        %v636 = vpop.f32.mrf.mxu0
        %v637 = vpop.f32.mrf.mxu0
        %638 = vdwg.mxu0
        %639 = vrot.lane.b32.xlu0 %v539, 96
        %v640 = vpop.permute.xlu0 %639
        %v642 = vsel %vm544, %v532, 0
        %v645 = vsel %vm544, %v640, 0
        %647 = vmatprep.subr.bf16.mxu0 0
        %648 = vmatpush1.bf16.xpose.msra.mxu0 0
        %649 = vmatprep.subr.bf16.mxu0 0
        %650 = vmatpush1.bf16.xpose.msra.mxu0 0
        %651 = vmatprep.subr.bf16.mxu0 0
        %652 = vmatpush1.bf16.xpose.msra.mxu0 0
        %653 = vmatprep.subr.bf16.mxu0 0
        %654 = vmatpush1.bf16.xpose.msra.mxu0 0
        %655 = vmatprep.subr.bf16.mxu0 0
        %656 = vmatpush1.bf16.xpose.msra.mxu0 0
        %657 = vmatprep.subr.bf16.mxu0 0
        %658 = vmatpush1.bf16.xpose.msra.mxu0 0
        %659 = vmatprep.subr.bf16.mxu0 0
        %660 = vmatpush1.bf16.xpose.msra.mxu0 0
        %661 = vmatprep.subr.bf16.mxu0 0
        %662 = vmatpush1.bf16.xpose.msra.mxu0 %v645
        %663 = vmatprep.subr.bf16.mxu0 0
        %664 = vmatpush2.bf16.xpose.msra.mxu0 0
        %665 = vmatprep.subr.bf16.mxu0 0
        %666 = vmatpush2.bf16.xpose.msra.mxu0 0
        %667 = vmatprep.subr.bf16.mxu0 0
        %668 = vmatpush2.bf16.xpose.msra.mxu0 0
        %669 = vmatprep.subr.bf16.mxu0 0
        %670 = vmatpush2.bf16.xpose.msra.mxu0 0
        %671 = vmatprep.subr.bf16.mxu0 0
        %672 = vmatpush2.bf16.xpose.msra.mxu0 0
        %673 = vmatprep.subr.bf16.mxu0 0
        %674 = vmatpush2.bf16.xpose.msra.mxu0 0
        %675 = vmatprep.subr.bf16.mxu0 0
        %676 = vmatpush2.bf16.xpose.msra.mxu0 0
        %677 = vmatprep.subr.bf16.mxu0 0
        %678 = vmatpush2.bf16.xpose.msra.mxu0 0
        %679 = vmatprep.mubr.bf16.mxu0 0
        %680 = vmatmul.mubr.bf16.gmra.mxu0 %v642
        %v681 = vpop.f32.mrf.mxu0
        %v682 = vadd.f32 0.0, %v681
        %v683 = vpop.f32.mrf.mxu0
        %v684 = vpop.f32.mrf.mxu0
        %v685 = vpop.f32.mrf.mxu0
        %686 = vdwg.mxu0
        %687 = vrot.lane.b32.xlu0 %v541, 96
        %v688 = vpop.permute.xlu0 %687
        %v690 = vsel %vm544, %v534, 0
        %v693 = vsel %vm544, %v688, 0
        %695 = vmatprep.subr.bf16.mxu0 0
        %696 = vmatpush1.bf16.xpose.msra.mxu0 0
        %697 = vmatprep.subr.bf16.mxu0 0
        %698 = vmatpush1.bf16.xpose.msra.mxu0 0
        %699 = vmatprep.subr.bf16.mxu0 0
        %700 = vmatpush1.bf16.xpose.msra.mxu0 0
        %701 = vmatprep.subr.bf16.mxu0 0
        %702 = vmatpush1.bf16.xpose.msra.mxu0 0
        %703 = vmatprep.subr.bf16.mxu0 0
        %704 = vmatpush1.bf16.xpose.msra.mxu0 0
        %705 = vmatprep.subr.bf16.mxu0 0
        %706 = vmatpush1.bf16.xpose.msra.mxu0 0
        %707 = vmatprep.subr.bf16.mxu0 0
        %708 = vmatpush1.bf16.xpose.msra.mxu0 0
        %709 = vmatprep.subr.bf16.mxu0 0
        %710 = vmatpush1.bf16.xpose.msra.mxu0 %v693
        %711 = vmatprep.subr.bf16.mxu0 0
        %712 = vmatpush2.bf16.xpose.msra.mxu0 0
        %713 = vmatprep.subr.bf16.mxu0 0
        %714 = vmatpush2.bf16.xpose.msra.mxu0 0
        %715 = vmatprep.subr.bf16.mxu0 0
        %716 = vmatpush2.bf16.xpose.msra.mxu0 0
        %717 = vmatprep.subr.bf16.mxu0 0
        %718 = vmatpush2.bf16.xpose.msra.mxu0 0
        %719 = vmatprep.subr.bf16.mxu0 0
        %720 = vmatpush2.bf16.xpose.msra.mxu0 0
        %721 = vmatprep.subr.bf16.mxu0 0
        %722 = vmatpush2.bf16.xpose.msra.mxu0 0
        %723 = vmatprep.subr.bf16.mxu0 0
        %724 = vmatpush2.bf16.xpose.msra.mxu0 0
        %725 = vmatprep.subr.bf16.mxu0 0
        %726 = vmatpush2.bf16.xpose.msra.mxu0 0
        %727 = vmatprep.mubr.bf16.mxu0 0
        %728 = vmatmul.mubr.bf16.gmra.mxu0 %v690
        %v729 = vpop.f32.mrf.mxu0
        %v730 = vadd.f32 0.0, %v729
        %v731 = vpop.f32.mrf.mxu0
        %v732 = vpop.f32.mrf.mxu0
        %v733 = vpop.f32.mrf.mxu0
        %734 = vdwg.mxu0
        %v735 = vsel %vm544, %v586, -inf
        %736 = vmax.xlane.f32.xlu0 %v735
        %v737 = vpop.xlane.xlu0 %736
        %v738 = vsel %vm544, %v634, -inf
        %739 = vmax.xlane.f32.xlu0 %v738
        %v740 = vpop.xlane.xlu0 %739
        %v741 = vsel %vm544, %v682, -inf
        %742 = vmax.xlane.f32.xlu0 %v741
        %v743 = vpop.xlane.xlu0 %742
        %v744 = vsel %vm544, %v730, -inf
        %745 = vmax.xlane.f32.xlu0 %v744
        %v746 = vpop.xlane.xlu0 %745
        %v747 = vsub.f32 %v586, %v737
        %v748 = vsub.f32 %v634, %v740
        %v749 = vsub.f32 %v682, %v743
        %v750 = vsub.f32 %v730, %v746
        %v751 = vmul.f32 %v747, 1.442695
        %v752 = vpow.pop %v751
        %v753 = vmul.f32 %v748, 1.442695
        %v754 = vpow.pop %v753
        %v755 = vmul.f32 %v749, 1.442695
        %v756 = vpow.pop %v755
        %v757 = vmul.f32 %v750, 1.442695
        %v758 = vpow.pop %v757
        %v759 = vsel %vm544, %v752, 0.0
        %760 = vadd.xlane.f32.xlu0 %v759
        %v761 = vpop.xlane.xlu0 %760
        %v762 = vsel %vm544, %v754, 0.0
        %763 = vadd.xlane.f32.xlu0 %v762
        %v764 = vpop.xlane.xlu0 %763
        %v765 = vsel %vm544, %v756, 0.0
        %766 = vadd.xlane.f32.xlu0 %v765
        %v767 = vpop.xlane.xlu0 %766
        %v768 = vsel %vm544, %v758, 0.0
        %769 = vadd.xlane.f32.xlu0 %v768
        %v770 = vpop.xlane.xlu0 %769
        %v771 = vrcp.pop %v761
        %v772 = vrcp.pop %v764
        %v773 = vrcp.pop %v767
        %v774 = vrcp.pop %v770
        %v775 = vmul.f32 %v752, %v771
        %v776 = vmul.f32 %v754, %v772
        %v777 = vmul.f32 %v756, %v773
        %v778 = vmul.f32 %v758, %v774
        %779 = vst.msk [vmem:[%s457] sm:$0xff] %vm544, %v775
        %780 = vst.msk [vmem:[%s457 + $0x8] sm:$0xff] %vm544, %v776
        %781 = vst.msk [vmem:[%s457 + $0x10] sm:$0xff] %vm544, %v777
        %782 = vst.msk [vmem:[%s457 + $0x18] sm:$0xff] %vm544, %v778
        %v783 = vpack.c.bf16 %v775, %v775
        %v784 = vpack.c.bf16 %v776, %v776
        %v785 = vpack.c.bf16 %v777, %v777
        %v786 = vpack.c.bf16 %v778, %v778
        %787 = vrot.lane.b32.xlu0 %v527, 64
        %v788 = vpop.permute.xlu0 %787
        %v790 = vsel %vm544, %v783, 0
        %vm792 = vcmask 1043456
        %v794 = vsel %vm792, %v788, 0
        %796 = vmatprep.subr.bf16.mxu0 0
        %797 = vmatpush1.bf16.msra.mxu0 0
        %798 = vmatprep.subr.bf16.mxu0 0
        %799 = vmatpush1.bf16.msra.mxu0 0
        %800 = vmatprep.subr.bf16.mxu0 0
        %801 = vmatpush1.bf16.msra.mxu0 0
        %802 = vmatprep.subr.bf16.mxu0 0
        %803 = vmatpush1.bf16.msra.mxu0 0
        %804 = vmatprep.subr.bf16.mxu0 0
        %805 = vmatpush1.bf16.msra.mxu0 0
        %806 = vmatprep.subr.bf16.mxu0 0
        %807 = vmatpush1.bf16.msra.mxu0 0
        %808 = vmatprep.subr.bf16.mxu0 0
        %809 = vmatpush1.bf16.msra.mxu0 0
        %810 = vmatprep.subr.bf16.mxu0 0
        %811 = vmatpush1.bf16.msra.mxu0 %v794
        %812 = vmatprep.subr.bf16.mxu0 0
        %813 = vmatpush2.bf16.msra.mxu0 0
        %814 = vmatprep.subr.bf16.mxu0 0
        %815 = vmatpush2.bf16.msra.mxu0 0
        %816 = vmatprep.subr.bf16.mxu0 0
        %817 = vmatpush2.bf16.msra.mxu0 0
        %818 = vmatprep.subr.bf16.mxu0 0
        %819 = vmatpush2.bf16.msra.mxu0 0
        %820 = vmatprep.subr.bf16.mxu0 0
        %821 = vmatpush2.bf16.msra.mxu0 0
        %822 = vmatprep.subr.bf16.mxu0 0
        %823 = vmatpush2.bf16.msra.mxu0 0
        %824 = vmatprep.subr.bf16.mxu0 0
        %825 = vmatpush2.bf16.msra.mxu0 0
        %826 = vmatprep.subr.bf16.mxu0 0
        %827 = vmatpush2.bf16.msra.mxu0 0
        %828 = vmatprep.mubr.bf16.mxu0 0
        %829 = vmatmul.mubr.bf16.gmra.mxu0 %v790
        %v830 = vpop.f32.mrf.mxu0
        %v831 = vadd.f32 0.0, %v830
        %v832 = vpop.f32.mrf.mxu0
        %v833 = vpop.f32.mrf.mxu0
        %v834 = vpop.f32.mrf.mxu0
        %835 = vdwg.mxu0
        %836 = vrot.lane.b32.xlu0 %v537, 64
        %v837 = vpop.permute.xlu0 %836
        %v839 = vsel %vm544, %v784, 0
        %v842 = vsel %vm792, %v837, 0
        %844 = vmatprep.subr.bf16.mxu0 0
        %845 = vmatpush1.bf16.msra.mxu0 0
        %846 = vmatprep.subr.bf16.mxu0 0
        %847 = vmatpush1.bf16.msra.mxu0 0
        %848 = vmatprep.subr.bf16.mxu0 0
        %849 = vmatpush1.bf16.msra.mxu0 0
        %850 = vmatprep.subr.bf16.mxu0 0
        %851 = vmatpush1.bf16.msra.mxu0 0
        %852 = vmatprep.subr.bf16.mxu0 0
        %853 = vmatpush1.bf16.msra.mxu0 0
        %854 = vmatprep.subr.bf16.mxu0 0
        %855 = vmatpush1.bf16.msra.mxu0 0
        %856 = vmatprep.subr.bf16.mxu0 0
        %857 = vmatpush1.bf16.msra.mxu0 0
        %858 = vmatprep.subr.bf16.mxu0 0
        %859 = vmatpush1.bf16.msra.mxu0 %v842
        %860 = vmatprep.subr.bf16.mxu0 0
        %861 = vmatpush2.bf16.msra.mxu0 0
        %862 = vmatprep.subr.bf16.mxu0 0
        %863 = vmatpush2.bf16.msra.mxu0 0
        %864 = vmatprep.subr.bf16.mxu0 0
        %865 = vmatpush2.bf16.msra.mxu0 0
        %866 = vmatprep.subr.bf16.mxu0 0
        %867 = vmatpush2.bf16.msra.mxu0 0
        %868 = vmatprep.subr.bf16.mxu0 0
        %869 = vmatpush2.bf16.msra.mxu0 0
        %870 = vmatprep.subr.bf16.mxu0 0
        %871 = vmatpush2.bf16.msra.mxu0 0
        %872 = vmatprep.subr.bf16.mxu0 0
        %873 = vmatpush2.bf16.msra.mxu0 0
        %874 = vmatprep.subr.bf16.mxu0 0
        %875 = vmatpush2.bf16.msra.mxu0 0
        %876 = vmatprep.mubr.bf16.mxu0 0
        %877 = vmatmul.mubr.bf16.gmra.mxu0 %v839
        %v878 = vpop.f32.mrf.mxu0
        %v879 = vadd.f32 0.0, %v878
        %v880 = vpop.f32.mrf.mxu0
        %v881 = vpop.f32.mrf.mxu0
        %v882 = vpop.f32.mrf.mxu0
        %883 = vdwg.mxu0
        %884 = vrot.lane.b32.xlu0 %v539, 64
        %v885 = vpop.permute.xlu0 %884
        %v887 = vsel %vm544, %v785, 0
        %v890 = vsel %vm792, %v885, 0
        %892 = vmatprep.subr.bf16.mxu0 0
        %893 = vmatpush1.bf16.msra.mxu0 0
        %894 = vmatprep.subr.bf16.mxu0 0
        %895 = vmatpush1.bf16.msra.mxu0 0
        %896 = vmatprep.subr.bf16.mxu0 0
        %897 = vmatpush1.bf16.msra.mxu0 0
        %898 = vmatprep.subr.bf16.mxu0 0
        %899 = vmatpush1.bf16.msra.mxu0 0
        %900 = vmatprep.subr.bf16.mxu0 0
        %901 = vmatpush1.bf16.msra.mxu0 0
        %902 = vmatprep.subr.bf16.mxu0 0
        %903 = vmatpush1.bf16.msra.mxu0 0
        %904 = vmatprep.subr.bf16.mxu0 0
        %905 = vmatpush1.bf16.msra.mxu0 0
        %906 = vmatprep.subr.bf16.mxu0 0
        %907 = vmatpush1.bf16.msra.mxu0 %v890
        %908 = vmatprep.subr.bf16.mxu0 0
        %909 = vmatpush2.bf16.msra.mxu0 0
        %910 = vmatprep.subr.bf16.mxu0 0
        %911 = vmatpush2.bf16.msra.mxu0 0
        %912 = vmatprep.subr.bf16.mxu0 0
        %913 = vmatpush2.bf16.msra.mxu0 0
        %914 = vmatprep.subr.bf16.mxu0 0
        %915 = vmatpush2.bf16.msra.mxu0 0
        %916 = vmatprep.subr.bf16.mxu0 0
        %917 = vmatpush2.bf16.msra.mxu0 0
        %918 = vmatprep.subr.bf16.mxu0 0
        %919 = vmatpush2.bf16.msra.mxu0 0
        %920 = vmatprep.subr.bf16.mxu0 0
        %921 = vmatpush2.bf16.msra.mxu0 0
        %922 = vmatprep.subr.bf16.mxu0 0
        %923 = vmatpush2.bf16.msra.mxu0 0
        %924 = vmatprep.mubr.bf16.mxu0 0
        %925 = vmatmul.mubr.bf16.gmra.mxu0 %v887
        %v926 = vpop.f32.mrf.mxu0
        %v927 = vadd.f32 0.0, %v926
        %v928 = vpop.f32.mrf.mxu0
        %v929 = vpop.f32.mrf.mxu0
        %v930 = vpop.f32.mrf.mxu0
        %931 = vdwg.mxu0
        %932 = vrot.lane.b32.xlu0 %v541, 64
        %v933 = vpop.permute.xlu0 %932
        %v935 = vsel %vm544, %v786, 0
        %v938 = vsel %vm792, %v933, 0
        %940 = vmatprep.subr.bf16.mxu0 0
        %941 = vmatpush1.bf16.msra.mxu0 0
        %942 = vmatprep.subr.bf16.mxu0 0
        %943 = vmatpush1.bf16.msra.mxu0 0
        %944 = vmatprep.subr.bf16.mxu0 0
        %945 = vmatpush1.bf16.msra.mxu0 0
        %946 = vmatprep.subr.bf16.mxu0 0
        %947 = vmatpush1.bf16.msra.mxu0 0
        %948 = vmatprep.subr.bf16.mxu0 0
        %949 = vmatpush1.bf16.msra.mxu0 0
        %950 = vmatprep.subr.bf16.mxu0 0
        %951 = vmatpush1.bf16.msra.mxu0 0
        %952 = vmatprep.subr.bf16.mxu0 0
        %953 = vmatpush1.bf16.msra.mxu0 0
        %954 = vmatprep.subr.bf16.mxu0 0
        %955 = vmatpush1.bf16.msra.mxu0 %v938
        %956 = vmatprep.subr.bf16.mxu0 0
        %957 = vmatpush2.bf16.msra.mxu0 0
        %958 = vmatprep.subr.bf16.mxu0 0
        %959 = vmatpush2.bf16.msra.mxu0 0
        %960 = vmatprep.subr.bf16.mxu0 0
        %961 = vmatpush2.bf16.msra.mxu0 0
        %962 = vmatprep.subr.bf16.mxu0 0
        %963 = vmatpush2.bf16.msra.mxu0 0
        %964 = vmatprep.subr.bf16.mxu0 0
        %965 = vmatpush2.bf16.msra.mxu0 0
        %966 = vmatprep.subr.bf16.mxu0 0
        %967 = vmatpush2.bf16.msra.mxu0 0
        %968 = vmatprep.subr.bf16.mxu0 0
        %969 = vmatpush2.bf16.msra.mxu0 0
        %970 = vmatprep.subr.bf16.mxu0 0
        %971 = vmatpush2.bf16.msra.mxu0 0
        %972 = vmatprep.mubr.bf16.mxu0 0
        %973 = vmatmul.mubr.bf16.gmra.mxu0 %v935
        %v974 = vpop.f32.mrf.mxu0
        %v975 = vadd.f32 0.0, %v974
        %v976 = vpop.f32.mrf.mxu0
        %v977 = vpop.f32.mrf.mxu0
        %v978 = vpop.f32.mrf.mxu0
        %979 = vdwg.mxu0
        %v980 = vpack.c.bf16 %v831, %v831
        %v981 = vpack.c.bf16 %v879, %v879
        %v982 = vpack.c.bf16 %v927, %v927
        %v983 = vpack.c.bf16 %v975, %v975
        %v984 = vld [vmem:[%s2] sm:$0xf]
        %v985 = vld [vmem:[%s2 + $0x4] sm:$0xf]
        %v986 = vld [vmem:[%s2 + $0x8] sm:$0xf]
        %v987 = vld [vmem:[%s2 + $0xc] sm:$0xf]
        %v989 = vsel %vm544, %v980, 0
        %v992 = vsel %vm792, %v984, 0
        %994 = vmatprep.subr.bf16.mxu0 0
        %995 = vmatpush1.bf16.msra.mxu0 0
        %996 = vmatprep.subr.bf16.mxu0 0
        %997 = vmatpush1.bf16.msra.mxu0 0
        %998 = vmatprep.subr.bf16.mxu0 0
        %999 = vmatpush1.bf16.msra.mxu0 0
        %1000 = vmatprep.subr.bf16.mxu0 0
        %1001 = vmatpush1.bf16.msra.mxu0 0
        %1002 = vmatprep.subr.bf16.mxu0 0
        %1003 = vmatpush1.bf16.msra.mxu0 0
        %1004 = vmatprep.subr.bf16.mxu0 0
        %1005 = vmatpush1.bf16.msra.mxu0 0
        %1006 = vmatprep.subr.bf16.mxu0 0
        %1007 = vmatpush1.bf16.msra.mxu0 0
        %1008 = vmatprep.subr.bf16.mxu0 0
        %1009 = vmatpush1.bf16.msra.mxu0 %v992
        %1010 = vmatprep.subr.bf16.mxu0 0
        %1011 = vmatpush2.bf16.msra.mxu0 0
        %1012 = vmatprep.subr.bf16.mxu0 0
        %1013 = vmatpush2.bf16.msra.mxu0 0
        %1014 = vmatprep.subr.bf16.mxu0 0
        %1015 = vmatpush2.bf16.msra.mxu0 0
        %1016 = vmatprep.subr.bf16.mxu0 0
        %1017 = vmatpush2.bf16.msra.mxu0 0
        %1018 = vmatprep.subr.bf16.mxu0 0
        %1019 = vmatpush2.bf16.msra.mxu0 0
        %1020 = vmatprep.subr.bf16.mxu0 0
        %1021 = vmatpush2.bf16.msra.mxu0 0
        %1022 = vmatprep.subr.bf16.mxu0 0
        %1023 = vmatpush2.bf16.msra.mxu0 0
        %1024 = vmatprep.subr.bf16.mxu0 0
        %1025 = vmatpush2.bf16.msra.mxu0 0
        %1026 = vmatprep.mubr.bf16.mxu0 0
        %1027 = vmatmul.mubr.bf16.gmra.mxu0 %v989
        %v1028 = vpop.f32.mrf.mxu0
        %v1029 = vadd.f32 0.0, %v1028
        %v1030 = vpop.f32.mrf.mxu0
        %v1031 = vpop.f32.mrf.mxu0
        %v1032 = vpop.f32.mrf.mxu0
        %1033 = vdwg.mxu0
        %v1035 = vsel %vm544, %v981, 0
        %v1038 = vsel %vm792, %v985, 0
        %1040 = vmatprep.subr.bf16.mxu0 0
        %1041 = vmatpush1.bf16.msra.mxu0 0
        %1042 = vmatprep.subr.bf16.mxu0 0
        %1043 = vmatpush1.bf16.msra.mxu0 0
        %1044 = vmatprep.subr.bf16.mxu0 0
        %1045 = vmatpush1.bf16.msra.mxu0 0
        %1046 = vmatprep.subr.bf16.mxu0 0
        %1047 = vmatpush1.bf16.msra.mxu0 0
        %1048 = vmatprep.subr.bf16.mxu0 0
        %1049 = vmatpush1.bf16.msra.mxu0 0
        %1050 = vmatprep.subr.bf16.mxu0 0
        %1051 = vmatpush1.bf16.msra.mxu0 0
        %1052 = vmatprep.subr.bf16.mxu0 0
        %1053 = vmatpush1.bf16.msra.mxu0 0
        %1054 = vmatprep.subr.bf16.mxu0 0
        %1055 = vmatpush1.bf16.msra.mxu0 %v1038
        %1056 = vmatprep.subr.bf16.mxu0 0
        %1057 = vmatpush2.bf16.msra.mxu0 0
        %1058 = vmatprep.subr.bf16.mxu0 0
        %1059 = vmatpush2.bf16.msra.mxu0 0
        %1060 = vmatprep.subr.bf16.mxu0 0
        %1061 = vmatpush2.bf16.msra.mxu0 0
        %1062 = vmatprep.subr.bf16.mxu0 0
        %1063 = vmatpush2.bf16.msra.mxu0 0
        %1064 = vmatprep.subr.bf16.mxu0 0
        %1065 = vmatpush2.bf16.msra.mxu0 0
        %1066 = vmatprep.subr.bf16.mxu0 0
        %1067 = vmatpush2.bf16.msra.mxu0 0
        %1068 = vmatprep.subr.bf16.mxu0 0
        %1069 = vmatpush2.bf16.msra.mxu0 0
        %1070 = vmatprep.subr.bf16.mxu0 0
        %1071 = vmatpush2.bf16.msra.mxu0 0
        %1072 = vmatprep.mubr.bf16.mxu0 0
        %1073 = vmatmul.mubr.bf16.gmra.mxu0 %v1035
        %v1074 = vpop.f32.mrf.mxu0
        %v1075 = vadd.f32 0.0, %v1074
        %v1076 = vpop.f32.mrf.mxu0
        %v1077 = vpop.f32.mrf.mxu0
        %v1078 = vpop.f32.mrf.mxu0
        %1079 = vdwg.mxu0
        %v1081 = vsel %vm544, %v982, 0
        %v1084 = vsel %vm792, %v986, 0
        %1086 = vmatprep.subr.bf16.mxu0 0
        %1087 = vmatpush1.bf16.msra.mxu0 0
        %1088 = vmatprep.subr.bf16.mxu0 0
        %1089 = vmatpush1.bf16.msra.mxu0 0
        %1090 = vmatprep.subr.bf16.mxu0 0
        %1091 = vmatpush1.bf16.msra.mxu0 0
        %1092 = vmatprep.subr.bf16.mxu0 0
        %1093 = vmatpush1.bf16.msra.mxu0 0
        %1094 = vmatprep.subr.bf16.mxu0 0
        %1095 = vmatpush1.bf16.msra.mxu0 0
        %1096 = vmatprep.subr.bf16.mxu0 0
        %1097 = vmatpush1.bf16.msra.mxu0 0
        %1098 = vmatprep.subr.bf16.mxu0 0
        %1099 = vmatpush1.bf16.msra.mxu0 0
        %1100 = vmatprep.subr.bf16.mxu0 0
        %1101 = vmatpush1.bf16.msra.mxu0 %v1084
        %1102 = vmatprep.subr.bf16.mxu0 0
        %1103 = vmatpush2.bf16.msra.mxu0 0
        %1104 = vmatprep.subr.bf16.mxu0 0
        %1105 = vmatpush2.bf16.msra.mxu0 0
        %1106 = vmatprep.subr.bf16.mxu0 0
        %1107 = vmatpush2.bf16.msra.mxu0 0
        %1108 = vmatprep.subr.bf16.mxu0 0
        %1109 = vmatpush2.bf16.msra.mxu0 0
        %1110 = vmatprep.subr.bf16.mxu0 0
        %1111 = vmatpush2.bf16.msra.mxu0 0
        %1112 = vmatprep.subr.bf16.mxu0 0
        %1113 = vmatpush2.bf16.msra.mxu0 0
        %1114 = vmatprep.subr.bf16.mxu0 0
        %1115 = vmatpush2.bf16.msra.mxu0 0
        %1116 = vmatprep.subr.bf16.mxu0 0
        %1117 = vmatpush2.bf16.msra.mxu0 0
        %1118 = vmatprep.mubr.bf16.mxu0 0
        %1119 = vmatmul.mubr.bf16.gmra.mxu0 %v1081
        %v1120 = vpop.f32.mrf.mxu0
        %v1121 = vadd.f32 0.0, %v1120
        %v1122 = vpop.f32.mrf.mxu0
        %v1123 = vpop.f32.mrf.mxu0
        %v1124 = vpop.f32.mrf.mxu0
        %1125 = vdwg.mxu0
        %v1127 = vsel %vm544, %v983, 0
        %v1130 = vsel %vm792, %v987, 0
        %1132 = vmatprep.subr.bf16.mxu0 0
        %1133 = vmatpush1.bf16.msra.mxu0 0
        %1134 = vmatprep.subr.bf16.mxu0 0
        %1135 = vmatpush1.bf16.msra.mxu0 0
        %1136 = vmatprep.subr.bf16.mxu0 0
        %1137 = vmatpush1.bf16.msra.mxu0 0
        %1138 = vmatprep.subr.bf16.mxu0 0
        %1139 = vmatpush1.bf16.msra.mxu0 0
        %1140 = vmatprep.subr.bf16.mxu0 0
        %1141 = vmatpush1.bf16.msra.mxu0 0
        %1142 = vmatprep.subr.bf16.mxu0 0
        %1143 = vmatpush1.bf16.msra.mxu0 0
        %1144 = vmatprep.subr.bf16.mxu0 0
        %1145 = vmatpush1.bf16.msra.mxu0 0
        %1146 = vmatprep.subr.bf16.mxu0 0
        %1147 = vmatpush1.bf16.msra.mxu0 %v1130
        %1148 = vmatprep.subr.bf16.mxu0 0
        %1149 = vmatpush2.bf16.msra.mxu0 0
        %1150 = vmatprep.subr.bf16.mxu0 0
        %1151 = vmatpush2.bf16.msra.mxu0 0
        %1152 = vmatprep.subr.bf16.mxu0 0
        %1153 = vmatpush2.bf16.msra.mxu0 0
        %1154 = vmatprep.subr.bf16.mxu0 0
        %1155 = vmatpush2.bf16.msra.mxu0 0
        %1156 = vmatprep.subr.bf16.mxu0 0
        %1157 = vmatpush2.bf16.msra.mxu0 0
        %1158 = vmatprep.subr.bf16.mxu0 0
        %1159 = vmatpush2.bf16.msra.mxu0 0
        %1160 = vmatprep.subr.bf16.mxu0 0
        %1161 = vmatpush2.bf16.msra.mxu0 0
        %1162 = vmatprep.subr.bf16.mxu0 0
        %1163 = vmatpush2.bf16.msra.mxu0 0
        %1164 = vmatprep.mubr.bf16.mxu0 0
        %1165 = vmatmul.mubr.bf16.gmra.mxu0 %v1127
        %v1166 = vpop.f32.mrf.mxu0
        %v1167 = vadd.f32 0.0, %v1166
        %v1168 = vpop.f32.mrf.mxu0
        %v1169 = vpop.f32.mrf.mxu0
        %v1170 = vpop.f32.mrf.mxu0
        %1171 = vdwg.mxu0
        %v1172 = vsel %vm481, %v1029, 0.0
        %v1173 = vsel %vm481, %v1075, 0.0
        %v1174 = vadd.f32 %v1172, %v1173
        %v1175 = vsel %vm481, %v1121, 0.0
        %v1176 = vadd.f32 %v1174, %v1175
        %v1177 = vsel %vm481, %v1167, 0.0
        %v1178 = vadd.f32 %v1176, %v1177
        %v1179 = vld [vmem:[%s3] sm:$0x1]
        %v1181 = vlaneseq
        %v1182 = vshrl.u32 %v1181, 7
        %v1183 = vsub.s32 0, %v1182
        %v1184 = vrot.slane %v1179, %v1183
        %v1186 = vadd.f32 %v1178, %v1184
        %v1187 = vadd.f32 %v463, %v1186
        %v1188 = vld [vmem:[%s8] sm:$0x1]
        %v1189 = vld [vmem:[%s9] sm:$0x1]
        %v1190 = vsel %vm481, %v1187, 0.0
        %1191 = vadd.xlane.f32.xlu0 %v1190
        %v1192 = vpop.xlane.xlu0 %1191
        %v1193 = vrcp.pop 32.0
        %v1194 = vmul.f32 %v1192, %v1193
        %v1195 = vsub.f32 %v1187, %v1194
        %v1196 = vmul.f32 %v1195, %v1195
        %v1197 = vsel %vm481, %v1196, 0.0
        %1198 = vadd.xlane.f32.xlu0 %v1197
        %v1199 = vpop.xlane.xlu0 %1198
        %v1200 = vmul.f32 %v1199, %v1193
        %v1201 = vadd.f32 %v1200, 1e-05
        %v1202 = vrsqrt.pop %v1201
        %v1203 = vmul.f32 %v1195, %v1202
        %v1205 = vlaneseq
        %v1206 = vshrl.u32 %v1205, 7
        %v1207 = vsub.s32 0, %v1206
        %v1208 = vrot.slane %v1188, %v1207
        %v1210 = vmul.f32 %v1203, %v1208
        %v1212 = vlaneseq
        %v1213 = vshrl.u32 %v1212, 7
        %v1214 = vsub.s32 0, %v1213
        %v1215 = vrot.slane %v1189, %v1214
        %v1217 = vadd.f32 %v1210, %v1215
        %v1218 = vpack.c.bf16 %v1217, %v1217
        %v1219 = vld [vmem:[#allocation2] sm:$0xf]
        %v1220 = vld [vmem:[#allocation2 + $0x4] sm:$0xf]
        %v1221 = vld [vmem:[#allocation2 + $0x8] sm:$0xf]
        %v1222 = vld [vmem:[#allocation2 + $0xc] sm:$0xf]
        %v1223 = vld [vmem:[%s5] sm:$0x1]
        %v1225 = vlaneseq
        %v1226 = vshrl.u32 %v1225, 7
        %v1227 = vsub.s32 0, %v1226
        %v1228 = vrot.slane %v1223, %v1227
        %v1234 = vunpack.c.l.b16 %v1219
        %v1235 = vunpack.c.l.b16 %v1220
        %v1236 = vunpack.c.l.b16 %v1221
        %v1237 = vunpack.c.l.b16 %v1222
        %v1238 = vpack.c.b16 %v1235, %v1234
        %v1239 = vpack.c.b16 %v1237, %v1236
        %v1243 = vsel %vm481, %v1218, 0
        %1245 = vmatprep.subr.bf16.mxu0 0
        %1246 = vmatpush1.bf16.msra.mxu0 0
        %1247 = vmatprep.subr.bf16.mxu0 0
        %1248 = vmatpush1.bf16.msra.mxu0 0
        %1249 = vmatprep.subr.bf16.mxu0 0
        %1250 = vmatpush1.bf16.msra.mxu0 0
        %1251 = vmatprep.subr.bf16.mxu0 0
        %1252 = vmatpush1.bf16.msra.mxu0 0
        %1253 = vmatprep.subr.bf16.mxu0 0
        %1254 = vmatpush1.bf16.msra.mxu0 0
        %1255 = vmatprep.subr.bf16.mxu0 0
        %1256 = vmatpush1.bf16.msra.mxu0 0
        %1257 = vmatprep.subr.bf16.mxu0 0
        %1258 = vmatpush1.bf16.msra.mxu0 %v1239
        %1259 = vmatprep.subr.bf16.mxu0 0
        %1260 = vmatpush1.bf16.msra.mxu0 %v1238
        %1261 = vmatprep.subr.bf16.mxu0 0
        %1262 = vmatpush2.bf16.msra.mxu0 0
        %1263 = vmatprep.subr.bf16.mxu0 0
        %1264 = vmatpush2.bf16.msra.mxu0 0
        %1265 = vmatprep.subr.bf16.mxu0 0
        %1266 = vmatpush2.bf16.msra.mxu0 0
        %1267 = vmatprep.subr.bf16.mxu0 0
        %1268 = vmatpush2.bf16.msra.mxu0 0
        %1269 = vmatprep.subr.bf16.mxu0 0
        %1270 = vmatpush2.bf16.msra.mxu0 0
        %1271 = vmatprep.subr.bf16.mxu0 0
        %1272 = vmatpush2.bf16.msra.mxu0 0
        %1273 = vmatprep.subr.bf16.mxu0 0
        %1274 = vmatpush2.bf16.msra.mxu0 0
        %1275 = vmatprep.subr.bf16.mxu0 0
        %1276 = vmatpush2.bf16.msra.mxu0 0
        %1277 = vmatprep.mubr.bf16.mxu0 0
        %1278 = vmatmul.mubr.bf16.gmra.mxu0 %v1243
        %v1279 = vpop.f32.mrf.mxu0
        %v1280 = vadd.f32 %v1228, %v1279
        %v1281 = vpop.f32.mrf.mxu0
        %v1282 = vpop.f32.mrf.mxu0
        %v1283 = vpop.f32.mrf.mxu0
        %1284 = vdwg.mxu0
        %v1285 = vmul.f32 %v1280, 0.5
        %v1286 = vmul.f32 %v1280, 0.70710677
        %v1287 = verf.f32.pop %v1286
        %v1288 = vadd.f32 %v1287, 1.0
        %v1289 = vmul.f32 %v1285, %v1288
        %v1290 = vpack.c.bf16 %v1289, %v1289
        %v1291 = vld [vmem:[%s6] sm:$0xf]
        %v1292 = vld [vmem:[%s6 + $0x4] sm:$0xf]
        %v1293 = vld [vmem:[%s6 + $0x8] sm:$0xf]
        %v1294 = vld [vmem:[%s6 + $0xc] sm:$0xf]
        %v1295 = vld [vmem:[%s6 + $0x10] sm:$0xf]
        %v1296 = vld [vmem:[%s6 + $0x14] sm:$0xf]
        %v1297 = vld [vmem:[%s6 + $0x18] sm:$0xf]
        %v1298 = vld [vmem:[%s6 + $0x1c] sm:$0xf]
        %v1299 = vld [vmem:[%s7] sm:$0x1]
        %v1301 = vlaneseq
        %v1302 = vshrl.u32 %v1301, 7
        %v1303 = vsub.s32 0, %v1302
        %v1304 = vrot.slane %v1299, %v1303
        %v1314 = vunpack.c.l.b16 %v1291
        %v1315 = vunpack.c.l.b16 %v1292
        %v1316 = vunpack.c.l.b16 %v1293
        %v1317 = vunpack.c.l.b16 %v1294
        %v1318 = vunpack.c.l.b16 %v1295
        %v1319 = vunpack.c.l.b16 %v1296
        %v1320 = vunpack.c.l.b16 %v1297
        %v1321 = vunpack.c.l.b16 %v1298
        %v1322 = vpack.c.b16 %v1315, %v1314
        %v1323 = vpack.c.b16 %v1317, %v1316
        %v1324 = vpack.c.b16 %v1319, %v1318
        %v1325 = vpack.c.b16 %v1321, %v1320
        %vm1330 = vcmask 523264
        %v1332 = vsel %vm1330, %v1290, 0
        %1334 = vmatprep.subr.bf16.mxu0 0
        %1335 = vmatpush1.bf16.msra.mxu0 0
        %1336 = vmatprep.subr.bf16.mxu0 0
        %1337 = vmatpush1.bf16.msra.mxu0 0
        %1338 = vmatprep.subr.bf16.mxu0 0
        %1339 = vmatpush1.bf16.msra.mxu0 0
        %1340 = vmatprep.subr.bf16.mxu0 0
        %1341 = vmatpush1.bf16.msra.mxu0 0
        %1342 = vmatprep.subr.bf16.mxu0 0
        %1343 = vmatpush1.bf16.msra.mxu0 %v1325
        %1344 = vmatprep.subr.bf16.mxu0 0
        %1345 = vmatpush1.bf16.msra.mxu0 %v1324
        %1346 = vmatprep.subr.bf16.mxu0 0
        %1347 = vmatpush1.bf16.msra.mxu0 %v1323
        %1348 = vmatprep.subr.bf16.mxu0 0
        %1349 = vmatpush1.bf16.msra.mxu0 %v1322
        %1350 = vmatprep.subr.bf16.mxu0 0
        %1351 = vmatpush2.bf16.msra.mxu0 0
        %1352 = vmatprep.subr.bf16.mxu0 0
        %1353 = vmatpush2.bf16.msra.mxu0 0
        %1354 = vmatprep.subr.bf16.mxu0 0
        %1355 = vmatpush2.bf16.msra.mxu0 0
        %1356 = vmatprep.subr.bf16.mxu0 0
        %1357 = vmatpush2.bf16.msra.mxu0 0
        %1358 = vmatprep.subr.bf16.mxu0 0
        %1359 = vmatpush2.bf16.msra.mxu0 0
        %1360 = vmatprep.subr.bf16.mxu0 0
        %1361 = vmatpush2.bf16.msra.mxu0 0
        %1362 = vmatprep.subr.bf16.mxu0 0
        %1363 = vmatpush2.bf16.msra.mxu0 0
        %1364 = vmatprep.subr.bf16.mxu0 0
        %1365 = vmatpush2.bf16.msra.mxu0 0
        %1366 = vmatprep.mubr.bf16.mxu0 0
        %1367 = vmatmul.mubr.bf16.gmra.mxu0 %v1332
        %v1368 = vpop.f32.mrf.mxu0
        %v1369 = vadd.f32 %v1304, %v1368
        %v1370 = vpop.f32.mrf.mxu0
        %v1371 = vpop.f32.mrf.mxu0
        %v1372 = vpop.f32.mrf.mxu0
        %1373 = vdwg.mxu0
        %v1374 = vadd.f32 %v1217, %v1369
        %v1375 = vld [vmem:[%s10] sm:$0x1]
        %v1376 = vld [vmem:[%s11] sm:$0x1]
        %v1377 = vsel %vm481, %v1374, 0.0
        %1378 = vadd.xlane.f32.xlu0 %v1377
        %v1379 = vpop.xlane.xlu0 %1378
        %v1380 = vmul.f32 %v1379, %v1193
        %v1381 = vsub.f32 %v1374, %v1380
        %v1382 = vmul.f32 %v1381, %v1381
        %v1383 = vsel %vm481, %v1382, 0.0
        %1384 = vadd.xlane.f32.xlu0 %v1383
        %v1385 = vpop.xlane.xlu0 %1384
        %v1386 = vmul.f32 %v1385, %v1193
        %v1387 = vadd.f32 %v1386, 1e-05
        %v1388 = vrsqrt.pop %v1387
        %v1389 = vmul.f32 %v1381, %v1388
        %v1391 = vlaneseq
        %v1392 = vshrl.u32 %v1391, 7
        %v1393 = vsub.s32 0, %v1392
        %v1394 = vrot.slane %v1375, %v1393
        %v1396 = vmul.f32 %v1389, %v1394
        %v1398 = vlaneseq
        %v1399 = vshrl.u32 %v1398, 7
        %v1400 = vsub.s32 0, %v1399
        %v1401 = vrot.slane %v1376, %v1400
        %v1403 = vadd.f32 %v1396, %v1401
        %1404 = vst.msk [vmem:[%s450] sm:$0xff] %vm481, %v1403
        %s1405 = sand.u32 %s297, 1
        %s1406 = scalar_lea.sflag [#allocation4], %s1405
        %s1407 = sand.u32 %s297, 1
        %s1408 = smul.addr %s1407, 8
        %s1409 = scalar_lea.vmem [#allocation5], %s1408
        %s1410 = sand.u32 %s323, 1
        %s1411 = scalar_lea.sflag [#allocation7], %s1410
        %s1412 = sand.u32 %s323, 1
        %s1413 = smul.addr %s1412, 32
        %s1414 = scalar_lea.vmem [#allocation6], %s1413
        // Predicated region
        $region73: #{tpu_custom_call.1} parent=67 // pred_check
          %p1415 = pneg %p307
        $region74: #{tpu_custom_call.1} parent=67 // pred_check_branch
          %1417 = sbr.rel (%p1415) target = $region76
        $region75: #{tpu_custom_call.1} parent=67 // pred_region
          %s1419 = ssub.s32 128, 128
          %1420 = vsyncadd %s1406, %s1419
          %s1421 = smul.addr %s32, 128
          %s1422 = scalar_lea.hbm %s12, %s1421
          %s1424 = sshll.u32 %s1409, 4
          %s1425 = int_to_ptr.vmem [resolvable:$true] %s1424
          %1427 = dma.vmem_to_hbm [thread:$0]  %s1425, 128, %s1422, %s1406
        $region76: #{tpu_custom_call.1} parent=67 // pred_fallthru
          _
        // Predicated region
        $region77: #{tpu_custom_call.1} parent=67 // pred_check
          %p1428 = pneg %p333
        $region78: #{tpu_custom_call.1} parent=67 // pred_check_branch
          %1430 = sbr.rel (%p1428) target = $region80
        $region79: #{tpu_custom_call.1} parent=67 // pred_region
          %s1432 = ssub.s32 512, 512
          %1433 = vsyncadd %s1411, %s1432
          %s1434 = smul.addr %s32, 4
          %s1435 = smul.addr %s1434, 128
          %s1436 = scalar_lea.hbm %s13, %s1435
          %s1437 = sshll.u32 %s1414, 4
          %s1438 = int_to_ptr.vmem [resolvable:$true] %s1437
          %1443 = dma.vmem_to_hbm [thread:$0]  %s1438, 512, %s1436, %s1411, 128, 128, 8
        $region80: #{tpu_custom_call.1} parent=67 // pred_fallthru
          _
      $region68: #{tpu_custom_call.1} parent=5 // pred_fallthru
        _
      %p1444 = scmp.le.s32.totalorder 2, %s27
      // Predicated region
      $region81: #{tpu_custom_call.1} parent=5 // pred_check
        %p1445 = pneg %p1444
      $region82: #{tpu_custom_call.1} parent=5 // pred_check_branch
        %1447 = sbr.rel (%p1445) target = $region84
      $region83: #{tpu_custom_call.1} parent=5 // pred_region
        %s1448 = ssub.s32 %s27, 2
        // Predicated region
        $region85: #{tpu_custom_call.1} parent=83 // pred_check
          %p1449 = pneg %p313
        $region86: #{tpu_custom_call.1} parent=83 // pred_check_branch
          %1451 = sbr.rel (%p1449) target = $region88
        $region87: #{tpu_custom_call.1} parent=83 // pred_region
          %s1452 = sand.u32 %s298, 1
          %s1453 = scalar_lea.sflag [#allocation4], %s1452
          %s1454 = sand.u32 %s298, 1
          %s1455 = smul.addr %s1454, 8
          %s1456 = scalar_lea.vmem [#allocation5], %s1455
          %1457 = dma.done %s1453, 128
        $region88: #{tpu_custom_call.1} parent=83 // pred_fallthru
          _
        // Predicated region
        $region89: #{tpu_custom_call.1} parent=83 // pred_check
          %p1458 = pneg %p339
        $region90: #{tpu_custom_call.1} parent=83 // pred_check_branch
          %1460 = sbr.rel (%p1458) target = $region92
        $region91: #{tpu_custom_call.1} parent=83 // pred_region
          %s1461 = sand.u32 %s324, 1
          %s1462 = scalar_lea.sflag [#allocation7], %s1461
          %s1463 = sand.u32 %s324, 1
          %s1464 = smul.addr %s1463, 32
          %s1465 = scalar_lea.vmem [#allocation6], %s1464
          %1466 = dma.done %s1462, 512
        $region92: #{tpu_custom_call.1} parent=83 // pred_fallthru
          _
      $region84: #{tpu_custom_call.1} parent=5 // pred_fallthru
        _
    $region6: #{tpu_custom_call.1} parent=1 // loop_footer
      %s31 = sadd.s32 1, %s27
    $region7: #{tpu_custom_call.1} parent=1 // loop_footer_branch
      %26 = sbr.rel target = $region3
    $region8: #{tpu_custom_call.1} parent=1 // loop_exit
      _
    %1467 = vsyncpa [#allocation3], 1
    %s1468 = scalar_lea.sflag [#allocation3], 1
    %1469 = vsyncpa %s1468, 1
    %1470 = vsyncpa [#allocation4], 1
    %s1471 = scalar_lea.sflag [#allocation4], 1
    %1472 = vsyncpa %s1471, 1
    %1473 = vsyncpa [#allocation7], 1
    %s1474 = scalar_lea.sflag [#allocation7], 1
    %1475 = vsyncpa %s1474, 1

</llo_original>
